<compile_context>
chip_gen: v5e
topology: v5e:2x2
jax: 0.10.0
libtpu: 0.0.40
codegen_flags: <defaults>
</compile_context>

<pallas_src>
import functools
import math

import jax
import jax.numpy as jnp
from jax.experimental import pallas as pl
from jax.experimental.pallas import tpu as pltpu


def _round_up(v, m):
    return ((v + m - 1) // m) * m


# ----------------------------------------------------------------------------
# Pallas kernel: hoisted input projection + unrolled 2-layer LSTM + FC head.
# Gate order in all padded weights/biases is (i, f, o, g) — sigmoids contiguous.
# ----------------------------------------------------------------------------
def _lstm_fc_kernel(x2d_ref,    # (T*Bp, Fp)    bf16, time-major, flattened
                    wih0_ref,   # (Fp, 4Hp)     bf16  layer-0 input weights
                    b0_ref,     # (1, 4Hp)      f32   layer-0 bias (b_ih + b_hh)
                    whh0_ref,   # (Hp, 4Hp)     bf16  layer-0 recurrent weights
                    w1cat_ref,  # (Hp or 2Hp, 4Hp) bf16  layer-1 [W_ih; W_hh] fused
                    b1_ref,     # (1, 4Hp)      f32   layer-1 bias
                    fcw_ref,    # (Hp, Mp)      bf16  FC weights
                    fcb_ref,    # (1, Mp)       f32   FC bias
                    out_ref,    # (Bp, Mp)      f32
                    xw0_ref,    # scratch (T*Bp, 4Hp) f32
                    *, hidden):
    TB = x2d_ref.shape[0]
    Bp = out_ref.shape[0]
    Hp = whh0_ref.shape[0]
    H4 = 4 * Hp
    T = TB // Bp
    # Packed layer-1 path: [h0 | h1] fits in a single Hp-wide lane block.
    pack_l1 = (w1cat_ref.shape[0] == Hp)

    # --- Hoisted layer-0 input projection for ALL timesteps (one MXU call). ---
    xw0_ref[...] = (jnp.dot(x2d_ref[...], wih0_ref[...],
                            preferred_element_type=jnp.float32)
                    + b0_ref[...])

    # Load recurrent weights once; hoist the bias broadcast out of the loop
    # (JAX does not CSE broadcast_in_dim).
    whh0 = whh0_ref[...]                                   # (Hp, 4Hp) bf16
    w1cat = w1cat_ref[...]                                 # (Hp|2Hp, 4Hp) bf16
    b1 = jnp.broadcast_to(b1_ref[...], (Bp, H4))           # (Bp, 4Hp) f32

    def gate_update(gates, c):
        # Reordered gates: i, f, o (sigmoid, contiguous) | g (tanh).
        s = jax.nn.sigmoid(gates[:, :3 * Hp])
        i = s[:, 0 * Hp:1 * Hp]
        f = s[:, 1 * Hp:2 * Hp]
        o = s[:, 2 * Hp:3 * Hp]
        g = jnp.tanh(gates[:, 3 * Hp:4 * Hp])
        c_new = f * c + i * g
        h_new = o * jnp.tanh(c_new)
        return h_new, c_new

    zeros32 = jnp.zeros((Bp, Hp), jnp.float32)
    h0, c0, h1, c1 = zeros32, zeros32, zeros32, zeros32
    h0b = jnp.zeros((Bp, Hp), jnp.bfloat16)

    # T is small and static -> fully unroll: static indexing, and the scheduler
    # can overlap MXU / EUP / VPU work from adjacent timesteps and layers.
    for t in range(T):
        xw_t = xw0_ref[t * Bp:(t + 1) * Bp, :]
        if t == 0:
            # h0 == 0: skip the recurrent matmul entirely on the first step.
            g0 = xw_t
        else:
            g0 = xw_t + jnp.dot(h0b, whh0, preferred_element_type=jnp.float32)
        h0, c0 = gate_update(g0, c0)
        h0b = h0.astype(jnp.bfloat16)      # hoisted cast, reused next step too

        # Layer 1: single fused matmul over the packed [h0 | h1] block.
        if pack_l1:
            if t == 0:
                hcat = h0b                  # h1 == 0 -> packing is just h0
            else:
                # h0 lanes [H,Hp) and rolled-h1 lanes [0,H)+[2H,Hp) are exactly
                # zero, so add == concat; one XLU roll + one VPU add.
                hcat = (h0 + pltpu.roll(h1, shift=hidden, axis=1)
                        ).astype(jnp.bfloat16)
        else:
            hcat = jnp.concatenate([h0, h1], axis=1).astype(jnp.bfloat16)
        g1 = jnp.dot(hcat, w1cat, preferred_element_type=jnp.float32) + b1
        h1, c1 = gate_update(g1, c1)

    # fc(h_n[-1]); output tile is (Bp, Mp) = (8, 128): unmasked lane-dense store.
    out_ref[...] = (jnp.dot(h1.astype(jnp.bfloat16), fcw_ref[...],
                            preferred_element_type=jnp.float32)
                    + fcb_ref[...])


# ----------------------------------------------------------------------------
# Wrapper
# ----------------------------------------------------------------------------
def arch_mod_predictor(x, params):
    """x: (B, T, F) float32 (batch_first, like the PyTorch module)."""
    B, T, F = x.shape
    H = params["whh0"].shape[0]
    M = params["fcw"].shape[1]

    Fp = _round_up(max(F, 16), 16)      # bf16-sublane-friendly feature pad
    Bp = _round_up(max(B, 8), 8)        # full f32 sublane tile
    Hp = _round_up(max(H, 128), 128)    # lane-aligned per-gate width
    Mp = _round_up(max(M, 128), 128)    # lane-dense output width
    pack_l1 = (2 * H <= Hp)             # can [h0|h1] share one Hp-wide block?

    # PyTorch gate order (i, f, g, o) -> (i, f, o, g): sigmoid gates contiguous.
    GATE_ORDER = (0, 1, 3, 2)

    def pad_gate_cols(w):
        # (in, 4H) -> (in, 4Hp): reorder gates, put each gate block at the start
        # of its own lane-aligned Hp-wide block; padded columns are EXACTLY zero
        # (jnp.pad) — the kernel's packing/gate math relies on this.
        in_dim = w.shape[0]
        w4 = w.reshape(in_dim, 4, H)[:, GATE_ORDER, :]
        return jnp.pad(w4, ((0, 0), (0, 0), (0, Hp - H))).reshape(in_dim, 4 * Hp)

    # Layer 0 (input-projection weights bf16: single-pass MXU, half the DMA).
    wih0 = pad_gate_cols(jnp.pad(params["wih0"], ((0, Fp - F), (0, 0)))
                         ).astype(jnp.bfloat16)
    b0 = pad_gate_cols(params["b0"])
    whh0 = pad_gate_cols(jnp.pad(params["whh0"], ((0, Hp - H), (0, 0)))
                         ).astype(jnp.bfloat16)

    # Layer 1: fuse [W_ih1; W_hh1] along K once, outside the kernel loop.
    wih1 = pad_gate_cols(params["wih1"])    # (H, 4Hp), rows NOT padded
    whh1 = pad_gate_cols(params["whh1"])    # (H, 4Hp)
    if pack_l1:
        # K = Hp (128): rows [0,H)=W_ih1, [H,2H)=W_hh1, [2H,Hp)=0; matches the
        # kernel's roll-packed hcat.  Halves the stationary-weight rows vs 2Hp.
        w1cat = jnp.pad(jnp.concatenate([wih1, whh1], axis=0),
                        ((0, Hp - 2 * H), (0, 0)))
    else:
        w1cat = jnp.concatenate([jnp.pad(wih1, ((0, Hp - H), (0, 0))),
                                 jnp.pad(whh1, ((0, Hp - H), (0, 0)))], axis=0)
    w1cat = w1cat.astype(jnp.bfloat16)
    b1 = pad_gate_cols(params["b1"])

    # FC head (bf16 weights, f32 bias/accumulation).
    fcw = jnp.pad(params["fcw"], ((0, Hp - H), (0, Mp - M))).astype(jnp.bfloat16)
    fcb = jnp.pad(params["fcb"], ((0, 0), (0, Mp - M)))

    # Input: pad batch + features, go time-major, flatten to (T*Bp, Fp), bf16.
    xp = jnp.pad(x.astype(jnp.float32), ((0, Bp - B), (0, 0), (0, Fp - F)))
    x2d = jnp.transpose(xp, (1, 0, 2)).reshape(T * Bp, Fp).astype(jnp.bfloat16)

    args = (x2d, wih0, b0, whh0, w1cat, b1, fcw, fcb)
    kernel = functools.partial(_lstm_fc_kernel, hidden=H)

    out = pl.pallas_call(
        kernel,
        out_shape=jax.ShapeDtypeStruct((Bp, Mp), jnp.float32),
        in_specs=[pl.BlockSpec(memory_space=pltpu.MemorySpace.VMEM)] * len(args),
        out_specs=pl.BlockSpec(memory_space=pltpu.MemorySpace.VMEM),
        scratch_shapes=[pltpu.VMEM((T * Bp, 4 * Hp), jnp.float32)],
    )(*args)

    return out[:B, :M]


# ----------------------------------------------------------------------------
# Deterministic parameter init (PyTorch-style uniform(-1/sqrt(H), 1/sqrt(H))),
# stored in (in_dim, 4H) "natural" layout with PyTorch gate order i, f, g, o.
# ----------------------------------------------------------------------------
def init_params(key, input_features=5, hidden_size=64, num_modifications=5):
    H, F, M = hidden_size, input_features, num_modifications
    k = 1.0 / math.sqrt(H)
    ks = jax.random.split(key, 10)

    def u(kk, shape):
        return jax.random.uniform(kk, shape, jnp.float32, minval=-k, maxval=k)

    # PyTorch shapes: weight_ih_l0 (4H,F), weight_hh_l* (4H,H), weight_ih_l1 (4H,H)
    w_ih_l0 = u(ks[0], (4 * H, F))
    w_hh_l0 = u(ks[1], (4 * H, H))
    b_ih_l0 = u(ks[2], (4 * H,))
    b_hh_l0 = u(ks[3], (4 * H,))
    w_ih_l1 = u(ks[4], (4 * H, H))
    w_hh_l1 = u(ks[5], (4 * H, H))
    b_ih_l1 = u(ks[6], (4 * H,))
    b_hh_l1 = u(ks[7], (4 * H,))
    fc_w = jax.random.uniform(ks[8], (M, H), jnp.float32, minval=-k, maxval=k)
    fc_b = jax.random.uniform(ks[9], (M,), jnp.float32, minval=-k, maxval=k)

    return {
        "wih0": w_ih_l0.T,                               # (F, 4H)
        "whh0": w_hh_l0.T,                               # (H, 4H)
        "b0": (b_ih_l0 + b_hh_l0).reshape(1, 4 * H),     # (1, 4H)
        "wih1": w_ih_l1.T,                               # (H, 4H)
        "whh1": w_hh_l1.T,                               # (H, 4H)
        "b1": (b_ih_l1 + b_hh_l1).reshape(1, 4 * H),     # (1, 4H)
        "fcw": fc_w.T,                                   # (H, M)
        "fcb": fc_b.reshape(1, M),                       # (1, M)
    }


# ----------------------------------------------------------------------------
# Pure-JAX f32 reference (same math, PyTorch gate order) for a sanity check.
# ----------------------------------------------------------------------------
def reference(x, params):
    B, T, F = x.shape
    H = params["whh0"].shape[0]

    def cell(xt, h, c, wih, whh, b):
        g = xt @ wih + h @ whh + b
        i, f, gg, o = (jax.nn.sigmoid(g[:, :H]), jax.nn.sigmoid(g[:, H:2 * H]),
                       jnp.tanh(g[:, 2 * H:3 * H]), jax.nn.sigmoid(g[:, 3 * H:]))
        c = f * c + i * gg
        return o * jnp.tanh(c), c

    h0 = c0 = h1 = c1 = jnp.zeros((B, H), jnp.float32)
    for t in range(T):
        h0, c0 = cell(x[:, t, :], h0, c0, params["wih0"], params["whh0"], params["b0"])
        h1, c1 = cell(h0, h1, c1, params["wih1"], params["whh1"], params["b1"])
    return h1 @ params["fcw"] + params["fcb"]


if __name__ == "__main__":
    B, T, F, H, M = 2, 8, 5, 64, 5
    key = jax.random.PRNGKey(0)
    kx, kp = jax.random.split(key)
    x = jax.random.normal(kx, (B, T, F), jnp.float32)
    params = init_params(kp, input_features=F, hidden_size=H, num_modifications=M)

    out = arch_mod_predictor(x, params)
    out = jax.block_until_ready(out)

    ref = reference(x, params)
    assert out.shape == (B, M)
    # bf16 MXU operands (recurrent weights, activations, input proj, FC) vs the
    # f32 reference: observed error is a few 1e-3; tolerance gives 2x headroom.
    assert jnp.allclose(out, ref, atol=2e-2, rtol=2e-2), (out, ref)

    print("KERNEL_OK")
</pallas_src>

<mosaic_0001>
module attributes {stable_mosaic.version = 11 : i64} {
  func.func @_lstm_fc_kernel(%arg0: memref<64x16xbf16, #tpu.memory_space<vmem>>, %arg1: memref<16x512xbf16, #tpu.memory_space<vmem>>, %arg2: memref<1x512xf32, #tpu.memory_space<vmem>>, %arg3: memref<128x512xbf16, #tpu.memory_space<vmem>>, %arg4: memref<128x512xbf16, #tpu.memory_space<vmem>>, %arg5: memref<1x512xf32, #tpu.memory_space<vmem>>, %arg6: memref<128x128xbf16, #tpu.memory_space<vmem>>, %arg7: memref<1x128xf32, #tpu.memory_space<vmem>>, %arg8: memref<8x128xf32, #tpu.memory_space<vmem>>, %arg9: memref<64x512xf32, #tpu.memory_space<vmem>>) attributes {dimension_semantics = [], scalar_prefetch = 0 : i64, scratch_operands = 1 : i64, tpu.core_type = #tpu.core_type<tc>} {
    %c0 = arith.constant 0 : index
    %c0_0 = arith.constant 0 : index
    %0 = vector.load %arg0[%c0, %c0_0] : memref<64x16xbf16, #tpu.memory_space<vmem>>, vector<64x16xbf16>
    %c0_1 = arith.constant 0 : index
    %c0_2 = arith.constant 0 : index
    %1 = vector.load %arg1[%c0_1, %c0_2] : memref<16x512xbf16, #tpu.memory_space<vmem>>, vector<16x512xbf16>
    %cst = arith.constant dense<0.000000e+00> : vector<64x512xf32>
    %2 = tpu.matmul %0, %1, %cst {dimension_numbers = #tpu.dot_dimension_numbers<[1], [0], [0], [1], [0, 0, 1, 1], [], []>} : vector<64x16xbf16>, vector<16x512xbf16>, vector<64x512xf32> -> vector<64x512xf32>
    %c0_3 = arith.constant 0 : index
    %c0_4 = arith.constant 0 : index
    %3 = vector.load %arg2[%c0_3, %c0_4] : memref<1x512xf32, #tpu.memory_space<vmem>>, vector<1x512xf32>
    %4 = vector.broadcast %3 : vector<1x512xf32> to vector<64x512xf32>
    %5 = arith.addf %2, %4 : vector<64x512xf32>
    %c0_5 = arith.constant 0 : index
    %c0_6 = arith.constant 0 : index
    %6 = vector.load %arg9[%c0_5, %c0_6] : memref<64x512xf32, #tpu.memory_space<vmem>>, vector<64x512xf32>
    tpu.vector_store %arg9[%c0_5, %c0_6], %5 {strides = array<i32>} : memref<64x512xf32, #tpu.memory_space<vmem>>, vector<64x512xf32>,
    %c0_7 = arith.constant 0 : index
    %c0_8 = arith.constant 0 : index
    %7 = vector.load %arg3[%c0_7, %c0_8] : memref<128x512xbf16, #tpu.memory_space<vmem>>, vector<128x512xbf16>
    %c0_9 = arith.constant 0 : index
    %c0_10 = arith.constant 0 : index
    %8 = vector.load %arg4[%c0_9, %c0_10] : memref<128x512xbf16, #tpu.memory_space<vmem>>, vector<128x512xbf16>
    %c0_11 = arith.constant 0 : index
    %c0_12 = arith.constant 0 : index
    %9 = vector.load %arg5[%c0_11, %c0_12] : memref<1x512xf32, #tpu.memory_space<vmem>>, vector<1x512xf32>
    %10 = vector.shape_cast %9 : vector<1x512xf32> to vector<1x512xf32>
    %11 = vector.broadcast %10 : vector<1x512xf32> to vector<8x512xf32>
    %cst_13 = arith.constant 0.000000e+00 : f32
    %12 = vector.broadcast %cst_13 : f32 to vector<8x128xf32>
    %c0_14 = arith.constant 0 : index
    %c0_15 = arith.constant 0 : index
    %13 = vector.load %arg9[%c0_14, %c0_15] : memref<64x512xf32, #tpu.memory_space<vmem>>, vector<8x512xf32>
    %14 = vector.extract_strided_slice %13 {offsets = [0, 0], sizes = [8, 384], strides = [1, 1]} : vector<8x512xf32> to vector<8x384xf32>
    %15 = arith.negf %14 : vector<8x384xf32>
    %16 = math.exp %15 : vector<8x384xf32>
    %cst_16 = arith.constant 1.000000e+00 : f32
    %17 = vector.broadcast %cst_16 : f32 to vector<8x384xf32>
    %18 = arith.addf %17, %16 : vector<8x384xf32>
    %19 = arith.divf %17, %18 : vector<8x384xf32>
    %20 = vector.extract_strided_slice %19 {offsets = [0, 0], sizes = [8, 128], strides = [1, 1]} : vector<8x384xf32> to vector<8x128xf32>
    %21 = vector.extract_strided_slice %19 {offsets = [0, 128], sizes = [8, 128], strides = [1, 1]} : vector<8x384xf32> to vector<8x128xf32>
    %22 = vector.extract_strided_slice %19 {offsets = [0, 256], sizes = [8, 128], strides = [1, 1]} : vector<8x384xf32> to vector<8x128xf32>
    %23 = vector.extract_strided_slice %13 {offsets = [0, 384], sizes = [8, 128], strides = [1, 1]} : vector<8x512xf32> to vector<8x128xf32>
    %24 = math.tanh %23 : vector<8x128xf32>
    %25 = arith.mulf %21, %12 : vector<8x128xf32>
    %26 = arith.mulf %20, %24 : vector<8x128xf32>
    %27 = arith.addf %25, %26 : vector<8x128xf32>
    %28 = math.tanh %27 : vector<8x128xf32>
    %29 = arith.mulf %22, %28 : vector<8x128xf32>
    %30 = arith.truncf %29 : vector<8x128xf32> to vector<8x128xbf16>
    %cst_17 = arith.constant dense<0.000000e+00> : vector<8x512xf32>
    %31 = tpu.matmul %30, %8, %cst_17 {dimension_numbers = #tpu.dot_dimension_numbers<[1], [0], [0], [1], [0, 0, 1, 1], [], []>} : vector<8x128xbf16>, vector<128x512xbf16>, vector<8x512xf32> -> vector<8x512xf32>
    %32 = arith.addf %31, %11 : vector<8x512xf32>
    %33 = vector.extract_strided_slice %32 {offsets = [0, 0], sizes = [8, 384], strides = [1, 1]} : vector<8x512xf32> to vector<8x384xf32>
    %34 = arith.negf %33 : vector<8x384xf32>
    %35 = math.exp %34 : vector<8x384xf32>
    %cst_18 = arith.constant 1.000000e+00 : f32
    %36 = vector.broadcast %cst_18 : f32 to vector<8x384xf32>
    %37 = arith.addf %36, %35 : vector<8x384xf32>
    %38 = arith.divf %36, %37 : vector<8x384xf32>
    %39 = vector.extract_strided_slice %38 {offsets = [0, 0], sizes = [8, 128], strides = [1, 1]} : vector<8x384xf32> to vector<8x128xf32>
    %40 = vector.extract_strided_slice %38 {offsets = [0, 128], sizes = [8, 128], strides = [1, 1]} : vector<8x384xf32> to vector<8x128xf32>
    %41 = vector.extract_strided_slice %38 {offsets = [0, 256], sizes = [8, 128], strides = [1, 1]} : vector<8x384xf32> to vector<8x128xf32>
    %42 = vector.extract_strided_slice %32 {offsets = [0, 384], sizes = [8, 128], strides = [1, 1]} : vector<8x512xf32> to vector<8x128xf32>
    %43 = math.tanh %42 : vector<8x128xf32>
    %44 = arith.mulf %40, %12 : vector<8x128xf32>
    %45 = arith.mulf %39, %43 : vector<8x128xf32>
    %46 = arith.addf %44, %45 : vector<8x128xf32>
    %47 = math.tanh %46 : vector<8x128xf32>
    %48 = arith.mulf %41, %47 : vector<8x128xf32>
    %c8 = arith.constant 8 : index
    %c0_19 = arith.constant 0 : index
    %49 = vector.load %arg9[%c8, %c0_19] : memref<64x512xf32, #tpu.memory_space<vmem>>, vector<8x512xf32>
    %cst_20 = arith.constant dense<0.000000e+00> : vector<8x512xf32>
    %50 = tpu.matmul %30, %7, %cst_20 {dimension_numbers = #tpu.dot_dimension_numbers<[1], [0], [0], [1], [0, 0, 1, 1], [], []>} : vector<8x128xbf16>, vector<128x512xbf16>, vector<8x512xf32> -> vector<8x512xf32>
    %51 = arith.addf %49, %50 : vector<8x512xf32>
    %52 = vector.extract_strided_slice %51 {offsets = [0, 0], sizes = [8, 384], strides = [1, 1]} : vector<8x512xf32> to vector<8x384xf32>
    %53 = arith.negf %52 : vector<8x384xf32>
    %54 = math.exp %53 : vector<8x384xf32>
    %cst_21 = arith.constant 1.000000e+00 : f32
    %55 = vector.broadcast %cst_21 : f32 to vector<8x384xf32>
    %56 = arith.addf %55, %54 : vector<8x384xf32>
    %57 = arith.divf %55, %56 : vector<8x384xf32>
    %58 = vector.extract_strided_slice %57 {offsets = [0, 0], sizes = [8, 128], strides = [1, 1]} : vector<8x384xf32> to vector<8x128xf32>
    %59 = vector.extract_strided_slice %57 {offsets = [0, 128], sizes = [8, 128], strides = [1, 1]} : vector<8x384xf32> to vector<8x128xf32>
    %60 = vector.extract_strided_slice %57 {offsets = [0, 256], sizes = [8, 128], strides = [1, 1]} : vector<8x384xf32> to vector<8x128xf32>
    %61 = vector.extract_strided_slice %51 {offsets = [0, 384], sizes = [8, 128], strides = [1, 1]} : vector<8x512xf32> to vector<8x128xf32>
    %62 = math.tanh %61 : vector<8x128xf32>
    %63 = arith.mulf %59, %27 : vector<8x128xf32>
    %64 = arith.mulf %58, %62 : vector<8x128xf32>
    %65 = arith.addf %63, %64 : vector<8x128xf32>
    %66 = math.tanh %65 : vector<8x128xf32>
    %67 = arith.mulf %60, %66 : vector<8x128xf32>
    %68 = arith.truncf %67 : vector<8x128xf32> to vector<8x128xbf16>
    %c64_i32 = arith.constant 64 : i32
    %69 = tpu.dynamic_rotate %48 by %c64_i32 dim 1 : vector<8x128xf32>, i32 -> vector<8x128xf32>
    %70 = arith.addf %67, %69 : vector<8x128xf32>
    %71 = arith.truncf %70 : vector<8x128xf32> to vector<8x128xbf16>
    %cst_22 = arith.constant dense<0.000000e+00> : vector<8x512xf32>
    %72 = tpu.matmul %71, %8, %cst_22 {dimension_numbers = #tpu.dot_dimension_numbers<[1], [0], [0], [1], [0, 0, 1, 1], [], []>} : vector<8x128xbf16>, vector<128x512xbf16>, vector<8x512xf32> -> vector<8x512xf32>
    %73 = arith.addf %72, %11 : vector<8x512xf32>
    %74 = vector.extract_strided_slice %73 {offsets = [0, 0], sizes = [8, 384], strides = [1, 1]} : vector<8x512xf32> to vector<8x384xf32>
    %75 = arith.negf %74 : vector<8x384xf32>
    %76 = math.exp %75 : vector<8x384xf32>
    %cst_23 = arith.constant 1.000000e+00 : f32
    %77 = vector.broadcast %cst_23 : f32 to vector<8x384xf32>
    %78 = arith.addf %77, %76 : vector<8x384xf32>
    %79 = arith.divf %77, %78 : vector<8x384xf32>
    %80 = vector.extract_strided_slice %79 {offsets = [0, 0], sizes = [8, 128], strides = [1, 1]} : vector<8x384xf32> to vector<8x128xf32>
    %81 = vector.extract_strided_slice %79 {offsets = [0, 128], sizes = [8, 128], strides = [1, 1]} : vector<8x384xf32> to vector<8x128xf32>
    %82 = vector.extract_strided_slice %79 {offsets = [0, 256], sizes = [8, 128], strides = [1, 1]} : vector<8x384xf32> to vector<8x128xf32>
    %83 = vector.extract_strided_slice %73 {offsets = [0, 384], sizes = [8, 128], strides = [1, 1]} : vector<8x512xf32> to vector<8x128xf32>
    %84 = math.tanh %83 : vector<8x128xf32>
    %85 = arith.mulf %81, %46 : vector<8x128xf32>
    %86 = arith.mulf %80, %84 : vector<8x128xf32>
    %87 = arith.addf %85, %86 : vector<8x128xf32>
    %88 = math.tanh %87 : vector<8x128xf32>
    %89 = arith.mulf %82, %88 : vector<8x128xf32>
    %c16 = arith.constant 16 : index
    %c0_24 = arith.constant 0 : index
    %90 = vector.load %arg9[%c16, %c0_24] : memref<64x512xf32, #tpu.memory_space<vmem>>, vector<8x512xf32>
    %cst_25 = arith.constant dense<0.000000e+00> : vector<8x512xf32>
    %91 = tpu.matmul %68, %7, %cst_25 {dimension_numbers = #tpu.dot_dimension_numbers<[1], [0], [0], [1], [0, 0, 1, 1], [], []>} : vector<8x128xbf16>, vector<128x512xbf16>, vector<8x512xf32> -> vector<8x512xf32>
    %92 = arith.addf %90, %91 : vector<8x512xf32>
    %93 = vector.extract_strided_slice %92 {offsets = [0, 0], sizes = [8, 384], strides = [1, 1]} : vector<8x512xf32> to vector<8x384xf32>
    %94 = arith.negf %93 : vector<8x384xf32>
    %95 = math.exp %94 : vector<8x384xf32>
    %cst_26 = arith.constant 1.000000e+00 : f32
    %96 = vector.broadcast %cst_26 : f32 to vector<8x384xf32>
    %97 = arith.addf %96, %95 : vector<8x384xf32>
    %98 = arith.divf %96, %97 : vector<8x384xf32>
    %99 = vector.extract_strided_slice %98 {offsets = [0, 0], sizes = [8, 128], strides = [1, 1]} : vector<8x384xf32> to vector<8x128xf32>
    %100 = vector.extract_strided_slice %98 {offsets = [0, 128], sizes = [8, 128], strides = [1, 1]} : vector<8x384xf32> to vector<8x128xf32>
    %101 = vector.extract_strided_slice %98 {offsets = [0, 256], sizes = [8, 128], strides = [1, 1]} : vector<8x384xf32> to vector<8x128xf32>
    %102 = vector.extract_strided_slice %92 {offsets = [0, 384], sizes = [8, 128], strides = [1, 1]} : vector<8x512xf32> to vector<8x128xf32>
    %103 = math.tanh %102 : vector<8x128xf32>
    %104 = arith.mulf %100, %65 : vector<8x128xf32>
    %105 = arith.mulf %99, %103 : vector<8x128xf32>
    %106 = arith.addf %104, %105 : vector<8x128xf32>
    %107 = math.tanh %106 : vector<8x128xf32>
    %108 = arith.mulf %101, %107 : vector<8x128xf32>
    %109 = arith.truncf %108 : vector<8x128xf32> to vector<8x128xbf16>
    %c64_i32_27 = arith.constant 64 : i32
    %110 = tpu.dynamic_rotate %89 by %c64_i32_27 dim 1 : vector<8x128xf32>, i32 -> vector<8x128xf32>
    %111 = arith.addf %108, %110 : vector<8x128xf32>
    %112 = arith.truncf %111 : vector<8x128xf32> to vector<8x128xbf16>
    %cst_28 = arith.constant dense<0.000000e+00> : vector<8x512xf32>
    %113 = tpu.matmul %112, %8, %cst_28 {dimension_numbers = #tpu.dot_dimension_numbers<[1], [0], [0], [1], [0, 0, 1, 1], [], []>} : vector<8x128xbf16>, vector<128x512xbf16>, vector<8x512xf32> -> vector<8x512xf32>
    %114 = arith.addf %113, %11 : vector<8x512xf32>
    %115 = vector.extract_strided_slice %114 {offsets = [0, 0], sizes = [8, 384], strides = [1, 1]} : vector<8x512xf32> to vector<8x384xf32>
    %116 = arith.negf %115 : vector<8x384xf32>
    %117 = math.exp %116 : vector<8x384xf32>
    %cst_29 = arith.constant 1.000000e+00 : f32
    %118 = vector.broadcast %cst_29 : f32 to vector<8x384xf32>
    %119 = arith.addf %118, %117 : vector<8x384xf32>
    %120 = arith.divf %118, %119 : vector<8x384xf32>
    %121 = vector.extract_strided_slice %120 {offsets = [0, 0], sizes = [8, 128], strides = [1, 1]} : vector<8x384xf32> to vector<8x128xf32>
    %122 = vector.extract_strided_slice %120 {offsets = [0, 128], sizes = [8, 128], strides = [1, 1]} : vector<8x384xf32> to vector<8x128xf32>
    %123 = vector.extract_strided_slice %120 {offsets = [0, 256], sizes = [8, 128], strides = [1, 1]} : vector<8x384xf32> to vector<8x128xf32>
    %124 = vector.extract_strided_slice %114 {offsets = [0, 384], sizes = [8, 128], strides = [1, 1]} : vector<8x512xf32> to vector<8x128xf32>
    %125 = math.tanh %124 : vector<8x128xf32>
    %126 = arith.mulf %122, %87 : vector<8x128xf32>
    %127 = arith.mulf %121, %125 : vector<8x128xf32>
    %128 = arith.addf %126, %127 : vector<8x128xf32>
    %129 = math.tanh %128 : vector<8x128xf32>
    %130 = arith.mulf %123, %129 : vector<8x128xf32>
    %c24 = arith.constant 24 : index
    %c0_30 = arith.constant 0 : index
    %131 = vector.load %arg9[%c24, %c0_30] : memref<64x512xf32, #tpu.memory_space<vmem>>, vector<8x512xf32>
    %cst_31 = arith.constant dense<0.000000e+00> : vector<8x512xf32>
    %132 = tpu.matmul %109, %7, %cst_31 {dimension_numbers = #tpu.dot_dimension_numbers<[1], [0], [0], [1], [0, 0, 1, 1], [], []>} : vector<8x128xbf16>, vector<128x512xbf16>, vector<8x512xf32> -> vector<8x512xf32>
    %133 = arith.addf %131, %132 : vector<8x512xf32>
    %134 = vector.extract_strided_slice %133 {offsets = [0, 0], sizes = [8, 384], strides = [1, 1]} : vector<8x512xf32> to vector<8x384xf32>
    %135 = arith.negf %134 : vector<8x384xf32>
    %136 = math.exp %135 : vector<8x384xf32>
    %cst_32 = arith.constant 1.000000e+00 : f32
    %137 = vector.broadcast %cst_32 : f32 to vector<8x384xf32>
    %138 = arith.addf %137, %136 : vector<8x384xf32>
    %139 = arith.divf %137, %138 : vector<8x384xf32>
    %140 = vector.extract_strided_slice %139 {offsets = [0, 0], sizes = [8, 128], strides = [1, 1]} : vector<8x384xf32> to vector<8x128xf32>
    %141 = vector.extract_strided_slice %139 {offsets = [0, 128], sizes = [8, 128], strides = [1, 1]} : vector<8x384xf32> to vector<8x128xf32>
    %142 = vector.extract_strided_slice %139 {offsets = [0, 256], sizes = [8, 128], strides = [1, 1]} : vector<8x384xf32> to vector<8x128xf32>
    %143 = vector.extract_strided_slice %133 {offsets = [0, 384], sizes = [8, 128], strides = [1, 1]} : vector<8x512xf32> to vector<8x128xf32>
    %144 = math.tanh %143 : vector<8x128xf32>
    %145 = arith.mulf %141, %106 : vector<8x128xf32>
    %146 = arith.mulf %140, %144 : vector<8x128xf32>
    %147 = arith.addf %145, %146 : vector<8x128xf32>
    %148 = math.tanh %147 : vector<8x128xf32>
    %149 = arith.mulf %142, %148 : vector<8x128xf32>
    %150 = arith.truncf %149 : vector<8x128xf32> to vector<8x128xbf16>
    %c64_i32_33 = arith.constant 64 : i32
    %151 = tpu.dynamic_rotate %130 by %c64_i32_33 dim 1 : vector<8x128xf32>, i32 -> vector<8x128xf32>
    %152 = arith.addf %149, %151 : vector<8x128xf32>
    %153 = arith.truncf %152 : vector<8x128xf32> to vector<8x128xbf16>
    %cst_34 = arith.constant dense<0.000000e+00> : vector<8x512xf32>
    %154 = tpu.matmul %153, %8, %cst_34 {dimension_numbers = #tpu.dot_dimension_numbers<[1], [0], [0], [1], [0, 0, 1, 1], [], []>} : vector<8x128xbf16>, vector<128x512xbf16>, vector<8x512xf32> -> vector<8x512xf32>
    %155 = arith.addf %154, %11 : vector<8x512xf32>
    %156 = vector.extract_strided_slice %155 {offsets = [0, 0], sizes = [8, 384], strides = [1, 1]} : vector<8x512xf32> to vector<8x384xf32>
    %157 = arith.negf %156 : vector<8x384xf32>
    %158 = math.exp %157 : vector<8x384xf32>
    %cst_35 = arith.constant 1.000000e+00 : f32
    %159 = vector.broadcast %cst_35 : f32 to vector<8x384xf32>
    %160 = arith.addf %159, %158 : vector<8x384xf32>
    %161 = arith.divf %159, %160 : vector<8x384xf32>
    %162 = vector.extract_strided_slice %161 {offsets = [0, 0], sizes = [8, 128], strides = [1, 1]} : vector<8x384xf32> to vector<8x128xf32>
    %163 = vector.extract_strided_slice %161 {offsets = [0, 128], sizes = [8, 128], strides = [1, 1]} : vector<8x384xf32> to vector<8x128xf32>
    %164 = vector.extract_strided_slice %161 {offsets = [0, 256], sizes = [8, 128], strides = [1, 1]} : vector<8x384xf32> to vector<8x128xf32>
    %165 = vector.extract_strided_slice %155 {offsets = [0, 384], sizes = [8, 128], strides = [1, 1]} : vector<8x512xf32> to vector<8x128xf32>
    %166 = math.tanh %165 : vector<8x128xf32>
    %167 = arith.mulf %163, %128 : vector<8x128xf32>
    %168 = arith.mulf %162, %166 : vector<8x128xf32>
    %169 = arith.addf %167, %168 : vector<8x128xf32>
    %170 = math.tanh %169 : vector<8x128xf32>
    %171 = arith.mulf %164, %170 : vector<8x128xf32>
    %c32 = arith.constant 32 : index
    %c0_36 = arith.constant 0 : index
    %172 = vector.load %arg9[%c32, %c0_36] : memref<64x512xf32, #tpu.memory_space<vmem>>, vector<8x512xf32>
    %cst_37 = arith.constant dense<0.000000e+00> : vector<8x512xf32>
    %173 = tpu.matmul %150, %7, %cst_37 {dimension_numbers = #tpu.dot_dimension_numbers<[1], [0], [0], [1], [0, 0, 1, 1], [], []>} : vector<8x128xbf16>, vector<128x512xbf16>, vector<8x512xf32> -> vector<8x512xf32>
    %174 = arith.addf %172, %173 : vector<8x512xf32>
    %175 = vector.extract_strided_slice %174 {offsets = [0, 0], sizes = [8, 384], strides = [1, 1]} : vector<8x512xf32> to vector<8x384xf32>
    %176 = arith.negf %175 : vector<8x384xf32>
    %177 = math.exp %176 : vector<8x384xf32>
    %cst_38 = arith.constant 1.000000e+00 : f32
    %178 = vector.broadcast %cst_38 : f32 to vector<8x384xf32>
    %179 = arith.addf %178, %177 : vector<8x384xf32>
    %180 = arith.divf %178, %179 : vector<8x384xf32>
    %181 = vector.extract_strided_slice %180 {offsets = [0, 0], sizes = [8, 128], strides = [1, 1]} : vector<8x384xf32> to vector<8x128xf32>
    %182 = vector.extract_strided_slice %180 {offsets = [0, 128], sizes = [8, 128], strides = [1, 1]} : vector<8x384xf32> to vector<8x128xf32>
    %183 = vector.extract_strided_slice %180 {offsets = [0, 256], sizes = [8, 128], strides = [1, 1]} : vector<8x384xf32> to vector<8x128xf32>
    %184 = vector.extract_strided_slice %174 {offsets = [0, 384], sizes = [8, 128], strides = [1, 1]} : vector<8x512xf32> to vector<8x128xf32>
    %185 = math.tanh %184 : vector<8x128xf32>
    %186 = arith.mulf %182, %147 : vector<8x128xf32>
    %187 = arith.mulf %181, %185 : vector<8x128xf32>
    %188 = arith.addf %186, %187 : vector<8x128xf32>
    %189 = math.tanh %188 : vector<8x128xf32>
    %190 = arith.mulf %183, %189 : vector<8x128xf32>
    %191 = arith.truncf %190 : vector<8x128xf32> to vector<8x128xbf16>
    %c64_i32_39 = arith.constant 64 : i32
    %192 = tpu.dynamic_rotate %171 by %c64_i32_39 dim 1 : vector<8x128xf32>, i32 -> vector<8x128xf32>
    %193 = arith.addf %190, %192 : vector<8x128xf32>
    %194 = arith.truncf %193 : vector<8x128xf32> to vector<8x128xbf16>
    %cst_40 = arith.constant dense<0.000000e+00> : vector<8x512xf32>
    %195 = tpu.matmul %194, %8, %cst_40 {dimension_numbers = #tpu.dot_dimension_numbers<[1], [0], [0], [1], [0, 0, 1, 1], [], []>} : vector<8x128xbf16>, vector<128x512xbf16>, vector<8x512xf32> -> vector<8x512xf32>
    %196 = arith.addf %195, %11 : vector<8x512xf32>
    %197 = vector.extract_strided_slice %196 {offsets = [0, 0], sizes = [8, 384], strides = [1, 1]} : vector<8x512xf32> to vector<8x384xf32>
    %198 = arith.negf %197 : vector<8x384xf32>
    %199 = math.exp %198 : vector<8x384xf32>
    %cst_41 = arith.constant 1.000000e+00 : f32
    %200 = vector.broadcast %cst_41 : f32 to vector<8x384xf32>
    %201 = arith.addf %200, %199 : vector<8x384xf32>
    %202 = arith.divf %200, %201 : vector<8x384xf32>
    %203 = vector.extract_strided_slice %202 {offsets = [0, 0], sizes = [8, 128], strides = [1, 1]} : vector<8x384xf32> to vector<8x128xf32>
    %204 = vector.extract_strided_slice %202 {offsets = [0, 128], sizes = [8, 128], strides = [1, 1]} : vector<8x384xf32> to vector<8x128xf32>
    %205 = vector.extract_strided_slice %202 {offsets = [0, 256], sizes = [8, 128], strides = [1, 1]} : vector<8x384xf32> to vector<8x128xf32>
    %206 = vector.extract_strided_slice %196 {offsets = [0, 384], sizes = [8, 128], strides = [1, 1]} : vector<8x512xf32> to vector<8x128xf32>
    %207 = math.tanh %206 : vector<8x128xf32>
    %208 = arith.mulf %204, %169 : vector<8x128xf32>
    %209 = arith.mulf %203, %207 : vector<8x128xf32>
    %210 = arith.addf %208, %209 : vector<8x128xf32>
    %211 = math.tanh %210 : vector<8x128xf32>
    %212 = arith.mulf %205, %211 : vector<8x128xf32>
    %c40 = arith.constant 40 : index
    %c0_42 = arith.constant 0 : index
    %213 = vector.load %arg9[%c40, %c0_42] : memref<64x512xf32, #tpu.memory_space<vmem>>, vector<8x512xf32>
    %cst_43 = arith.constant dense<0.000000e+00> : vector<8x512xf32>
    %214 = tpu.matmul %191, %7, %cst_43 {dimension_numbers = #tpu.dot_dimension_numbers<[1], [0], [0], [1], [0, 0, 1, 1], [], []>} : vector<8x128xbf16>, vector<128x512xbf16>, vector<8x512xf32> -> vector<8x512xf32>
    %215 = arith.addf %213, %214 : vector<8x512xf32>
    %216 = vector.extract_strided_slice %215 {offsets = [0, 0], sizes = [8, 384], strides = [1, 1]} : vector<8x512xf32> to vector<8x384xf32>
    %217 = arith.negf %216 : vector<8x384xf32>
    %218 = math.exp %217 : vector<8x384xf32>
    %cst_44 = arith.constant 1.000000e+00 : f32
    %219 = vector.broadcast %cst_44 : f32 to vector<8x384xf32>
    %220 = arith.addf %219, %218 : vector<8x384xf32>
    %221 = arith.divf %219, %220 : vector<8x384xf32>
    %222 = vector.extract_strided_slice %221 {offsets = [0, 0], sizes = [8, 128], strides = [1, 1]} : vector<8x384xf32> to vector<8x128xf32>
    %223 = vector.extract_strided_slice %221 {offsets = [0, 128], sizes = [8, 128], strides = [1, 1]} : vector<8x384xf32> to vector<8x128xf32>
    %224 = vector.extract_strided_slice %221 {offsets = [0, 256], sizes = [8, 128], strides = [1, 1]} : vector<8x384xf32> to vector<8x128xf32>
    %225 = vector.extract_strided_slice %215 {offsets = [0, 384], sizes = [8, 128], strides = [1, 1]} : vector<8x512xf32> to vector<8x128xf32>
    %226 = math.tanh %225 : vector<8x128xf32>
    %227 = arith.mulf %223, %188 : vector<8x128xf32>
    %228 = arith.mulf %222, %226 : vector<8x128xf32>
    %229 = arith.addf %227, %228 : vector<8x128xf32>
    %230 = math.tanh %229 : vector<8x128xf32>
    %231 = arith.mulf %224, %230 : vector<8x128xf32>
    %232 = arith.truncf %231 : vector<8x128xf32> to vector<8x128xbf16>
    %c64_i32_45 = arith.constant 64 : i32
    %233 = tpu.dynamic_rotate %212 by %c64_i32_45 dim 1 : vector<8x128xf32>, i32 -> vector<8x128xf32>
    %234 = arith.addf %231, %233 : vector<8x128xf32>
    %235 = arith.truncf %234 : vector<8x128xf32> to vector<8x128xbf16>
    %cst_46 = arith.constant dense<0.000000e+00> : vector<8x512xf32>
    %236 = tpu.matmul %235, %8, %cst_46 {dimension_numbers = #tpu.dot_dimension_numbers<[1], [0], [0], [1], [0, 0, 1, 1], [], []>} : vector<8x128xbf16>, vector<128x512xbf16>, vector<8x512xf32> -> vector<8x512xf32>
    %237 = arith.addf %236, %11 : vector<8x512xf32>
    %238 = vector.extract_strided_slice %237 {offsets = [0, 0], sizes = [8, 384], strides = [1, 1]} : vector<8x512xf32> to vector<8x384xf32>
    %239 = arith.negf %238 : vector<8x384xf32>
    %240 = math.exp %239 : vector<8x384xf32>
    %cst_47 = arith.constant 1.000000e+00 : f32
    %241 = vector.broadcast %cst_47 : f32 to vector<8x384xf32>
    %242 = arith.addf %241, %240 : vector<8x384xf32>
    %243 = arith.divf %241, %242 : vector<8x384xf32>
    %244 = vector.extract_strided_slice %243 {offsets = [0, 0], sizes = [8, 128], strides = [1, 1]} : vector<8x384xf32> to vector<8x128xf32>
    %245 = vector.extract_strided_slice %243 {offsets = [0, 128], sizes = [8, 128], strides = [1, 1]} : vector<8x384xf32> to vector<8x128xf32>
    %246 = vector.extract_strided_slice %243 {offsets = [0, 256], sizes = [8, 128], strides = [1, 1]} : vector<8x384xf32> to vector<8x128xf32>
    %247 = vector.extract_strided_slice %237 {offsets = [0, 384], sizes = [8, 128], strides = [1, 1]} : vector<8x512xf32> to vector<8x128xf32>
    %248 = math.tanh %247 : vector<8x128xf32>
    %249 = arith.mulf %245, %210 : vector<8x128xf32>
    %250 = arith.mulf %244, %248 : vector<8x128xf32>
    %251 = arith.addf %249, %250 : vector<8x128xf32>
    %252 = math.tanh %251 : vector<8x128xf32>
    %253 = arith.mulf %246, %252 : vector<8x128xf32>
    %c48 = arith.constant 48 : index
    %c0_48 = arith.constant 0 : index
    %254 = vector.load %arg9[%c48, %c0_48] : memref<64x512xf32, #tpu.memory_space<vmem>>, vector<8x512xf32>
    %cst_49 = arith.constant dense<0.000000e+00> : vector<8x512xf32>
    %255 = tpu.matmul %232, %7, %cst_49 {dimension_numbers = #tpu.dot_dimension_numbers<[1], [0], [0], [1], [0, 0, 1, 1], [], []>} : vector<8x128xbf16>, vector<128x512xbf16>, vector<8x512xf32> -> vector<8x512xf32>
    %256 = arith.addf %254, %255 : vector<8x512xf32>
    %257 = vector.extract_strided_slice %256 {offsets = [0, 0], sizes = [8, 384], strides = [1, 1]} : vector<8x512xf32> to vector<8x384xf32>
    %258 = arith.negf %257 : vector<8x384xf32>
    %259 = math.exp %258 : vector<8x384xf32>
    %cst_50 = arith.constant 1.000000e+00 : f32
    %260 = vector.broadcast %cst_50 : f32 to vector<8x384xf32>
    %261 = arith.addf %260, %259 : vector<8x384xf32>
    %262 = arith.divf %260, %261 : vector<8x384xf32>
    %263 = vector.extract_strided_slice %262 {offsets = [0, 0], sizes = [8, 128], strides = [1, 1]} : vector<8x384xf32> to vector<8x128xf32>
    %264 = vector.extract_strided_slice %262 {offsets = [0, 128], sizes = [8, 128], strides = [1, 1]} : vector<8x384xf32> to vector<8x128xf32>
    %265 = vector.extract_strided_slice %262 {offsets = [0, 256], sizes = [8, 128], strides = [1, 1]} : vector<8x384xf32> to vector<8x128xf32>
    %266 = vector.extract_strided_slice %256 {offsets = [0, 384], sizes = [8, 128], strides = [1, 1]} : vector<8x512xf32> to vector<8x128xf32>
    %267 = math.tanh %266 : vector<8x128xf32>
    %268 = arith.mulf %264, %229 : vector<8x128xf32>
    %269 = arith.mulf %263, %267 : vector<8x128xf32>
    %270 = arith.addf %268, %269 : vector<8x128xf32>
    %271 = math.tanh %270 : vector<8x128xf32>
    %272 = arith.mulf %265, %271 : vector<8x128xf32>
    %273 = arith.truncf %272 : vector<8x128xf32> to vector<8x128xbf16>
    %c64_i32_51 = arith.constant 64 : i32
    %274 = tpu.dynamic_rotate %253 by %c64_i32_51 dim 1 : vector<8x128xf32>, i32 -> vector<8x128xf32>
    %275 = arith.addf %272, %274 : vector<8x128xf32>
    %276 = arith.truncf %275 : vector<8x128xf32> to vector<8x128xbf16>
    %cst_52 = arith.constant dense<0.000000e+00> : vector<8x512xf32>
    %277 = tpu.matmul %276, %8, %cst_52 {dimension_numbers = #tpu.dot_dimension_numbers<[1], [0], [0], [1], [0, 0, 1, 1], [], []>} : vector<8x128xbf16>, vector<128x512xbf16>, vector<8x512xf32> -> vector<8x512xf32>
    %278 = arith.addf %277, %11 : vector<8x512xf32>
    %279 = vector.extract_strided_slice %278 {offsets = [0, 0], sizes = [8, 384], strides = [1, 1]} : vector<8x512xf32> to vector<8x384xf32>
    %280 = arith.negf %279 : vector<8x384xf32>
    %281 = math.exp %280 : vector<8x384xf32>
    %cst_53 = arith.constant 1.000000e+00 : f32
    %282 = vector.broadcast %cst_53 : f32 to vector<8x384xf32>
    %283 = arith.addf %282, %281 : vector<8x384xf32>
    %284 = arith.divf %282, %283 : vector<8x384xf32>
    %285 = vector.extract_strided_slice %284 {offsets = [0, 0], sizes = [8, 128], strides = [1, 1]} : vector<8x384xf32> to vector<8x128xf32>
    %286 = vector.extract_strided_slice %284 {offsets = [0, 128], sizes = [8, 128], strides = [1, 1]} : vector<8x384xf32> to vector<8x128xf32>
    %287 = vector.extract_strided_slice %284 {offsets = [0, 256], sizes = [8, 128], strides = [1, 1]} : vector<8x384xf32> to vector<8x128xf32>
    %288 = vector.extract_strided_slice %278 {offsets = [0, 384], sizes = [8, 128], strides = [1, 1]} : vector<8x512xf32> to vector<8x128xf32>
    %289 = math.tanh %288 : vector<8x128xf32>
    %290 = arith.mulf %286, %251 : vector<8x128xf32>
    %291 = arith.mulf %285, %289 : vector<8x128xf32>
    %292 = arith.addf %290, %291 : vector<8x128xf32>
    %293 = math.tanh %292 : vector<8x128xf32>
    %294 = arith.mulf %287, %293 : vector<8x128xf32>
    %c56 = arith.constant 56 : index
    %c0_54 = arith.constant 0 : index
    %295 = vector.load %arg9[%c56, %c0_54] : memref<64x512xf32, #tpu.memory_space<vmem>>, vector<8x512xf32>
    %cst_55 = arith.constant dense<0.000000e+00> : vector<8x512xf32>
    %296 = tpu.matmul %273, %7, %cst_55 {dimension_numbers = #tpu.dot_dimension_numbers<[1], [0], [0], [1], [0, 0, 1, 1], [], []>} : vector<8x128xbf16>, vector<128x512xbf16>, vector<8x512xf32> -> vector<8x512xf32>
    %297 = arith.addf %295, %296 : vector<8x512xf32>
    %298 = vector.extract_strided_slice %297 {offsets = [0, 0], sizes = [8, 384], strides = [1, 1]} : vector<8x512xf32> to vector<8x384xf32>
    %299 = arith.negf %298 : vector<8x384xf32>
    %300 = math.exp %299 : vector<8x384xf32>
    %cst_56 = arith.constant 1.000000e+00 : f32
    %301 = vector.broadcast %cst_56 : f32 to vector<8x384xf32>
    %302 = arith.addf %301, %300 : vector<8x384xf32>
    %303 = arith.divf %301, %302 : vector<8x384xf32>
    %304 = vector.extract_strided_slice %303 {offsets = [0, 0], sizes = [8, 128], strides = [1, 1]} : vector<8x384xf32> to vector<8x128xf32>
    %305 = vector.extract_strided_slice %303 {offsets = [0, 128], sizes = [8, 128], strides = [1, 1]} : vector<8x384xf32> to vector<8x128xf32>
    %306 = vector.extract_strided_slice %303 {offsets = [0, 256], sizes = [8, 128], strides = [1, 1]} : vector<8x384xf32> to vector<8x128xf32>
    %307 = vector.extract_strided_slice %297 {offsets = [0, 384], sizes = [8, 128], strides = [1, 1]} : vector<8x512xf32> to vector<8x128xf32>
    %308 = math.tanh %307 : vector<8x128xf32>
    %309 = arith.mulf %305, %270 : vector<8x128xf32>
    %310 = arith.mulf %304, %308 : vector<8x128xf32>
    %311 = arith.addf %309, %310 : vector<8x128xf32>
    %312 = math.tanh %311 : vector<8x128xf32>
    %313 = arith.mulf %306, %312 : vector<8x128xf32>
    %c64_i32_57 = arith.constant 64 : i32
    %314 = tpu.dynamic_rotate %294 by %c64_i32_57 dim 1 : vector<8x128xf32>, i32 -> vector<8x128xf32>
    %315 = arith.addf %313, %314 : vector<8x128xf32>
    %316 = arith.truncf %315 : vector<8x128xf32> to vector<8x128xbf16>
    %cst_58 = arith.constant dense<0.000000e+00> : vector<8x512xf32>
    %317 = tpu.matmul %316, %8, %cst_58 {dimension_numbers = #tpu.dot_dimension_numbers<[1], [0], [0], [1], [0, 0, 1, 1], [], []>} : vector<8x128xbf16>, vector<128x512xbf16>, vector<8x512xf32> -> vector<8x512xf32>
    %318 = arith.addf %317, %11 : vector<8x512xf32>
    %319 = vector.extract_strided_slice %318 {offsets = [0, 0], sizes = [8, 384], strides = [1, 1]} : vector<8x512xf32> to vector<8x384xf32>
    %320 = arith.negf %319 : vector<8x384xf32>
    %321 = math.exp %320 : vector<8x384xf32>
    %cst_59 = arith.constant 1.000000e+00 : f32
    %322 = vector.broadcast %cst_59 : f32 to vector<8x384xf32>
    %323 = arith.addf %322, %321 : vector<8x384xf32>
    %324 = arith.divf %322, %323 : vector<8x384xf32>
    %325 = vector.extract_strided_slice %324 {offsets = [0, 0], sizes = [8, 128], strides = [1, 1]} : vector<8x384xf32> to vector<8x128xf32>
    %326 = vector.extract_strided_slice %324 {offsets = [0, 128], sizes = [8, 128], strides = [1, 1]} : vector<8x384xf32> to vector<8x128xf32>
    %327 = vector.extract_strided_slice %324 {offsets = [0, 256], sizes = [8, 128], strides = [1, 1]} : vector<8x384xf32> to vector<8x128xf32>
    %328 = vector.extract_strided_slice %318 {offsets = [0, 384], sizes = [8, 128], strides = [1, 1]} : vector<8x512xf32> to vector<8x128xf32>
    %329 = math.tanh %328 : vector<8x128xf32>
    %330 = arith.mulf %326, %292 : vector<8x128xf32>
    %331 = arith.mulf %325, %329 : vector<8x128xf32>
    %332 = arith.addf %330, %331 : vector<8x128xf32>
    %333 = math.tanh %332 : vector<8x128xf32>
    %334 = arith.mulf %327, %333 : vector<8x128xf32>
    %335 = arith.truncf %334 : vector<8x128xf32> to vector<8x128xbf16>
    %c0_60 = arith.constant 0 : index
    %c0_61 = arith.constant 0 : index
    %336 = vector.load %arg6[%c0_60, %c0_61] : memref<128x128xbf16, #tpu.memory_space<vmem>>, vector<128x128xbf16>
    %cst_62 = arith.constant dense<0.000000e+00> : vector<8x128xf32>
    %337 = tpu.matmul %335, %336, %cst_62 {dimension_numbers = #tpu.dot_dimension_numbers<[1], [0], [0], [1], [0, 0, 1, 1], [], []>} : vector<8x128xbf16>, vector<128x128xbf16>, vector<8x128xf32> -> vector<8x128xf32>
    %c0_63 = arith.constant 0 : index
    %c0_64 = arith.constant 0 : index
    %338 = vector.load %arg7[%c0_63, %c0_64] : memref<1x128xf32, #tpu.memory_space<vmem>>, vector<1x128xf32>
    %339 = vector.broadcast %338 : vector<1x128xf32> to vector<8x128xf32>
    %340 = arith.addf %337, %339 : vector<8x128xf32>
    %c0_65 = arith.constant 0 : index
    %c0_66 = arith.constant 0 : index
    %341 = vector.load %arg8[%c0_65, %c0_66] : memref<8x128xf32, #tpu.memory_space<vmem>>, vector<8x128xf32>
    tpu.vector_store %arg8[%c0_65, %c0_66], %340 {strides = array<i32>} : memref<8x128xf32, #tpu.memory_space<vmem>>, vector<8x128xf32>,
    return
  }
}

</mosaic_0001>

<llo_original>
// kernel: tpu_custom_call.1
$region0: #{tpu_custom_call.1}
  #allocation0 [shape = 'u32[]', space=smem, size = 0x4, offset = 0x4, fixed_abs, tag = 'smem constant byte address 0x4 - core index']
  #allocation1 [shape = 'u32[72,128]{1,0:T(1,128)}', space=vmem, size = 0x9000, scoped, tag = 'internal scratch']
  #allocation2 [shape = 'f32[64,512]{1,0:T(8,128)}', space=vmem, size = 0x20000, scoped, tag = 'scratch operand']
  %s0 = inlined_call_operand.vmem [shape: bf16[64,16], index: 0, kind: input, shape index: {}]
  %s1 = inlined_call_operand.vmem [shape: bf16[16,512], index: 1, kind: input, shape index: {}]
  %s2 = inlined_call_operand.vmem [shape: f32[1,512], index: 2, kind: input, shape index: {}]
  %s3 = inlined_call_operand.hbm [shape: bf16[128,512], index: 3, kind: input, shape index: {}]
  %s4 = inlined_call_operand.hbm [shape: bf16[128,512], index: 4, kind: input, shape index: {}]
  %s5 = inlined_call_operand.vmem [shape: f32[1,512], index: 5, kind: input, shape index: {}]
  %s6 = inlined_call_operand.hbm [shape: bf16[128,128], index: 6, kind: input, shape index: {}]
  %s7 = inlined_call_operand.vmem [shape: f32[1,128], index: 7, kind: input, shape index: {}]
  %s8 = inlined_call_operand.hbm [shape: f32[8,128], index: 8, kind: output, shape index: {}]
  %s9 = sld [smem:[#allocation0]]
  $region54: #{tpu_custom_call.1} parent=0
    _
  %s11 = ssub.s32 1, %s9
  %s12 = scalar_select 0, %s11, %s9
  $region1: #{tpu_custom_call.1} parent=0
    #allocation3 [shape = 'u8[131072]{0}', space=vmem, size = 0x20000, scoped, tag = 'input window, operand 3, single buffered']
    #allocation4 [shape = 's32[1]{0}', space=sflag, size = 0x4, scoped, tag = 'scoped memory for tpu_custom_call.1']
    #allocation5 [shape = 's32[1]{0}', space=sflag, size = 0x4, scoped, tag = 'scoped memory for tpu_custom_call.1']
    #allocation6 [shape = 'u8[131072]{0}', space=vmem, size = 0x20000, scoped, tag = 'input window, operand 4, single buffered']
    #allocation7 [shape = 's32[1]{0}', space=sflag, size = 0x4, scoped, tag = 'scoped memory for tpu_custom_call.1']
    #allocation8 [shape = 'u8[32768]{0}', space=vmem, size = 0x8000, scoped, tag = 'input window, operand 6, single buffered']
    #allocation9 [shape = 'u8[4096]{0}', space=vmem, size = 0x1000, scoped, tag = 'output window, operand 0, single buffered']
    %13 = vsyncpa [#allocation4], 0
    %14 = vsyncpa [#allocation7], 0
    %15 = vsyncpa [#allocation5], 0
    // Predicated region
    $region2: #{tpu_custom_call.1} parent=1 // pred_check
      _
    $region3: #{tpu_custom_call.1} parent=1 // pred_check_branch
      %17 = sbr.rel (0) target = $region5
    $region4: #{tpu_custom_call.1} parent=1 // pred_region
      _
    $region5: #{tpu_custom_call.1} parent=1 // pred_fallthru
      _
    // Predicated region
    $region6: #{tpu_custom_call.1} parent=1 // pred_check
      _
    $region7: #{tpu_custom_call.1} parent=1 // pred_check_branch
      %19 = sbr.rel (0) target = $region9
    $region8: #{tpu_custom_call.1} parent=1 // pred_region
      _
    $region9: #{tpu_custom_call.1} parent=1 // pred_fallthru
      _
    // Predicated region
    $region10: #{tpu_custom_call.1} parent=1 // pred_check
      _
    $region11: #{tpu_custom_call.1} parent=1 // pred_check_branch
      %21 = sbr.rel (0) target = $region13
    $region12: #{tpu_custom_call.1} parent=1 // pred_region
      _
    $region13: #{tpu_custom_call.1} parent=1 // pred_fallthru
      _
    // Predicated region
    $region14: #{tpu_custom_call.1} parent=1 // pred_check
      _
    $region15: #{tpu_custom_call.1} parent=1 // pred_check_branch
      %23 = sbr.rel (0) target = $region17
    $region16: #{tpu_custom_call.1} parent=1 // pred_region
      %25 = vsyncadd [#allocation4], 0
      %s26 = sshll.u32 %s3, 4
      %s27 = int_to_ptr.hbm [resolvable:$true] %s26
      %s28 = sshll.u32 [#allocation3], 4
      %s29 = int_to_ptr.vmem [resolvable:$true] %s28
      %34 = dma.hbm_to_vmem [thread:$0]  %s27, 4096, %s29, [#allocation4], 256, 256, 16
    $region17: #{tpu_custom_call.1} parent=1 // pred_fallthru
      _
    // Predicated region
    $region18: #{tpu_custom_call.1} parent=1 // pred_check
      _
    $region19: #{tpu_custom_call.1} parent=1 // pred_check_branch
      %36 = sbr.rel (0) target = $region21
    $region20: #{tpu_custom_call.1} parent=1 // pred_region
      %38 = vsyncadd [#allocation7], 0
      %s39 = sshll.u32 %s4, 4
      %s40 = int_to_ptr.hbm [resolvable:$true] %s39
      %s41 = sshll.u32 [#allocation6], 4
      %s42 = int_to_ptr.vmem [resolvable:$true] %s41
      %47 = dma.hbm_to_vmem [thread:$0]  %s40, 4096, %s42, [#allocation7], 256, 256, 16
    $region21: #{tpu_custom_call.1} parent=1 // pred_fallthru
      _
    // Predicated region
    $region22: #{tpu_custom_call.1} parent=1 // pred_check
      _
    $region23: #{tpu_custom_call.1} parent=1 // pred_check_branch
      %49 = sbr.rel (0) target = $region25
    $region24: #{tpu_custom_call.1} parent=1 // pred_region
      _
    $region25: #{tpu_custom_call.1} parent=1 // pred_fallthru
      _
    // Predicated region
    $region26: #{tpu_custom_call.1} parent=1 // pred_check
      _
    $region27: #{tpu_custom_call.1} parent=1 // pred_check_branch
      %51 = sbr.rel (0) target = $region29
    $region28: #{tpu_custom_call.1} parent=1 // pred_region
      %53 = vsyncadd [#allocation7], 0
      %s54 = sshll.u32 %s6, 4
      %s55 = int_to_ptr.hbm [resolvable:$true] %s54
      %s56 = sshll.u32 [#allocation8], 4
      %s57 = int_to_ptr.vmem [resolvable:$true] %s56
      %62 = dma.hbm_to_vmem [thread:$0]  %s55, 1024, %s57, [#allocation7], 64, 64, 4
    $region29: #{tpu_custom_call.1} parent=1 // pred_fallthru
      _
    // Predicated region
    $region30: #{tpu_custom_call.1} parent=1 // pred_check
      _
    $region31: #{tpu_custom_call.1} parent=1 // pred_check_branch
      %64 = sbr.rel (0) target = $region33
    $region32: #{tpu_custom_call.1} parent=1 // pred_region
      _
    $region33: #{tpu_custom_call.1} parent=1 // pred_fallthru
      _
    // Predicated region
    $region34: #{tpu_custom_call.1} parent=1 // pred_check
      _
    $region35: #{tpu_custom_call.1} parent=1 // pred_check_branch
      %66 = sbr.rel (0) target = $region37
    $region36: #{tpu_custom_call.1} parent=1 // pred_region
      %68 = dma.done [#allocation4], 4096
    $region37: #{tpu_custom_call.1} parent=1 // pred_fallthru
      _
    // Predicated region
    $region38: #{tpu_custom_call.1} parent=1 // pred_check
      _
    $region39: #{tpu_custom_call.1} parent=1 // pred_check_branch
      %70 = sbr.rel (0) target = $region41
    $region40: #{tpu_custom_call.1} parent=1 // pred_region
      %72 = dma.done [#allocation7], 4096
    $region41: #{tpu_custom_call.1} parent=1 // pred_fallthru
      _
    // Predicated region
    $region42: #{tpu_custom_call.1} parent=1 // pred_check
      _
    $region43: #{tpu_custom_call.1} parent=1 // pred_check_branch
      %74 = sbr.rel (0) target = $region45
    $region44: #{tpu_custom_call.1} parent=1 // pred_region
      %76 = dma.done [#allocation7], 1024
    $region45: #{tpu_custom_call.1} parent=1 // pred_fallthru
      _
    %v78 = vld [vmem:[%s0] sm:$0xf]
    %v79 = vld [vmem:[%s0 + $0x4] sm:$0xf]
    %v80 = vld [vmem:[%s0 + $0x8] sm:$0xf]
    %v81 = vld [vmem:[%s0 + $0xc] sm:$0xf]
    %v82 = vld [vmem:[%s0 + $0x10] sm:$0xf]
    %v83 = vld [vmem:[%s0 + $0x14] sm:$0xf]
    %v84 = vld [vmem:[%s0 + $0x18] sm:$0xf]
    %v85 = vld [vmem:[%s0 + $0x1c] sm:$0xf]
    %v86 = vld [vmem:[%s1] sm:$0xff]
    %v87 = vld [vmem:[%s1 + $0x8] sm:$0xff]
    %v88 = vld [vmem:[%s1 + $0x10] sm:$0xff]
    %v89 = vld [vmem:[%s1 + $0x18] sm:$0xff]
    %v90 = vld [vmem:[%s2] sm:$0xf]
    %v92 = vperm.slane %v90, 0
    %v93 = vperm.slane %v90, 1
    %v94 = vperm.slane %v90, 2
    %v95 = vperm.slane %v90, 3
    %v108 = vunpack.c.l.b16 %v78
    %v109 = vunpack.c.l.b16 %v79
    %v110 = vunpack.c.l.b16 %v80
    %v111 = vunpack.c.l.b16 %v81
    %v112 = vunpack.c.l.b16 %v82
    %v113 = vunpack.c.l.b16 %v83
    %v114 = vunpack.c.l.b16 %v84
    %v115 = vunpack.c.l.b16 %v85
    %v116 = vpack.c.b16 %v109, %v108
    %v117 = vpack.c.b16 %v111, %v110
    %v118 = vpack.c.b16 %v113, %v112
    %v119 = vpack.c.b16 %v115, %v114
    %v124 = vunpack.c.l.b16 %v86
    %v125 = vunpack.c.h.b16 %v86
    %v126 = vunpack.c.l.b16 %v87
    %v127 = vunpack.c.h.b16 %v87
    %v128 = vunpack.c.l.b16 %v88
    %v129 = vunpack.c.h.b16 %v88
    %v130 = vunpack.c.l.b16 %v89
    %v131 = vunpack.c.h.b16 %v89
    %v132 = vpack.c.b16 %v128, %v124
    %v133 = vpack.c.b16 %v129, %v125
    %v134 = vpack.c.b16 %v130, %v126
    %v135 = vpack.c.b16 %v131, %v127
    %vm140 = vcmask 130048
    %v142 = vsel %vm140, %v116, 0
    %v145 = vsel %vm140, %v117, 0
    %v148 = vsel %vm140, %v118, 0
    %v151 = vsel %vm140, %v119, 0
    %153 = vmatpush.bf16.msra.mxu0 0
    %154 = vmatpush.bf16.msra.mxu0 0
    %155 = vmatpush.bf16.msra.mxu0 0
    %156 = vmatpush.bf16.msra.mxu0 0
    %157 = vmatpush.bf16.msra.mxu0 0
    %158 = vmatpush.bf16.msra.mxu0 0
    %159 = vmatpush.bf16.msra.mxu0 0
    %160 = vmatpush.bf16.msra.mxu0 %v132
    %161 = vmatmul.bf16.gmra.mxu0 %v142
    %v162 = vpop.f32.mrf.mxu0
    %v163 = vadd.f32 %v92, %v162
    %v164 = vpop.f32.mrf.mxu0
    %v165 = vadd.f32 %v92, %v164
    %166 = vmatmul.bf16.gmra.mxu0 %v145
    %v167 = vpop.f32.mrf.mxu0
    %v168 = vadd.f32 %v92, %v167
    %v169 = vpop.f32.mrf.mxu0
    %v170 = vadd.f32 %v92, %v169
    %171 = vmatmul.bf16.gmra.mxu0 %v148
    %v172 = vpop.f32.mrf.mxu0
    %v173 = vadd.f32 %v92, %v172
    %v174 = vpop.f32.mrf.mxu0
    %v175 = vadd.f32 %v92, %v174
    %176 = vmatmul.bf16.gmra.mxu0 %v151
    %v177 = vpop.f32.mrf.mxu0
    %v178 = vadd.f32 %v92, %v177
    %v179 = vpop.f32.mrf.mxu0
    %v180 = vadd.f32 %v92, %v179
    %181 = vdwg.mxu0
    %182 = vmatpush.bf16.msra.mxu0 0
    %183 = vmatpush.bf16.msra.mxu0 0
    %184 = vmatpush.bf16.msra.mxu0 0
    %185 = vmatpush.bf16.msra.mxu0 0
    %186 = vmatpush.bf16.msra.mxu0 0
    %187 = vmatpush.bf16.msra.mxu0 0
    %188 = vmatpush.bf16.msra.mxu0 0
    %189 = vmatpush.bf16.msra.mxu0 %v133
    %190 = vmatmul.bf16.gmra.mxu0 %v142
    %v191 = vpop.f32.mrf.mxu0
    %v192 = vadd.f32 %v93, %v191
    %v193 = vpop.f32.mrf.mxu0
    %v194 = vadd.f32 %v93, %v193
    %195 = vmatmul.bf16.gmra.mxu0 %v145
    %v196 = vpop.f32.mrf.mxu0
    %v197 = vadd.f32 %v93, %v196
    %v198 = vpop.f32.mrf.mxu0
    %v199 = vadd.f32 %v93, %v198
    %200 = vmatmul.bf16.gmra.mxu0 %v148
    %v201 = vpop.f32.mrf.mxu0
    %v202 = vadd.f32 %v93, %v201
    %v203 = vpop.f32.mrf.mxu0
    %v204 = vadd.f32 %v93, %v203
    %205 = vmatmul.bf16.gmra.mxu0 %v151
    %v206 = vpop.f32.mrf.mxu0
    %v207 = vadd.f32 %v93, %v206
    %v208 = vpop.f32.mrf.mxu0
    %v209 = vadd.f32 %v93, %v208
    %210 = vdwg.mxu0
    %211 = vmatpush.bf16.msra.mxu0 0
    %212 = vmatpush.bf16.msra.mxu0 0
    %213 = vmatpush.bf16.msra.mxu0 0
    %214 = vmatpush.bf16.msra.mxu0 0
    %215 = vmatpush.bf16.msra.mxu0 0
    %216 = vmatpush.bf16.msra.mxu0 0
    %217 = vmatpush.bf16.msra.mxu0 0
    %218 = vmatpush.bf16.msra.mxu0 %v134
    %219 = vmatmul.bf16.gmra.mxu0 %v142
    %v220 = vpop.f32.mrf.mxu0
    %v221 = vadd.f32 %v94, %v220
    %v222 = vpop.f32.mrf.mxu0
    %v223 = vadd.f32 %v94, %v222
    %224 = vmatmul.bf16.gmra.mxu0 %v145
    %v225 = vpop.f32.mrf.mxu0
    %v226 = vadd.f32 %v94, %v225
    %v227 = vpop.f32.mrf.mxu0
    %v228 = vadd.f32 %v94, %v227
    %229 = vmatmul.bf16.gmra.mxu0 %v148
    %v230 = vpop.f32.mrf.mxu0
    %v231 = vadd.f32 %v94, %v230
    %v232 = vpop.f32.mrf.mxu0
    %v233 = vadd.f32 %v94, %v232
    %234 = vmatmul.bf16.gmra.mxu0 %v151
    %v235 = vpop.f32.mrf.mxu0
    %v236 = vadd.f32 %v94, %v235
    %v237 = vpop.f32.mrf.mxu0
    %v238 = vadd.f32 %v94, %v237
    %239 = vdwg.mxu0
    %240 = vmatpush.bf16.msra.mxu0 0
    %241 = vmatpush.bf16.msra.mxu0 0
    %242 = vmatpush.bf16.msra.mxu0 0
    %243 = vmatpush.bf16.msra.mxu0 0
    %244 = vmatpush.bf16.msra.mxu0 0
    %245 = vmatpush.bf16.msra.mxu0 0
    %246 = vmatpush.bf16.msra.mxu0 0
    %247 = vmatpush.bf16.msra.mxu0 %v135
    %248 = vmatmul.bf16.gmra.mxu0 %v142
    %v249 = vpop.f32.mrf.mxu0
    %v250 = vadd.f32 %v95, %v249
    %v251 = vpop.f32.mrf.mxu0
    %v252 = vadd.f32 %v95, %v251
    %253 = vmatmul.bf16.gmra.mxu0 %v145
    %v254 = vpop.f32.mrf.mxu0
    %v255 = vadd.f32 %v95, %v254
    %v256 = vpop.f32.mrf.mxu0
    %v257 = vadd.f32 %v95, %v256
    %258 = vmatmul.bf16.gmra.mxu0 %v148
    %v259 = vpop.f32.mrf.mxu0
    %v260 = vadd.f32 %v95, %v259
    %v261 = vpop.f32.mrf.mxu0
    %v262 = vadd.f32 %v95, %v261
    %263 = vmatmul.bf16.gmra.mxu0 %v151
    %v264 = vpop.f32.mrf.mxu0
    %v265 = vadd.f32 %v95, %v264
    %v266 = vpop.f32.mrf.mxu0
    %v267 = vadd.f32 %v95, %v266
    %268 = vdwg.mxu0
    %269 = vst [vmem:[#allocation2] sm:$0xff] %v163
    %270 = vst [vmem:[#allocation2 + $0x8] sm:$0xff] %v192
    %271 = vst [vmem:[#allocation2 + $0x10] sm:$0xff] %v221
    %272 = vst [vmem:[#allocation2 + $0x18] sm:$0xff] %v250
    %273 = vst [vmem:[#allocation2 + $0x20] sm:$0xff] %v165
    %274 = vst [vmem:[#allocation2 + $0x28] sm:$0xff] %v194
    %275 = vst [vmem:[#allocation2 + $0x30] sm:$0xff] %v223
    %276 = vst [vmem:[#allocation2 + $0x38] sm:$0xff] %v252
    %277 = vst [vmem:[#allocation2 + $0x40] sm:$0xff] %v168
    %278 = vst [vmem:[#allocation2 + $0x48] sm:$0xff] %v197
    %279 = vst [vmem:[#allocation2 + $0x50] sm:$0xff] %v226
    %280 = vst [vmem:[#allocation2 + $0x58] sm:$0xff] %v255
    %281 = vst [vmem:[#allocation2 + $0x60] sm:$0xff] %v170
    %282 = vst [vmem:[#allocation2 + $0x68] sm:$0xff] %v199
    %283 = vst [vmem:[#allocation2 + $0x70] sm:$0xff] %v228
    %284 = vst [vmem:[#allocation2 + $0x78] sm:$0xff] %v257
    %285 = vst [vmem:[#allocation2 + $0x80] sm:$0xff] %v173
    %286 = vst [vmem:[#allocation2 + $0x88] sm:$0xff] %v202
    %287 = vst [vmem:[#allocation2 + $0x90] sm:$0xff] %v231
    %288 = vst [vmem:[#allocation2 + $0x98] sm:$0xff] %v260
    %289 = vst [vmem:[#allocation2 + $0xa0] sm:$0xff] %v175
    %290 = vst [vmem:[#allocation2 + $0xa8] sm:$0xff] %v204
    %291 = vst [vmem:[#allocation2 + $0xb0] sm:$0xff] %v233
    %292 = vst [vmem:[#allocation2 + $0xb8] sm:$0xff] %v262
    %293 = vst [vmem:[#allocation2 + $0xc0] sm:$0xff] %v178
    %294 = vst [vmem:[#allocation2 + $0xc8] sm:$0xff] %v207
    %295 = vst [vmem:[#allocation2 + $0xd0] sm:$0xff] %v236
    %296 = vst [vmem:[#allocation2 + $0xd8] sm:$0xff] %v265
    %297 = vst [vmem:[#allocation2 + $0xe0] sm:$0xff] %v180
    %298 = vst [vmem:[#allocation2 + $0xe8] sm:$0xff] %v209
    %299 = vst [vmem:[#allocation2 + $0xf0] sm:$0xff] %v238
    %300 = vst [vmem:[#allocation2 + $0xf8] sm:$0xff] %v267
    %v301 = vld [vmem:[#allocation3] sm:$0xff]
    %v302 = vld [vmem:[#allocation3 + $0x8] sm:$0xff]
    %v303 = vld [vmem:[#allocation3 + $0x10] sm:$0xff]
    %v304 = vld [vmem:[#allocation3 + $0x18] sm:$0xff]
    %v305 = vld [vmem:[#allocation3 + $0x20] sm:$0xff]
    %v306 = vld [vmem:[#allocation3 + $0x28] sm:$0xff]
    %v307 = vld [vmem:[#allocation3 + $0x30] sm:$0xff]
    %v308 = vld [vmem:[#allocation3 + $0x38] sm:$0xff]
    %v309 = vld [vmem:[#allocation3 + $0x40] sm:$0xff]
    %v310 = vld [vmem:[#allocation3 + $0x48] sm:$0xff]
    %v311 = vld [vmem:[#allocation3 + $0x50] sm:$0xff]
    %v312 = vld [vmem:[#allocation3 + $0x58] sm:$0xff]
    %v313 = vld [vmem:[#allocation3 + $0x60] sm:$0xff]
    %v314 = vld [vmem:[#allocation3 + $0x68] sm:$0xff]
    %v315 = vld [vmem:[#allocation3 + $0x70] sm:$0xff]
    %v316 = vld [vmem:[#allocation3 + $0x78] sm:$0xff]
    %v317 = vld [vmem:[#allocation3 + $0x80] sm:$0xff]
    %v318 = vld [vmem:[#allocation3 + $0x88] sm:$0xff]
    %v319 = vld [vmem:[#allocation3 + $0x90] sm:$0xff]
    %v320 = vld [vmem:[#allocation3 + $0x98] sm:$0xff]
    %v321 = vld [vmem:[#allocation3 + $0xa0] sm:$0xff]
    %v322 = vld [vmem:[#allocation3 + $0xa8] sm:$0xff]
    %v323 = vld [vmem:[#allocation3 + $0xb0] sm:$0xff]
    %v324 = vld [vmem:[#allocation3 + $0xb8] sm:$0xff]
    %v325 = vld [vmem:[#allocation3 + $0xc0] sm:$0xff]
    %v326 = vld [vmem:[#allocation3 + $0xc8] sm:$0xff]
    %v327 = vld [vmem:[#allocation3 + $0xd0] sm:$0xff]
    %v328 = vld [vmem:[#allocation3 + $0xd8] sm:$0xff]
    %v329 = vld [vmem:[#allocation3 + $0xe0] sm:$0xff]
    %v330 = vld [vmem:[#allocation3 + $0xe8] sm:$0xff]
    %v331 = vld [vmem:[#allocation3 + $0xf0] sm:$0xff]
    %v332 = vld [vmem:[#allocation3 + $0xf8] sm:$0xff]
    %v333 = vld [vmem:[#allocation6] sm:$0xff]
    %v334 = vld [vmem:[#allocation6 + $0x8] sm:$0xff]
    %v335 = vld [vmem:[#allocation6 + $0x10] sm:$0xff]
    %v336 = vld [vmem:[#allocation6 + $0x18] sm:$0xff]
    %v337 = vld [vmem:[#allocation6 + $0x20] sm:$0xff]
    %v338 = vld [vmem:[#allocation6 + $0x28] sm:$0xff]
    %v339 = vld [vmem:[#allocation6 + $0x30] sm:$0xff]
    %v340 = vld [vmem:[#allocation6 + $0x38] sm:$0xff]
    %v341 = vld [vmem:[#allocation6 + $0x40] sm:$0xff]
    %v342 = vld [vmem:[#allocation6 + $0x48] sm:$0xff]
    %v343 = vld [vmem:[#allocation6 + $0x50] sm:$0xff]
    %v344 = vld [vmem:[#allocation6 + $0x58] sm:$0xff]
    %v345 = vld [vmem:[#allocation6 + $0x60] sm:$0xff]
    %v346 = vld [vmem:[#allocation6 + $0x68] sm:$0xff]
    %v347 = vld [vmem:[#allocation6 + $0x70] sm:$0xff]
    %v348 = vld [vmem:[#allocation6 + $0x78] sm:$0xff]
    %v349 = vld [vmem:[#allocation6 + $0x80] sm:$0xff]
    %v350 = vld [vmem:[#allocation6 + $0x88] sm:$0xff]
    %v351 = vld [vmem:[#allocation6 + $0x90] sm:$0xff]
    %v352 = vld [vmem:[#allocation6 + $0x98] sm:$0xff]
    %v353 = vld [vmem:[#allocation6 + $0xa0] sm:$0xff]
    %v354 = vld [vmem:[#allocation6 + $0xa8] sm:$0xff]
    %v355 = vld [vmem:[#allocation6 + $0xb0] sm:$0xff]
    %v356 = vld [vmem:[#allocation6 + $0xb8] sm:$0xff]
    %v357 = vld [vmem:[#allocation6 + $0xc0] sm:$0xff]
    %v358 = vld [vmem:[#allocation6 + $0xc8] sm:$0xff]
    %v359 = vld [vmem:[#allocation6 + $0xd0] sm:$0xff]
    %v360 = vld [vmem:[#allocation6 + $0xd8] sm:$0xff]
    %v361 = vld [vmem:[#allocation6 + $0xe0] sm:$0xff]
    %v362 = vld [vmem:[#allocation6 + $0xe8] sm:$0xff]
    %v363 = vld [vmem:[#allocation6 + $0xf0] sm:$0xff]
    %v364 = vld [vmem:[#allocation6 + $0xf8] sm:$0xff]
    %v365 = vld [vmem:[%s5] sm:$0xf]
    %v367 = vperm.slane %v365, 0
    %v368 = vperm.slane %v365, 1
    %v369 = vperm.slane %v365, 2
    %v370 = vperm.slane %v365, 3
    %v375 = vld [vmem:[#allocation2] sm:$0xff]
    %v376 = vld [vmem:[#allocation2 + $0x8] sm:$0xff]
    %v377 = vld [vmem:[#allocation2 + $0x10] sm:$0xff]
    %v378 = vld [vmem:[#allocation2 + $0x18] sm:$0xff]
    %v379 = vxor.u32 %v375, 2147483648
    %v380 = vxor.u32 %v376, 2147483648
    %v381 = vxor.u32 %v377, 2147483648
    %v382 = vmul.f32 %v379, 1.442695
    %v383 = vpow.pop %v382
    %v384 = vmul.f32 %v380, 1.442695
    %v385 = vpow.pop %v384
    %v386 = vmul.f32 %v381, 1.442695
    %v387 = vpow.pop %v386
    %v388 = vadd.f32 %v383, 1.0
    %v389 = vadd.f32 %v385, 1.0
    %v390 = vadd.f32 %v387, 1.0
    %v391 = vrcp.pop %v388
    %v392 = vmul.f32 %v388, %v391
    %v393 = vsub.f32 1.0, %v392
    %v394 = vmul.f32 %v391, %v393
    %v395 = vadd.f32 %v391, %v394
    %vm396 = vweird.f32 %v388
    %vm397 = vweird.f32 %v391
    %vm398 = vmor %vm396, %vm397
    %v399 = vsel %vm398, %v391, %v395
    %v400 = vand.u32 2147483647, %v388
    %vm401 = vcmp.eq.f32.partialorder %v400, 8.507059e+37
    %v402 = vand.u32 %v388, 2147483648
    %v403 = vor.u32 1.1754944e-38, %v402
    %v404 = vsel %vm401, %v403, %v399
    %v405 = vmul.f32 1.0, %v404
    %v406 = vrcp.pop %v389
    %v407 = vmul.f32 %v389, %v406
    %v408 = vsub.f32 1.0, %v407
    %v409 = vmul.f32 %v406, %v408
    %v410 = vadd.f32 %v406, %v409
    %vm411 = vweird.f32 %v389
    %vm412 = vweird.f32 %v406
    %vm413 = vmor %vm411, %vm412
    %v414 = vsel %vm413, %v406, %v410
    %v415 = vand.u32 2147483647, %v389
    %vm416 = vcmp.eq.f32.partialorder %v415, 8.507059e+37
    %v417 = vand.u32 %v389, 2147483648
    %v418 = vor.u32 1.1754944e-38, %v417
    %v419 = vsel %vm416, %v418, %v414
    %v420 = vmul.f32 1.0, %v419
    %v421 = vrcp.pop %v390
    %v422 = vmul.f32 %v390, %v421
    %v423 = vsub.f32 1.0, %v422
    %v424 = vmul.f32 %v421, %v423
    %v425 = vadd.f32 %v421, %v424
    %vm426 = vweird.f32 %v390
    %vm427 = vweird.f32 %v421
    %vm428 = vmor %vm426, %vm427
    %v429 = vsel %vm428, %v421, %v425
    %v430 = vand.u32 2147483647, %v390
    %vm431 = vcmp.eq.f32.partialorder %v430, 8.507059e+37
    %v432 = vand.u32 %v390, 2147483648
    %v433 = vor.u32 1.1754944e-38, %v432
    %v434 = vsel %vm431, %v433, %v429
    %v435 = vmul.f32 1.0, %v434
    %v436 = vtanh.pop %v378
    %v437 = vmul.f32 %v420, 0.0
    %v438 = vmul.f32 %v405, %v436
    %v439 = vadd.f32 %v437, %v438
    %v440 = vtanh.pop %v439
    %v441 = vmul.f32 %v435, %v440
    %v442 = vpack.c.bf16 %v441, %v441
    %v475 = vunpack.c.l.b16 %v333
    %v476 = vunpack.c.h.b16 %v333
    %v477 = vunpack.c.l.b16 %v334
    %v478 = vunpack.c.h.b16 %v334
    %v479 = vunpack.c.l.b16 %v335
    %v480 = vunpack.c.h.b16 %v335
    %v481 = vunpack.c.l.b16 %v336
    %v482 = vunpack.c.h.b16 %v336
    %v483 = vunpack.c.l.b16 %v337
    %v484 = vunpack.c.h.b16 %v337
    %v485 = vunpack.c.l.b16 %v338
    %v486 = vunpack.c.h.b16 %v338
    %v487 = vunpack.c.l.b16 %v339
    %v488 = vunpack.c.h.b16 %v339
    %v489 = vunpack.c.l.b16 %v340
    %v490 = vunpack.c.h.b16 %v340
    %v491 = vunpack.c.l.b16 %v341
    %v492 = vunpack.c.h.b16 %v341
    %v493 = vunpack.c.l.b16 %v342
    %v494 = vunpack.c.h.b16 %v342
    %v495 = vunpack.c.l.b16 %v343
    %v496 = vunpack.c.h.b16 %v343
    %v497 = vunpack.c.l.b16 %v344
    %v498 = vunpack.c.h.b16 %v344
    %v499 = vunpack.c.l.b16 %v345
    %v500 = vunpack.c.h.b16 %v345
    %v501 = vunpack.c.l.b16 %v346
    %v502 = vunpack.c.h.b16 %v346
    %v503 = vunpack.c.l.b16 %v347
    %v504 = vunpack.c.h.b16 %v347
    %v505 = vunpack.c.l.b16 %v348
    %v506 = vunpack.c.h.b16 %v348
    %v507 = vunpack.c.l.b16 %v349
    %v508 = vunpack.c.h.b16 %v349
    %v509 = vunpack.c.l.b16 %v350
    %v510 = vunpack.c.h.b16 %v350
    %v511 = vunpack.c.l.b16 %v351
    %v512 = vunpack.c.h.b16 %v351
    %v513 = vunpack.c.l.b16 %v352
    %v514 = vunpack.c.h.b16 %v352
    %v515 = vunpack.c.l.b16 %v353
    %v516 = vunpack.c.h.b16 %v353
    %v517 = vunpack.c.l.b16 %v354
    %v518 = vunpack.c.h.b16 %v354
    %v519 = vunpack.c.l.b16 %v355
    %v520 = vunpack.c.h.b16 %v355
    %v521 = vunpack.c.l.b16 %v356
    %v522 = vunpack.c.h.b16 %v356
    %v523 = vunpack.c.l.b16 %v357
    %v524 = vunpack.c.h.b16 %v357
    %v525 = vunpack.c.l.b16 %v358
    %v526 = vunpack.c.h.b16 %v358
    %v527 = vunpack.c.l.b16 %v359
    %v528 = vunpack.c.h.b16 %v359
    %v529 = vunpack.c.l.b16 %v360
    %v530 = vunpack.c.h.b16 %v360
    %v531 = vunpack.c.l.b16 %v361
    %v532 = vunpack.c.h.b16 %v361
    %v533 = vunpack.c.l.b16 %v362
    %v534 = vunpack.c.h.b16 %v362
    %v535 = vunpack.c.l.b16 %v363
    %v536 = vunpack.c.h.b16 %v363
    %v537 = vunpack.c.l.b16 %v364
    %v538 = vunpack.c.h.b16 %v364
    %v539 = vpack.c.b16 %v479, %v475
    %v540 = vpack.c.b16 %v480, %v476
    %v541 = vpack.c.b16 %v481, %v477
    %v542 = vpack.c.b16 %v482, %v478
    %v543 = vpack.c.b16 %v487, %v483
    %v544 = vpack.c.b16 %v488, %v484
    %v545 = vpack.c.b16 %v489, %v485
    %v546 = vpack.c.b16 %v490, %v486
    %v547 = vpack.c.b16 %v495, %v491
    %v548 = vpack.c.b16 %v496, %v492
    %v549 = vpack.c.b16 %v497, %v493
    %v550 = vpack.c.b16 %v498, %v494
    %v551 = vpack.c.b16 %v503, %v499
    %v552 = vpack.c.b16 %v504, %v500
    %v553 = vpack.c.b16 %v505, %v501
    %v554 = vpack.c.b16 %v506, %v502
    %v555 = vpack.c.b16 %v511, %v507
    %v556 = vpack.c.b16 %v512, %v508
    %v557 = vpack.c.b16 %v513, %v509
    %v558 = vpack.c.b16 %v514, %v510
    %v559 = vpack.c.b16 %v519, %v515
    %v560 = vpack.c.b16 %v520, %v516
    %v561 = vpack.c.b16 %v521, %v517
    %v562 = vpack.c.b16 %v522, %v518
    %v563 = vpack.c.b16 %v527, %v523
    %v564 = vpack.c.b16 %v528, %v524
    %v565 = vpack.c.b16 %v529, %v525
    %v566 = vpack.c.b16 %v530, %v526
    %v567 = vpack.c.b16 %v535, %v531
    %v568 = vpack.c.b16 %v536, %v532
    %v569 = vpack.c.b16 %v537, %v533
    %v570 = vpack.c.b16 %v538, %v534
    %603 = vmatpush.bf16.msra.mxu0 %v567
    %604 = vmatpush.bf16.msra.mxu0 %v563
    %605 = vmatpush.bf16.msra.mxu0 %v559
    %606 = vmatpush.bf16.msra.mxu0 %v555
    %607 = vmatpush.bf16.msra.mxu0 %v551
    %608 = vmatpush.bf16.msra.mxu0 %v547
    %609 = vmatpush.bf16.msra.mxu0 %v543
    %610 = vmatpush.bf16.msra.mxu0 %v539
    %611 = vmatmul.bf16.gmra.mxu0 %v442
    %v612 = vpop.f32.mrf.mxu0
    %v613 = vadd.f32 %v367, %v612
    %v614 = vpop.f32.mrf.mxu0
    %615 = vdwg.mxu0
    %616 = vmatpush.bf16.msra.mxu0 %v568
    %617 = vmatpush.bf16.msra.mxu0 %v564
    %618 = vmatpush.bf16.msra.mxu0 %v560
    %619 = vmatpush.bf16.msra.mxu0 %v556
    %620 = vmatpush.bf16.msra.mxu0 %v552
    %621 = vmatpush.bf16.msra.mxu0 %v548
    %622 = vmatpush.bf16.msra.mxu0 %v544
    %623 = vmatpush.bf16.msra.mxu0 %v540
    %624 = vmatmul.bf16.gmra.mxu0 %v442
    %v625 = vpop.f32.mrf.mxu0
    %v626 = vadd.f32 %v368, %v625
    %v627 = vpop.f32.mrf.mxu0
    %628 = vdwg.mxu0
    %629 = vmatpush.bf16.msra.mxu0 %v569
    %630 = vmatpush.bf16.msra.mxu0 %v565
    %631 = vmatpush.bf16.msra.mxu0 %v561
    %632 = vmatpush.bf16.msra.mxu0 %v557
    %633 = vmatpush.bf16.msra.mxu0 %v553
    %634 = vmatpush.bf16.msra.mxu0 %v549
    %635 = vmatpush.bf16.msra.mxu0 %v545
    %636 = vmatpush.bf16.msra.mxu0 %v541
    %637 = vmatmul.bf16.gmra.mxu0 %v442
    %v638 = vpop.f32.mrf.mxu0
    %v639 = vadd.f32 %v369, %v638
    %v640 = vpop.f32.mrf.mxu0
    %641 = vdwg.mxu0
    %642 = vmatpush.bf16.msra.mxu0 %v570
    %643 = vmatpush.bf16.msra.mxu0 %v566
    %644 = vmatpush.bf16.msra.mxu0 %v562
    %645 = vmatpush.bf16.msra.mxu0 %v558
    %646 = vmatpush.bf16.msra.mxu0 %v554
    %647 = vmatpush.bf16.msra.mxu0 %v550
    %648 = vmatpush.bf16.msra.mxu0 %v546
    %649 = vmatpush.bf16.msra.mxu0 %v542
    %650 = vmatmul.bf16.gmra.mxu0 %v442
    %v651 = vpop.f32.mrf.mxu0
    %v652 = vadd.f32 %v370, %v651
    %v653 = vpop.f32.mrf.mxu0
    %654 = vdwg.mxu0
    %v655 = vxor.u32 %v613, 2147483648
    %v656 = vxor.u32 %v626, 2147483648
    %v657 = vxor.u32 %v639, 2147483648
    %v658 = vmul.f32 %v655, 1.442695
    %v659 = vpow.pop %v658
    %v660 = vmul.f32 %v656, 1.442695
    %v661 = vpow.pop %v660
    %v662 = vmul.f32 %v657, 1.442695
    %v663 = vpow.pop %v662
    %v664 = vadd.f32 %v659, 1.0
    %v665 = vadd.f32 %v661, 1.0
    %v666 = vadd.f32 %v663, 1.0
    %v667 = vrcp.pop %v664
    %v668 = vmul.f32 %v664, %v667
    %v669 = vsub.f32 1.0, %v668
    %v670 = vmul.f32 %v667, %v669
    %v671 = vadd.f32 %v667, %v670
    %vm672 = vweird.f32 %v664
    %vm673 = vweird.f32 %v667
    %vm674 = vmor %vm672, %vm673
    %v675 = vsel %vm674, %v667, %v671
    %v676 = vand.u32 2147483647, %v664
    %vm677 = vcmp.eq.f32.partialorder %v676, 8.507059e+37
    %v678 = vand.u32 %v664, 2147483648
    %v679 = vor.u32 1.1754944e-38, %v678
    %v680 = vsel %vm677, %v679, %v675
    %v681 = vmul.f32 1.0, %v680
    %v682 = vrcp.pop %v665
    %v683 = vmul.f32 %v665, %v682
    %v684 = vsub.f32 1.0, %v683
    %v685 = vmul.f32 %v682, %v684
    %v686 = vadd.f32 %v682, %v685
    %vm687 = vweird.f32 %v665
    %vm688 = vweird.f32 %v682
    %vm689 = vmor %vm687, %vm688
    %v690 = vsel %vm689, %v682, %v686
    %v691 = vand.u32 2147483647, %v665
    %vm692 = vcmp.eq.f32.partialorder %v691, 8.507059e+37
    %v693 = vand.u32 %v665, 2147483648
    %v694 = vor.u32 1.1754944e-38, %v693
    %v695 = vsel %vm692, %v694, %v690
    %v696 = vmul.f32 1.0, %v695
    %v697 = vrcp.pop %v666
    %v698 = vmul.f32 %v666, %v697
    %v699 = vsub.f32 1.0, %v698
    %v700 = vmul.f32 %v697, %v699
    %v701 = vadd.f32 %v697, %v700
    %vm702 = vweird.f32 %v666
    %vm703 = vweird.f32 %v697
    %vm704 = vmor %vm702, %vm703
    %v705 = vsel %vm704, %v697, %v701
    %v706 = vand.u32 2147483647, %v666
    %vm707 = vcmp.eq.f32.partialorder %v706, 8.507059e+37
    %v708 = vand.u32 %v666, 2147483648
    %v709 = vor.u32 1.1754944e-38, %v708
    %v710 = vsel %vm707, %v709, %v705
    %v711 = vmul.f32 1.0, %v710
    %v712 = vtanh.pop %v652
    %v713 = vmul.f32 %v696, 0.0
    %v714 = vmul.f32 %v681, %v712
    %v715 = vadd.f32 %v713, %v714
    %v716 = vtanh.pop %v715
    %v717 = vmul.f32 %v711, %v716
    %v718 = vld [vmem:[#allocation2 + $0x20] sm:$0xff]
    %v719 = vld [vmem:[#allocation2 + $0x28] sm:$0xff]
    %v720 = vld [vmem:[#allocation2 + $0x30] sm:$0xff]
    %v721 = vld [vmem:[#allocation2 + $0x38] sm:$0xff]
    %v754 = vunpack.c.l.b16 %v301
    %v755 = vunpack.c.h.b16 %v301
    %v756 = vunpack.c.l.b16 %v302
    %v757 = vunpack.c.h.b16 %v302
    %v758 = vunpack.c.l.b16 %v303
    %v759 = vunpack.c.h.b16 %v303
    %v760 = vunpack.c.l.b16 %v304
    %v761 = vunpack.c.h.b16 %v304
    %v762 = vunpack.c.l.b16 %v305
    %v763 = vunpack.c.h.b16 %v305
    %v764 = vunpack.c.l.b16 %v306
    %v765 = vunpack.c.h.b16 %v306
    %v766 = vunpack.c.l.b16 %v307
    %v767 = vunpack.c.h.b16 %v307
    %v768 = vunpack.c.l.b16 %v308
    %v769 = vunpack.c.h.b16 %v308
    %v770 = vunpack.c.l.b16 %v309
    %v771 = vunpack.c.h.b16 %v309
    %v772 = vunpack.c.l.b16 %v310
    %v773 = vunpack.c.h.b16 %v310
    %v774 = vunpack.c.l.b16 %v311
    %v775 = vunpack.c.h.b16 %v311
    %v776 = vunpack.c.l.b16 %v312
    %v777 = vunpack.c.h.b16 %v312
    %v778 = vunpack.c.l.b16 %v313
    %v779 = vunpack.c.h.b16 %v313
    %v780 = vunpack.c.l.b16 %v314
    %v781 = vunpack.c.h.b16 %v314
    %v782 = vunpack.c.l.b16 %v315
    %v783 = vunpack.c.h.b16 %v315
    %v784 = vunpack.c.l.b16 %v316
    %v785 = vunpack.c.h.b16 %v316
    %v786 = vunpack.c.l.b16 %v317
    %v787 = vunpack.c.h.b16 %v317
    %v788 = vunpack.c.l.b16 %v318
    %v789 = vunpack.c.h.b16 %v318
    %v790 = vunpack.c.l.b16 %v319
    %v791 = vunpack.c.h.b16 %v319
    %v792 = vunpack.c.l.b16 %v320
    %v793 = vunpack.c.h.b16 %v320
    %v794 = vunpack.c.l.b16 %v321
    %v795 = vunpack.c.h.b16 %v321
    %v796 = vunpack.c.l.b16 %v322
    %v797 = vunpack.c.h.b16 %v322
    %v798 = vunpack.c.l.b16 %v323
    %v799 = vunpack.c.h.b16 %v323
    %v800 = vunpack.c.l.b16 %v324
    %v801 = vunpack.c.h.b16 %v324
    %v802 = vunpack.c.l.b16 %v325
    %v803 = vunpack.c.h.b16 %v325
    %v804 = vunpack.c.l.b16 %v326
    %v805 = vunpack.c.h.b16 %v326
    %v806 = vunpack.c.l.b16 %v327
    %v807 = vunpack.c.h.b16 %v327
    %v808 = vunpack.c.l.b16 %v328
    %v809 = vunpack.c.h.b16 %v328
    %v810 = vunpack.c.l.b16 %v329
    %v811 = vunpack.c.h.b16 %v329
    %v812 = vunpack.c.l.b16 %v330
    %v813 = vunpack.c.h.b16 %v330
    %v814 = vunpack.c.l.b16 %v331
    %v815 = vunpack.c.h.b16 %v331
    %v816 = vunpack.c.l.b16 %v332
    %v817 = vunpack.c.h.b16 %v332
    %v818 = vpack.c.b16 %v758, %v754
    %v819 = vpack.c.b16 %v759, %v755
    %v820 = vpack.c.b16 %v760, %v756
    %v821 = vpack.c.b16 %v761, %v757
    %v822 = vpack.c.b16 %v766, %v762
    %v823 = vpack.c.b16 %v767, %v763
    %v824 = vpack.c.b16 %v768, %v764
    %v825 = vpack.c.b16 %v769, %v765
    %v826 = vpack.c.b16 %v774, %v770
    %v827 = vpack.c.b16 %v775, %v771
    %v828 = vpack.c.b16 %v776, %v772
    %v829 = vpack.c.b16 %v777, %v773
    %v830 = vpack.c.b16 %v782, %v778
    %v831 = vpack.c.b16 %v783, %v779
    %v832 = vpack.c.b16 %v784, %v780
    %v833 = vpack.c.b16 %v785, %v781
    %v834 = vpack.c.b16 %v790, %v786
    %v835 = vpack.c.b16 %v791, %v787
    %v836 = vpack.c.b16 %v792, %v788
    %v837 = vpack.c.b16 %v793, %v789
    %v838 = vpack.c.b16 %v798, %v794
    %v839 = vpack.c.b16 %v799, %v795
    %v840 = vpack.c.b16 %v800, %v796
    %v841 = vpack.c.b16 %v801, %v797
    %v842 = vpack.c.b16 %v806, %v802
    %v843 = vpack.c.b16 %v807, %v803
    %v844 = vpack.c.b16 %v808, %v804
    %v845 = vpack.c.b16 %v809, %v805
    %v846 = vpack.c.b16 %v814, %v810
    %v847 = vpack.c.b16 %v815, %v811
    %v848 = vpack.c.b16 %v816, %v812
    %v849 = vpack.c.b16 %v817, %v813
    %882 = vmatpush.bf16.msra.mxu0 %v846
    %883 = vmatpush.bf16.msra.mxu0 %v842
    %884 = vmatpush.bf16.msra.mxu0 %v838
    %885 = vmatpush.bf16.msra.mxu0 %v834
    %886 = vmatpush.bf16.msra.mxu0 %v830
    %887 = vmatpush.bf16.msra.mxu0 %v826
    %888 = vmatpush.bf16.msra.mxu0 %v822
    %889 = vmatpush.bf16.msra.mxu0 %v818
    %890 = vmatmul.bf16.gmra.mxu0 %v442
    %v891 = vpop.f32.mrf.mxu0
    %v892 = vadd.f32 0.0, %v891
    %v893 = vpop.f32.mrf.mxu0
    %894 = vdwg.mxu0
    %895 = vmatpush.bf16.msra.mxu0 %v847
    %896 = vmatpush.bf16.msra.mxu0 %v843
    %897 = vmatpush.bf16.msra.mxu0 %v839
    %898 = vmatpush.bf16.msra.mxu0 %v835
    %899 = vmatpush.bf16.msra.mxu0 %v831
    %900 = vmatpush.bf16.msra.mxu0 %v827
    %901 = vmatpush.bf16.msra.mxu0 %v823
    %902 = vmatpush.bf16.msra.mxu0 %v819
    %903 = vmatmul.bf16.gmra.mxu0 %v442
    %v904 = vpop.f32.mrf.mxu0
    %v905 = vadd.f32 0.0, %v904
    %v906 = vpop.f32.mrf.mxu0
    %907 = vdwg.mxu0
    %908 = vmatpush.bf16.msra.mxu0 %v848
    %909 = vmatpush.bf16.msra.mxu0 %v844
    %910 = vmatpush.bf16.msra.mxu0 %v840
    %911 = vmatpush.bf16.msra.mxu0 %v836
    %912 = vmatpush.bf16.msra.mxu0 %v832
    %913 = vmatpush.bf16.msra.mxu0 %v828
    %914 = vmatpush.bf16.msra.mxu0 %v824
    %915 = vmatpush.bf16.msra.mxu0 %v820
    %916 = vmatmul.bf16.gmra.mxu0 %v442
    %v917 = vpop.f32.mrf.mxu0
    %v918 = vadd.f32 0.0, %v917
    %v919 = vpop.f32.mrf.mxu0
    %920 = vdwg.mxu0
    %921 = vmatpush.bf16.msra.mxu0 %v849
    %922 = vmatpush.bf16.msra.mxu0 %v845
    %923 = vmatpush.bf16.msra.mxu0 %v841
    %924 = vmatpush.bf16.msra.mxu0 %v837
    %925 = vmatpush.bf16.msra.mxu0 %v833
    %926 = vmatpush.bf16.msra.mxu0 %v829
    %927 = vmatpush.bf16.msra.mxu0 %v825
    %928 = vmatpush.bf16.msra.mxu0 %v821
    %929 = vmatmul.bf16.gmra.mxu0 %v442
    %v930 = vpop.f32.mrf.mxu0
    %v931 = vadd.f32 0.0, %v930
    %v932 = vpop.f32.mrf.mxu0
    %933 = vdwg.mxu0
    %v934 = vadd.f32 %v718, %v892
    %v935 = vadd.f32 %v719, %v905
    %v936 = vadd.f32 %v720, %v918
    %v937 = vadd.f32 %v721, %v931
    %v938 = vxor.u32 %v934, 2147483648
    %v939 = vxor.u32 %v935, 2147483648
    %v940 = vxor.u32 %v936, 2147483648
    %v941 = vmul.f32 %v938, 1.442695
    %v942 = vpow.pop %v941
    %v943 = vmul.f32 %v939, 1.442695
    %v944 = vpow.pop %v943
    %v945 = vmul.f32 %v940, 1.442695
    %v946 = vpow.pop %v945
    %v947 = vadd.f32 %v942, 1.0
    %v948 = vadd.f32 %v944, 1.0
    %v949 = vadd.f32 %v946, 1.0
    %v950 = vrcp.pop %v947
    %v951 = vmul.f32 %v947, %v950
    %v952 = vsub.f32 1.0, %v951
    %v953 = vmul.f32 %v950, %v952
    %v954 = vadd.f32 %v950, %v953
    %vm955 = vweird.f32 %v947
    %vm956 = vweird.f32 %v950
    %vm957 = vmor %vm955, %vm956
    %v958 = vsel %vm957, %v950, %v954
    %v959 = vand.u32 2147483647, %v947
    %vm960 = vcmp.eq.f32.partialorder %v959, 8.507059e+37
    %v961 = vand.u32 %v947, 2147483648
    %v962 = vor.u32 1.1754944e-38, %v961
    %v963 = vsel %vm960, %v962, %v958
    %v964 = vmul.f32 1.0, %v963
    %v965 = vrcp.pop %v948
    %v966 = vmul.f32 %v948, %v965
    %v967 = vsub.f32 1.0, %v966
    %v968 = vmul.f32 %v965, %v967
    %v969 = vadd.f32 %v965, %v968
    %vm970 = vweird.f32 %v948
    %vm971 = vweird.f32 %v965
    %vm972 = vmor %vm970, %vm971
    %v973 = vsel %vm972, %v965, %v969
    %v974 = vand.u32 2147483647, %v948
    %vm975 = vcmp.eq.f32.partialorder %v974, 8.507059e+37
    %v976 = vand.u32 %v948, 2147483648
    %v977 = vor.u32 1.1754944e-38, %v976
    %v978 = vsel %vm975, %v977, %v973
    %v979 = vmul.f32 1.0, %v978
    %v980 = vrcp.pop %v949
    %v981 = vmul.f32 %v949, %v980
    %v982 = vsub.f32 1.0, %v981
    %v983 = vmul.f32 %v980, %v982
    %v984 = vadd.f32 %v980, %v983
    %vm985 = vweird.f32 %v949
    %vm986 = vweird.f32 %v980
    %vm987 = vmor %vm985, %vm986
    %v988 = vsel %vm987, %v980, %v984
    %v989 = vand.u32 2147483647, %v949
    %vm990 = vcmp.eq.f32.partialorder %v989, 8.507059e+37
    %v991 = vand.u32 %v949, 2147483648
    %v992 = vor.u32 1.1754944e-38, %v991
    %v993 = vsel %vm990, %v992, %v988
    %v994 = vmul.f32 1.0, %v993
    %v995 = vtanh.pop %v937
    %v996 = vmul.f32 %v979, %v439
    %v997 = vmul.f32 %v964, %v995
    %v998 = vadd.f32 %v996, %v997
    %v999 = vtanh.pop %v998
    %v1000 = vmul.f32 %v994, %v999
    %v1001 = vpack.c.bf16 %v1000, %v1000
    %1002 = vrot.lane.b32.xlu0 %v717, 64
    %v1003 = vpop.permute.xlu0 %1002
    %v1004 = vadd.f32 %v1000, %v1003
    %v1005 = vpack.c.bf16 %v1004, %v1004
    %1006 = vmatpush.bf16.msra.mxu0 %v567
    %1007 = vmatpush.bf16.msra.mxu0 %v563
    %1008 = vmatpush.bf16.msra.mxu0 %v559
    %1009 = vmatpush.bf16.msra.mxu0 %v555
    %1010 = vmatpush.bf16.msra.mxu0 %v551
    %1011 = vmatpush.bf16.msra.mxu0 %v547
    %1012 = vmatpush.bf16.msra.mxu0 %v543
    %1013 = vmatpush.bf16.msra.mxu0 %v539
    %1014 = vmatmul.bf16.gmra.mxu0 %v1005
    %v1015 = vpop.f32.mrf.mxu0
    %v1016 = vadd.f32 %v367, %v1015
    %v1017 = vpop.f32.mrf.mxu0
    %1018 = vdwg.mxu0
    %1019 = vmatpush.bf16.msra.mxu0 %v568
    %1020 = vmatpush.bf16.msra.mxu0 %v564
    %1021 = vmatpush.bf16.msra.mxu0 %v560
    %1022 = vmatpush.bf16.msra.mxu0 %v556
    %1023 = vmatpush.bf16.msra.mxu0 %v552
    %1024 = vmatpush.bf16.msra.mxu0 %v548
    %1025 = vmatpush.bf16.msra.mxu0 %v544
    %1026 = vmatpush.bf16.msra.mxu0 %v540
    %1027 = vmatmul.bf16.gmra.mxu0 %v1005
    %v1028 = vpop.f32.mrf.mxu0
    %v1029 = vadd.f32 %v368, %v1028
    %v1030 = vpop.f32.mrf.mxu0
    %1031 = vdwg.mxu0
    %1032 = vmatpush.bf16.msra.mxu0 %v569
    %1033 = vmatpush.bf16.msra.mxu0 %v565
    %1034 = vmatpush.bf16.msra.mxu0 %v561
    %1035 = vmatpush.bf16.msra.mxu0 %v557
    %1036 = vmatpush.bf16.msra.mxu0 %v553
    %1037 = vmatpush.bf16.msra.mxu0 %v549
    %1038 = vmatpush.bf16.msra.mxu0 %v545
    %1039 = vmatpush.bf16.msra.mxu0 %v541
    %1040 = vmatmul.bf16.gmra.mxu0 %v1005
    %v1041 = vpop.f32.mrf.mxu0
    %v1042 = vadd.f32 %v369, %v1041
    %v1043 = vpop.f32.mrf.mxu0
    %1044 = vdwg.mxu0
    %1045 = vmatpush.bf16.msra.mxu0 %v570
    %1046 = vmatpush.bf16.msra.mxu0 %v566
    %1047 = vmatpush.bf16.msra.mxu0 %v562
    %1048 = vmatpush.bf16.msra.mxu0 %v558
    %1049 = vmatpush.bf16.msra.mxu0 %v554
    %1050 = vmatpush.bf16.msra.mxu0 %v550
    %1051 = vmatpush.bf16.msra.mxu0 %v546
    %1052 = vmatpush.bf16.msra.mxu0 %v542
    %1053 = vmatmul.bf16.gmra.mxu0 %v1005
    %v1054 = vpop.f32.mrf.mxu0
    %v1055 = vadd.f32 %v370, %v1054
    %v1056 = vpop.f32.mrf.mxu0
    %1057 = vdwg.mxu0
    %v1058 = vxor.u32 %v1016, 2147483648
    %v1059 = vxor.u32 %v1029, 2147483648
    %v1060 = vxor.u32 %v1042, 2147483648
    %v1061 = vmul.f32 %v1058, 1.442695
    %v1062 = vpow.pop %v1061
    %v1063 = vmul.f32 %v1059, 1.442695
    %v1064 = vpow.pop %v1063
    %v1065 = vmul.f32 %v1060, 1.442695
    %v1066 = vpow.pop %v1065
    %v1067 = vadd.f32 %v1062, 1.0
    %v1068 = vadd.f32 %v1064, 1.0
    %v1069 = vadd.f32 %v1066, 1.0
    %v1070 = vrcp.pop %v1067
    %v1071 = vmul.f32 %v1067, %v1070
    %v1072 = vsub.f32 1.0, %v1071
    %v1073 = vmul.f32 %v1070, %v1072
    %v1074 = vadd.f32 %v1070, %v1073
    %vm1075 = vweird.f32 %v1067
    %vm1076 = vweird.f32 %v1070
    %vm1077 = vmor %vm1075, %vm1076
    %v1078 = vsel %vm1077, %v1070, %v1074
    %v1079 = vand.u32 2147483647, %v1067
    %vm1080 = vcmp.eq.f32.partialorder %v1079, 8.507059e+37
    %v1081 = vand.u32 %v1067, 2147483648
    %v1082 = vor.u32 1.1754944e-38, %v1081
    %v1083 = vsel %vm1080, %v1082, %v1078
    %v1084 = vmul.f32 1.0, %v1083
    %v1085 = vrcp.pop %v1068
    %v1086 = vmul.f32 %v1068, %v1085
    %v1087 = vsub.f32 1.0, %v1086
    %v1088 = vmul.f32 %v1085, %v1087
    %v1089 = vadd.f32 %v1085, %v1088
    %vm1090 = vweird.f32 %v1068
    %vm1091 = vweird.f32 %v1085
    %vm1092 = vmor %vm1090, %vm1091
    %v1093 = vsel %vm1092, %v1085, %v1089
    %v1094 = vand.u32 2147483647, %v1068
    %vm1095 = vcmp.eq.f32.partialorder %v1094, 8.507059e+37
    %v1096 = vand.u32 %v1068, 2147483648
    %v1097 = vor.u32 1.1754944e-38, %v1096
    %v1098 = vsel %vm1095, %v1097, %v1093
    %v1099 = vmul.f32 1.0, %v1098
    %v1100 = vrcp.pop %v1069
    %v1101 = vmul.f32 %v1069, %v1100
    %v1102 = vsub.f32 1.0, %v1101
    %v1103 = vmul.f32 %v1100, %v1102
    %v1104 = vadd.f32 %v1100, %v1103
    %vm1105 = vweird.f32 %v1069
    %vm1106 = vweird.f32 %v1100
    %vm1107 = vmor %vm1105, %vm1106
    %v1108 = vsel %vm1107, %v1100, %v1104
    %v1109 = vand.u32 2147483647, %v1069
    %vm1110 = vcmp.eq.f32.partialorder %v1109, 8.507059e+37
    %v1111 = vand.u32 %v1069, 2147483648
    %v1112 = vor.u32 1.1754944e-38, %v1111
    %v1113 = vsel %vm1110, %v1112, %v1108
    %v1114 = vmul.f32 1.0, %v1113
    %v1115 = vtanh.pop %v1055
    %v1116 = vmul.f32 %v1099, %v715
    %v1117 = vmul.f32 %v1084, %v1115
    %v1118 = vadd.f32 %v1116, %v1117
    %v1119 = vtanh.pop %v1118
    %v1120 = vmul.f32 %v1114, %v1119
    %v1121 = vld [vmem:[#allocation2 + $0x40] sm:$0xff]
    %v1122 = vld [vmem:[#allocation2 + $0x48] sm:$0xff]
    %v1123 = vld [vmem:[#allocation2 + $0x50] sm:$0xff]
    %v1124 = vld [vmem:[#allocation2 + $0x58] sm:$0xff]
    %1125 = vmatpush.bf16.msra.mxu0 %v846
    %1126 = vmatpush.bf16.msra.mxu0 %v842
    %1127 = vmatpush.bf16.msra.mxu0 %v838
    %1128 = vmatpush.bf16.msra.mxu0 %v834
    %1129 = vmatpush.bf16.msra.mxu0 %v830
    %1130 = vmatpush.bf16.msra.mxu0 %v826
    %1131 = vmatpush.bf16.msra.mxu0 %v822
    %1132 = vmatpush.bf16.msra.mxu0 %v818
    %1133 = vmatmul.bf16.gmra.mxu0 %v1001
    %v1134 = vpop.f32.mrf.mxu0
    %v1135 = vadd.f32 0.0, %v1134
    %v1136 = vpop.f32.mrf.mxu0
    %1137 = vdwg.mxu0
    %1138 = vmatpush.bf16.msra.mxu0 %v847
    %1139 = vmatpush.bf16.msra.mxu0 %v843
    %1140 = vmatpush.bf16.msra.mxu0 %v839
    %1141 = vmatpush.bf16.msra.mxu0 %v835
    %1142 = vmatpush.bf16.msra.mxu0 %v831
    %1143 = vmatpush.bf16.msra.mxu0 %v827
    %1144 = vmatpush.bf16.msra.mxu0 %v823
    %1145 = vmatpush.bf16.msra.mxu0 %v819
    %1146 = vmatmul.bf16.gmra.mxu0 %v1001
    %v1147 = vpop.f32.mrf.mxu0
    %v1148 = vadd.f32 0.0, %v1147
    %v1149 = vpop.f32.mrf.mxu0
    %1150 = vdwg.mxu0
    %1151 = vmatpush.bf16.msra.mxu0 %v848
    %1152 = vmatpush.bf16.msra.mxu0 %v844
    %1153 = vmatpush.bf16.msra.mxu0 %v840
    %1154 = vmatpush.bf16.msra.mxu0 %v836
    %1155 = vmatpush.bf16.msra.mxu0 %v832
    %1156 = vmatpush.bf16.msra.mxu0 %v828
    %1157 = vmatpush.bf16.msra.mxu0 %v824
    %1158 = vmatpush.bf16.msra.mxu0 %v820
    %1159 = vmatmul.bf16.gmra.mxu0 %v1001
    %v1160 = vpop.f32.mrf.mxu0
    %v1161 = vadd.f32 0.0, %v1160
    %v1162 = vpop.f32.mrf.mxu0
    %1163 = vdwg.mxu0
    %1164 = vmatpush.bf16.msra.mxu0 %v849
    %1165 = vmatpush.bf16.msra.mxu0 %v845
    %1166 = vmatpush.bf16.msra.mxu0 %v841
    %1167 = vmatpush.bf16.msra.mxu0 %v837
    %1168 = vmatpush.bf16.msra.mxu0 %v833
    %1169 = vmatpush.bf16.msra.mxu0 %v829
    %1170 = vmatpush.bf16.msra.mxu0 %v825
    %1171 = vmatpush.bf16.msra.mxu0 %v821
    %1172 = vmatmul.bf16.gmra.mxu0 %v1001
    %v1173 = vpop.f32.mrf.mxu0
    %v1174 = vadd.f32 0.0, %v1173
    %v1175 = vpop.f32.mrf.mxu0
    %1176 = vdwg.mxu0
    %v1177 = vadd.f32 %v1121, %v1135
    %v1178 = vadd.f32 %v1122, %v1148
    %v1179 = vadd.f32 %v1123, %v1161
    %v1180 = vadd.f32 %v1124, %v1174
    %v1181 = vxor.u32 %v1177, 2147483648
    %v1182 = vxor.u32 %v1178, 2147483648
    %v1183 = vxor.u32 %v1179, 2147483648
    %v1184 = vmul.f32 %v1181, 1.442695
    %v1185 = vpow.pop %v1184
    %v1186 = vmul.f32 %v1182, 1.442695
    %v1187 = vpow.pop %v1186
    %v1188 = vmul.f32 %v1183, 1.442695
    %v1189 = vpow.pop %v1188
    %v1190 = vadd.f32 %v1185, 1.0
    %v1191 = vadd.f32 %v1187, 1.0
    %v1192 = vadd.f32 %v1189, 1.0
    %v1193 = vrcp.pop %v1190
    %v1194 = vmul.f32 %v1190, %v1193
    %v1195 = vsub.f32 1.0, %v1194
    %v1196 = vmul.f32 %v1193, %v1195
    %v1197 = vadd.f32 %v1193, %v1196
    %vm1198 = vweird.f32 %v1190
    %vm1199 = vweird.f32 %v1193
    %vm1200 = vmor %vm1198, %vm1199
    %v1201 = vsel %vm1200, %v1193, %v1197
    %v1202 = vand.u32 2147483647, %v1190
    %vm1203 = vcmp.eq.f32.partialorder %v1202, 8.507059e+37
    %v1204 = vand.u32 %v1190, 2147483648
    %v1205 = vor.u32 1.1754944e-38, %v1204
    %v1206 = vsel %vm1203, %v1205, %v1201
    %v1207 = vmul.f32 1.0, %v1206
    %v1208 = vrcp.pop %v1191
    %v1209 = vmul.f32 %v1191, %v1208
    %v1210 = vsub.f32 1.0, %v1209
    %v1211 = vmul.f32 %v1208, %v1210
    %v1212 = vadd.f32 %v1208, %v1211
    %vm1213 = vweird.f32 %v1191
    %vm1214 = vweird.f32 %v1208
    %vm1215 = vmor %vm1213, %vm1214
    %v1216 = vsel %vm1215, %v1208, %v1212
    %v1217 = vand.u32 2147483647, %v1191
    %vm1218 = vcmp.eq.f32.partialorder %v1217, 8.507059e+37
    %v1219 = vand.u32 %v1191, 2147483648
    %v1220 = vor.u32 1.1754944e-38, %v1219
    %v1221 = vsel %vm1218, %v1220, %v1216
    %v1222 = vmul.f32 1.0, %v1221
    %v1223 = vrcp.pop %v1192
    %v1224 = vmul.f32 %v1192, %v1223
    %v1225 = vsub.f32 1.0, %v1224
    %v1226 = vmul.f32 %v1223, %v1225
    %v1227 = vadd.f32 %v1223, %v1226
    %vm1228 = vweird.f32 %v1192
    %vm1229 = vweird.f32 %v1223
    %vm1230 = vmor %vm1228, %vm1229
    %v1231 = vsel %vm1230, %v1223, %v1227
    %v1232 = vand.u32 2147483647, %v1192
    %vm1233 = vcmp.eq.f32.partialorder %v1232, 8.507059e+37
    %v1234 = vand.u32 %v1192, 2147483648
    %v1235 = vor.u32 1.1754944e-38, %v1234
    %v1236 = vsel %vm1233, %v1235, %v1231
    %v1237 = vmul.f32 1.0, %v1236
    %v1238 = vtanh.pop %v1180
    %v1239 = vmul.f32 %v1222, %v998
    %v1240 = vmul.f32 %v1207, %v1238
    %v1241 = vadd.f32 %v1239, %v1240
    %v1242 = vtanh.pop %v1241
    %v1243 = vmul.f32 %v1237, %v1242
    %v1244 = vpack.c.bf16 %v1243, %v1243
    %1245 = vrot.lane.b32.xlu0 %v1120, 64
    %v1246 = vpop.permute.xlu0 %1245
    %v1247 = vadd.f32 %v1243, %v1246
    %v1248 = vpack.c.bf16 %v1247, %v1247
    %1249 = vmatpush.bf16.msra.mxu0 %v567
    %1250 = vmatpush.bf16.msra.mxu0 %v563
    %1251 = vmatpush.bf16.msra.mxu0 %v559
    %1252 = vmatpush.bf16.msra.mxu0 %v555
    %1253 = vmatpush.bf16.msra.mxu0 %v551
    %1254 = vmatpush.bf16.msra.mxu0 %v547
    %1255 = vmatpush.bf16.msra.mxu0 %v543
    %1256 = vmatpush.bf16.msra.mxu0 %v539
    %1257 = vmatmul.bf16.gmra.mxu0 %v1248
    %v1258 = vpop.f32.mrf.mxu0
    %v1259 = vadd.f32 %v367, %v1258
    %v1260 = vpop.f32.mrf.mxu0
    %1261 = vdwg.mxu0
    %1262 = vmatpush.bf16.msra.mxu0 %v568
    %1263 = vmatpush.bf16.msra.mxu0 %v564
    %1264 = vmatpush.bf16.msra.mxu0 %v560
    %1265 = vmatpush.bf16.msra.mxu0 %v556
    %1266 = vmatpush.bf16.msra.mxu0 %v552
    %1267 = vmatpush.bf16.msra.mxu0 %v548
    %1268 = vmatpush.bf16.msra.mxu0 %v544
    %1269 = vmatpush.bf16.msra.mxu0 %v540
    %1270 = vmatmul.bf16.gmra.mxu0 %v1248
    %v1271 = vpop.f32.mrf.mxu0
    %v1272 = vadd.f32 %v368, %v1271
    %v1273 = vpop.f32.mrf.mxu0
    %1274 = vdwg.mxu0
    %1275 = vmatpush.bf16.msra.mxu0 %v569
    %1276 = vmatpush.bf16.msra.mxu0 %v565
    %1277 = vmatpush.bf16.msra.mxu0 %v561
    %1278 = vmatpush.bf16.msra.mxu0 %v557
    %1279 = vmatpush.bf16.msra.mxu0 %v553
    %1280 = vmatpush.bf16.msra.mxu0 %v549
    %1281 = vmatpush.bf16.msra.mxu0 %v545
    %1282 = vmatpush.bf16.msra.mxu0 %v541
    %1283 = vmatmul.bf16.gmra.mxu0 %v1248
    %v1284 = vpop.f32.mrf.mxu0
    %v1285 = vadd.f32 %v369, %v1284
    %v1286 = vpop.f32.mrf.mxu0
    %1287 = vdwg.mxu0
    %1288 = vmatpush.bf16.msra.mxu0 %v570
    %1289 = vmatpush.bf16.msra.mxu0 %v566
    %1290 = vmatpush.bf16.msra.mxu0 %v562
    %1291 = vmatpush.bf16.msra.mxu0 %v558
    %1292 = vmatpush.bf16.msra.mxu0 %v554
    %1293 = vmatpush.bf16.msra.mxu0 %v550
    %1294 = vmatpush.bf16.msra.mxu0 %v546
    %1295 = vmatpush.bf16.msra.mxu0 %v542
    %1296 = vmatmul.bf16.gmra.mxu0 %v1248
    %v1297 = vpop.f32.mrf.mxu0
    %v1298 = vadd.f32 %v370, %v1297
    %v1299 = vpop.f32.mrf.mxu0
    %1300 = vdwg.mxu0
    %v1301 = vxor.u32 %v1259, 2147483648
    %v1302 = vxor.u32 %v1272, 2147483648
    %v1303 = vxor.u32 %v1285, 2147483648
    %v1304 = vmul.f32 %v1301, 1.442695
    %v1305 = vpow.pop %v1304
    %v1306 = vmul.f32 %v1302, 1.442695
    %v1307 = vpow.pop %v1306
    %v1308 = vmul.f32 %v1303, 1.442695
    %v1309 = vpow.pop %v1308
    %v1310 = vadd.f32 %v1305, 1.0
    %v1311 = vadd.f32 %v1307, 1.0
    %v1312 = vadd.f32 %v1309, 1.0
    %v1313 = vrcp.pop %v1310
    %v1314 = vmul.f32 %v1310, %v1313
    %v1315 = vsub.f32 1.0, %v1314
    %v1316 = vmul.f32 %v1313, %v1315
    %v1317 = vadd.f32 %v1313, %v1316
    %vm1318 = vweird.f32 %v1310
    %vm1319 = vweird.f32 %v1313
    %vm1320 = vmor %vm1318, %vm1319
    %v1321 = vsel %vm1320, %v1313, %v1317
    %v1322 = vand.u32 2147483647, %v1310
    %vm1323 = vcmp.eq.f32.partialorder %v1322, 8.507059e+37
    %v1324 = vand.u32 %v1310, 2147483648
    %v1325 = vor.u32 1.1754944e-38, %v1324
    %v1326 = vsel %vm1323, %v1325, %v1321
    %v1327 = vmul.f32 1.0, %v1326
    %v1328 = vrcp.pop %v1311
    %v1329 = vmul.f32 %v1311, %v1328
    %v1330 = vsub.f32 1.0, %v1329
    %v1331 = vmul.f32 %v1328, %v1330
    %v1332 = vadd.f32 %v1328, %v1331
    %vm1333 = vweird.f32 %v1311
    %vm1334 = vweird.f32 %v1328
    %vm1335 = vmor %vm1333, %vm1334
    %v1336 = vsel %vm1335, %v1328, %v1332
    %v1337 = vand.u32 2147483647, %v1311
    %vm1338 = vcmp.eq.f32.partialorder %v1337, 8.507059e+37
    %v1339 = vand.u32 %v1311, 2147483648
    %v1340 = vor.u32 1.1754944e-38, %v1339
    %v1341 = vsel %vm1338, %v1340, %v1336
    %v1342 = vmul.f32 1.0, %v1341
    %v1343 = vrcp.pop %v1312
    %v1344 = vmul.f32 %v1312, %v1343
    %v1345 = vsub.f32 1.0, %v1344
    %v1346 = vmul.f32 %v1343, %v1345
    %v1347 = vadd.f32 %v1343, %v1346
    %vm1348 = vweird.f32 %v1312
    %vm1349 = vweird.f32 %v1343
    %vm1350 = vmor %vm1348, %vm1349
    %v1351 = vsel %vm1350, %v1343, %v1347
    %v1352 = vand.u32 2147483647, %v1312
    %vm1353 = vcmp.eq.f32.partialorder %v1352, 8.507059e+37
    %v1354 = vand.u32 %v1312, 2147483648
    %v1355 = vor.u32 1.1754944e-38, %v1354
    %v1356 = vsel %vm1353, %v1355, %v1351
    %v1357 = vmul.f32 1.0, %v1356
    %v1358 = vtanh.pop %v1298
    %v1359 = vmul.f32 %v1342, %v1118
    %v1360 = vmul.f32 %v1327, %v1358
    %v1361 = vadd.f32 %v1359, %v1360
    %v1362 = vtanh.pop %v1361
    %v1363 = vmul.f32 %v1357, %v1362
    %v1364 = vld [vmem:[#allocation2 + $0x60] sm:$0xff]
    %v1365 = vld [vmem:[#allocation2 + $0x68] sm:$0xff]
    %v1366 = vld [vmem:[#allocation2 + $0x70] sm:$0xff]
    %v1367 = vld [vmem:[#allocation2 + $0x78] sm:$0xff]
    %1368 = vmatpush.bf16.msra.mxu0 %v846
    %1369 = vmatpush.bf16.msra.mxu0 %v842
    %1370 = vmatpush.bf16.msra.mxu0 %v838
    %1371 = vmatpush.bf16.msra.mxu0 %v834
    %1372 = vmatpush.bf16.msra.mxu0 %v830
    %1373 = vmatpush.bf16.msra.mxu0 %v826
    %1374 = vmatpush.bf16.msra.mxu0 %v822
    %1375 = vmatpush.bf16.msra.mxu0 %v818
    %1376 = vmatmul.bf16.gmra.mxu0 %v1244
    %v1377 = vpop.f32.mrf.mxu0
    %v1378 = vadd.f32 0.0, %v1377
    %v1379 = vpop.f32.mrf.mxu0
    %1380 = vdwg.mxu0
    %1381 = vmatpush.bf16.msra.mxu0 %v847
    %1382 = vmatpush.bf16.msra.mxu0 %v843
    %1383 = vmatpush.bf16.msra.mxu0 %v839
    %1384 = vmatpush.bf16.msra.mxu0 %v835
    %1385 = vmatpush.bf16.msra.mxu0 %v831
    %1386 = vmatpush.bf16.msra.mxu0 %v827
    %1387 = vmatpush.bf16.msra.mxu0 %v823
    %1388 = vmatpush.bf16.msra.mxu0 %v819
    %1389 = vmatmul.bf16.gmra.mxu0 %v1244
    %v1390 = vpop.f32.mrf.mxu0
    %v1391 = vadd.f32 0.0, %v1390
    %v1392 = vpop.f32.mrf.mxu0
    %1393 = vdwg.mxu0
    %1394 = vmatpush.bf16.msra.mxu0 %v848
    %1395 = vmatpush.bf16.msra.mxu0 %v844
    %1396 = vmatpush.bf16.msra.mxu0 %v840
    %1397 = vmatpush.bf16.msra.mxu0 %v836
    %1398 = vmatpush.bf16.msra.mxu0 %v832
    %1399 = vmatpush.bf16.msra.mxu0 %v828
    %1400 = vmatpush.bf16.msra.mxu0 %v824
    %1401 = vmatpush.bf16.msra.mxu0 %v820
    %1402 = vmatmul.bf16.gmra.mxu0 %v1244
    %v1403 = vpop.f32.mrf.mxu0
    %v1404 = vadd.f32 0.0, %v1403
    %v1405 = vpop.f32.mrf.mxu0
    %1406 = vdwg.mxu0
    %1407 = vmatpush.bf16.msra.mxu0 %v849
    %1408 = vmatpush.bf16.msra.mxu0 %v845
    %1409 = vmatpush.bf16.msra.mxu0 %v841
    %1410 = vmatpush.bf16.msra.mxu0 %v837
    %1411 = vmatpush.bf16.msra.mxu0 %v833
    %1412 = vmatpush.bf16.msra.mxu0 %v829
    %1413 = vmatpush.bf16.msra.mxu0 %v825
    %1414 = vmatpush.bf16.msra.mxu0 %v821
    %1415 = vmatmul.bf16.gmra.mxu0 %v1244
    %v1416 = vpop.f32.mrf.mxu0
    %v1417 = vadd.f32 0.0, %v1416
    %v1418 = vpop.f32.mrf.mxu0
    %1419 = vdwg.mxu0
    %v1420 = vadd.f32 %v1364, %v1378
    %v1421 = vadd.f32 %v1365, %v1391
    %v1422 = vadd.f32 %v1366, %v1404
    %v1423 = vadd.f32 %v1367, %v1417
    %v1424 = vxor.u32 %v1420, 2147483648
    %v1425 = vxor.u32 %v1421, 2147483648
    %v1426 = vxor.u32 %v1422, 2147483648
    %v1427 = vmul.f32 %v1424, 1.442695
    %v1428 = vpow.pop %v1427
    %v1429 = vmul.f32 %v1425, 1.442695
    %v1430 = vpow.pop %v1429
    %v1431 = vmul.f32 %v1426, 1.442695
    %v1432 = vpow.pop %v1431
    %v1433 = vadd.f32 %v1428, 1.0
    %v1434 = vadd.f32 %v1430, 1.0
    %v1435 = vadd.f32 %v1432, 1.0
    %v1436 = vrcp.pop %v1433
    %v1437 = vmul.f32 %v1433, %v1436
    %v1438 = vsub.f32 1.0, %v1437
    %v1439 = vmul.f32 %v1436, %v1438
    %v1440 = vadd.f32 %v1436, %v1439
    %vm1441 = vweird.f32 %v1433
    %vm1442 = vweird.f32 %v1436
    %vm1443 = vmor %vm1441, %vm1442
    %v1444 = vsel %vm1443, %v1436, %v1440
    %v1445 = vand.u32 2147483647, %v1433
    %vm1446 = vcmp.eq.f32.partialorder %v1445, 8.507059e+37
    %v1447 = vand.u32 %v1433, 2147483648
    %v1448 = vor.u32 1.1754944e-38, %v1447
    %v1449 = vsel %vm1446, %v1448, %v1444
    %v1450 = vmul.f32 1.0, %v1449
    %v1451 = vrcp.pop %v1434
    %v1452 = vmul.f32 %v1434, %v1451
    %v1453 = vsub.f32 1.0, %v1452
    %v1454 = vmul.f32 %v1451, %v1453
    %v1455 = vadd.f32 %v1451, %v1454
    %vm1456 = vweird.f32 %v1434
    %vm1457 = vweird.f32 %v1451
    %vm1458 = vmor %vm1456, %vm1457
    %v1459 = vsel %vm1458, %v1451, %v1455
    %v1460 = vand.u32 2147483647, %v1434
    %vm1461 = vcmp.eq.f32.partialorder %v1460, 8.507059e+37
    %v1462 = vand.u32 %v1434, 2147483648
    %v1463 = vor.u32 1.1754944e-38, %v1462
    %v1464 = vsel %vm1461, %v1463, %v1459
    %v1465 = vmul.f32 1.0, %v1464
    %v1466 = vrcp.pop %v1435
    %v1467 = vmul.f32 %v1435, %v1466
    %v1468 = vsub.f32 1.0, %v1467
    %v1469 = vmul.f32 %v1466, %v1468
    %v1470 = vadd.f32 %v1466, %v1469
    %vm1471 = vweird.f32 %v1435
    %vm1472 = vweird.f32 %v1466
    %vm1473 = vmor %vm1471, %vm1472
    %v1474 = vsel %vm1473, %v1466, %v1470
    %v1475 = vand.u32 2147483647, %v1435
    %vm1476 = vcmp.eq.f32.partialorder %v1475, 8.507059e+37
    %v1477 = vand.u32 %v1435, 2147483648
    %v1478 = vor.u32 1.1754944e-38, %v1477
    %v1479 = vsel %vm1476, %v1478, %v1474
    %v1480 = vmul.f32 1.0, %v1479
    %v1481 = vtanh.pop %v1423
    %v1482 = vmul.f32 %v1465, %v1241
    %v1483 = vmul.f32 %v1450, %v1481
    %v1484 = vadd.f32 %v1482, %v1483
    %v1485 = vtanh.pop %v1484
    %v1486 = vmul.f32 %v1480, %v1485
    %v1487 = vpack.c.bf16 %v1486, %v1486
    %1488 = vrot.lane.b32.xlu0 %v1363, 64
    %v1489 = vpop.permute.xlu0 %1488
    %v1490 = vadd.f32 %v1486, %v1489
    %v1491 = vpack.c.bf16 %v1490, %v1490
    %1492 = vmatpush.bf16.msra.mxu0 %v567
    %1493 = vmatpush.bf16.msra.mxu0 %v563
    %1494 = vmatpush.bf16.msra.mxu0 %v559
    %1495 = vmatpush.bf16.msra.mxu0 %v555
    %1496 = vmatpush.bf16.msra.mxu0 %v551
    %1497 = vmatpush.bf16.msra.mxu0 %v547
    %1498 = vmatpush.bf16.msra.mxu0 %v543
    %1499 = vmatpush.bf16.msra.mxu0 %v539
    %1500 = vmatmul.bf16.gmra.mxu0 %v1491
    %v1501 = vpop.f32.mrf.mxu0
    %v1502 = vadd.f32 %v367, %v1501
    %v1503 = vpop.f32.mrf.mxu0
    %1504 = vdwg.mxu0
    %1505 = vmatpush.bf16.msra.mxu0 %v568
    %1506 = vmatpush.bf16.msra.mxu0 %v564
    %1507 = vmatpush.bf16.msra.mxu0 %v560
    %1508 = vmatpush.bf16.msra.mxu0 %v556
    %1509 = vmatpush.bf16.msra.mxu0 %v552
    %1510 = vmatpush.bf16.msra.mxu0 %v548
    %1511 = vmatpush.bf16.msra.mxu0 %v544
    %1512 = vmatpush.bf16.msra.mxu0 %v540
    %1513 = vmatmul.bf16.gmra.mxu0 %v1491
    %v1514 = vpop.f32.mrf.mxu0
    %v1515 = vadd.f32 %v368, %v1514
    %v1516 = vpop.f32.mrf.mxu0
    %1517 = vdwg.mxu0
    %1518 = vmatpush.bf16.msra.mxu0 %v569
    %1519 = vmatpush.bf16.msra.mxu0 %v565
    %1520 = vmatpush.bf16.msra.mxu0 %v561
    %1521 = vmatpush.bf16.msra.mxu0 %v557
    %1522 = vmatpush.bf16.msra.mxu0 %v553
    %1523 = vmatpush.bf16.msra.mxu0 %v549
    %1524 = vmatpush.bf16.msra.mxu0 %v545
    %1525 = vmatpush.bf16.msra.mxu0 %v541
    %1526 = vmatmul.bf16.gmra.mxu0 %v1491
    %v1527 = vpop.f32.mrf.mxu0
    %v1528 = vadd.f32 %v369, %v1527
    %v1529 = vpop.f32.mrf.mxu0
    %1530 = vdwg.mxu0
    %1531 = vmatpush.bf16.msra.mxu0 %v570
    %1532 = vmatpush.bf16.msra.mxu0 %v566
    %1533 = vmatpush.bf16.msra.mxu0 %v562
    %1534 = vmatpush.bf16.msra.mxu0 %v558
    %1535 = vmatpush.bf16.msra.mxu0 %v554
    %1536 = vmatpush.bf16.msra.mxu0 %v550
    %1537 = vmatpush.bf16.msra.mxu0 %v546
    %1538 = vmatpush.bf16.msra.mxu0 %v542
    %1539 = vmatmul.bf16.gmra.mxu0 %v1491
    %v1540 = vpop.f32.mrf.mxu0
    %v1541 = vadd.f32 %v370, %v1540
    %v1542 = vpop.f32.mrf.mxu0
    %1543 = vdwg.mxu0
    %v1544 = vxor.u32 %v1502, 2147483648
    %v1545 = vxor.u32 %v1515, 2147483648
    %v1546 = vxor.u32 %v1528, 2147483648
    %v1547 = vmul.f32 %v1544, 1.442695
    %v1548 = vpow.pop %v1547
    %v1549 = vmul.f32 %v1545, 1.442695
    %v1550 = vpow.pop %v1549
    %v1551 = vmul.f32 %v1546, 1.442695
    %v1552 = vpow.pop %v1551
    %v1553 = vadd.f32 %v1548, 1.0
    %v1554 = vadd.f32 %v1550, 1.0
    %v1555 = vadd.f32 %v1552, 1.0
    %v1556 = vrcp.pop %v1553
    %v1557 = vmul.f32 %v1553, %v1556
    %v1558 = vsub.f32 1.0, %v1557
    %v1559 = vmul.f32 %v1556, %v1558
    %v1560 = vadd.f32 %v1556, %v1559
    %vm1561 = vweird.f32 %v1553
    %vm1562 = vweird.f32 %v1556
    %vm1563 = vmor %vm1561, %vm1562
    %v1564 = vsel %vm1563, %v1556, %v1560
    %v1565 = vand.u32 2147483647, %v1553
    %vm1566 = vcmp.eq.f32.partialorder %v1565, 8.507059e+37
    %v1567 = vand.u32 %v1553, 2147483648
    %v1568 = vor.u32 1.1754944e-38, %v1567
    %v1569 = vsel %vm1566, %v1568, %v1564
    %v1570 = vmul.f32 1.0, %v1569
    %v1571 = vrcp.pop %v1554
    %v1572 = vmul.f32 %v1554, %v1571
    %v1573 = vsub.f32 1.0, %v1572
    %v1574 = vmul.f32 %v1571, %v1573
    %v1575 = vadd.f32 %v1571, %v1574
    %vm1576 = vweird.f32 %v1554
    %vm1577 = vweird.f32 %v1571
    %vm1578 = vmor %vm1576, %vm1577
    %v1579 = vsel %vm1578, %v1571, %v1575
    %v1580 = vand.u32 2147483647, %v1554
    %vm1581 = vcmp.eq.f32.partialorder %v1580, 8.507059e+37
    %v1582 = vand.u32 %v1554, 2147483648
    %v1583 = vor.u32 1.1754944e-38, %v1582
    %v1584 = vsel %vm1581, %v1583, %v1579
    %v1585 = vmul.f32 1.0, %v1584
    %v1586 = vrcp.pop %v1555
    %v1587 = vmul.f32 %v1555, %v1586
    %v1588 = vsub.f32 1.0, %v1587
    %v1589 = vmul.f32 %v1586, %v1588
    %v1590 = vadd.f32 %v1586, %v1589
    %vm1591 = vweird.f32 %v1555
    %vm1592 = vweird.f32 %v1586
    %vm1593 = vmor %vm1591, %vm1592
    %v1594 = vsel %vm1593, %v1586, %v1590
    %v1595 = vand.u32 2147483647, %v1555
    %vm1596 = vcmp.eq.f32.partialorder %v1595, 8.507059e+37
    %v1597 = vand.u32 %v1555, 2147483648
    %v1598 = vor.u32 1.1754944e-38, %v1597
    %v1599 = vsel %vm1596, %v1598, %v1594
    %v1600 = vmul.f32 1.0, %v1599
    %v1601 = vtanh.pop %v1541
    %v1602 = vmul.f32 %v1585, %v1361
    %v1603 = vmul.f32 %v1570, %v1601
    %v1604 = vadd.f32 %v1602, %v1603
    %v1605 = vtanh.pop %v1604
    %v1606 = vmul.f32 %v1600, %v1605
    %v1607 = vld [vmem:[#allocation2 + $0x80] sm:$0xff]
    %v1608 = vld [vmem:[#allocation2 + $0x88] sm:$0xff]
    %v1609 = vld [vmem:[#allocation2 + $0x90] sm:$0xff]
    %v1610 = vld [vmem:[#allocation2 + $0x98] sm:$0xff]
    %1611 = vmatpush.bf16.msra.mxu0 %v846
    %1612 = vmatpush.bf16.msra.mxu0 %v842
    %1613 = vmatpush.bf16.msra.mxu0 %v838
    %1614 = vmatpush.bf16.msra.mxu0 %v834
    %1615 = vmatpush.bf16.msra.mxu0 %v830
    %1616 = vmatpush.bf16.msra.mxu0 %v826
    %1617 = vmatpush.bf16.msra.mxu0 %v822
    %1618 = vmatpush.bf16.msra.mxu0 %v818
    %1619 = vmatmul.bf16.gmra.mxu0 %v1487
    %v1620 = vpop.f32.mrf.mxu0
    %v1621 = vadd.f32 0.0, %v1620
    %v1622 = vpop.f32.mrf.mxu0
    %1623 = vdwg.mxu0
    %1624 = vmatpush.bf16.msra.mxu0 %v847
    %1625 = vmatpush.bf16.msra.mxu0 %v843
    %1626 = vmatpush.bf16.msra.mxu0 %v839
    %1627 = vmatpush.bf16.msra.mxu0 %v835
    %1628 = vmatpush.bf16.msra.mxu0 %v831
    %1629 = vmatpush.bf16.msra.mxu0 %v827
    %1630 = vmatpush.bf16.msra.mxu0 %v823
    %1631 = vmatpush.bf16.msra.mxu0 %v819
    %1632 = vmatmul.bf16.gmra.mxu0 %v1487
    %v1633 = vpop.f32.mrf.mxu0
    %v1634 = vadd.f32 0.0, %v1633
    %v1635 = vpop.f32.mrf.mxu0
    %1636 = vdwg.mxu0
    %1637 = vmatpush.bf16.msra.mxu0 %v848
    %1638 = vmatpush.bf16.msra.mxu0 %v844
    %1639 = vmatpush.bf16.msra.mxu0 %v840
    %1640 = vmatpush.bf16.msra.mxu0 %v836
    %1641 = vmatpush.bf16.msra.mxu0 %v832
    %1642 = vmatpush.bf16.msra.mxu0 %v828
    %1643 = vmatpush.bf16.msra.mxu0 %v824
    %1644 = vmatpush.bf16.msra.mxu0 %v820
    %1645 = vmatmul.bf16.gmra.mxu0 %v1487
    %v1646 = vpop.f32.mrf.mxu0
    %v1647 = vadd.f32 0.0, %v1646
    %v1648 = vpop.f32.mrf.mxu0
    %1649 = vdwg.mxu0
    %1650 = vmatpush.bf16.msra.mxu0 %v849
    %1651 = vmatpush.bf16.msra.mxu0 %v845
    %1652 = vmatpush.bf16.msra.mxu0 %v841
    %1653 = vmatpush.bf16.msra.mxu0 %v837
    %1654 = vmatpush.bf16.msra.mxu0 %v833
    %1655 = vmatpush.bf16.msra.mxu0 %v829
    %1656 = vmatpush.bf16.msra.mxu0 %v825
    %1657 = vmatpush.bf16.msra.mxu0 %v821
    %1658 = vmatmul.bf16.gmra.mxu0 %v1487
    %v1659 = vpop.f32.mrf.mxu0
    %v1660 = vadd.f32 0.0, %v1659
    %v1661 = vpop.f32.mrf.mxu0
    %1662 = vdwg.mxu0
    %v1663 = vadd.f32 %v1607, %v1621
    %v1664 = vadd.f32 %v1608, %v1634
    %v1665 = vadd.f32 %v1609, %v1647
    %v1666 = vadd.f32 %v1610, %v1660
    %v1667 = vxor.u32 %v1663, 2147483648
    %v1668 = vxor.u32 %v1664, 2147483648
    %v1669 = vxor.u32 %v1665, 2147483648
    %v1670 = vmul.f32 %v1667, 1.442695
    %v1671 = vpow.pop %v1670
    %v1672 = vmul.f32 %v1668, 1.442695
    %v1673 = vpow.pop %v1672
    %v1674 = vmul.f32 %v1669, 1.442695
    %v1675 = vpow.pop %v1674
    %v1676 = vadd.f32 %v1671, 1.0
    %v1677 = vadd.f32 %v1673, 1.0
    %v1678 = vadd.f32 %v1675, 1.0
    %v1679 = vrcp.pop %v1676
    %v1680 = vmul.f32 %v1676, %v1679
    %v1681 = vsub.f32 1.0, %v1680
    %v1682 = vmul.f32 %v1679, %v1681
    %v1683 = vadd.f32 %v1679, %v1682
    %vm1684 = vweird.f32 %v1676
    %vm1685 = vweird.f32 %v1679
    %vm1686 = vmor %vm1684, %vm1685
    %v1687 = vsel %vm1686, %v1679, %v1683
    %v1688 = vand.u32 2147483647, %v1676
    %vm1689 = vcmp.eq.f32.partialorder %v1688, 8.507059e+37
    %v1690 = vand.u32 %v1676, 2147483648
    %v1691 = vor.u32 1.1754944e-38, %v1690
    %v1692 = vsel %vm1689, %v1691, %v1687
    %v1693 = vmul.f32 1.0, %v1692
    %v1694 = vrcp.pop %v1677
    %v1695 = vmul.f32 %v1677, %v1694
    %v1696 = vsub.f32 1.0, %v1695
    %v1697 = vmul.f32 %v1694, %v1696
    %v1698 = vadd.f32 %v1694, %v1697
    %vm1699 = vweird.f32 %v1677
    %vm1700 = vweird.f32 %v1694
    %vm1701 = vmor %vm1699, %vm1700
    %v1702 = vsel %vm1701, %v1694, %v1698
    %v1703 = vand.u32 2147483647, %v1677
    %vm1704 = vcmp.eq.f32.partialorder %v1703, 8.507059e+37
    %v1705 = vand.u32 %v1677, 2147483648
    %v1706 = vor.u32 1.1754944e-38, %v1705
    %v1707 = vsel %vm1704, %v1706, %v1702
    %v1708 = vmul.f32 1.0, %v1707
    %v1709 = vrcp.pop %v1678
    %v1710 = vmul.f32 %v1678, %v1709
    %v1711 = vsub.f32 1.0, %v1710
    %v1712 = vmul.f32 %v1709, %v1711
    %v1713 = vadd.f32 %v1709, %v1712
    %vm1714 = vweird.f32 %v1678
    %vm1715 = vweird.f32 %v1709
    %vm1716 = vmor %vm1714, %vm1715
    %v1717 = vsel %vm1716, %v1709, %v1713
    %v1718 = vand.u32 2147483647, %v1678
    %vm1719 = vcmp.eq.f32.partialorder %v1718, 8.507059e+37
    %v1720 = vand.u32 %v1678, 2147483648
    %v1721 = vor.u32 1.1754944e-38, %v1720
    %v1722 = vsel %vm1719, %v1721, %v1717
    %v1723 = vmul.f32 1.0, %v1722
    %v1724 = vtanh.pop %v1666
    %v1725 = vmul.f32 %v1708, %v1484
    %v1726 = vmul.f32 %v1693, %v1724
    %v1727 = vadd.f32 %v1725, %v1726
    %v1728 = vtanh.pop %v1727
    %v1729 = vmul.f32 %v1723, %v1728
    %v1730 = vpack.c.bf16 %v1729, %v1729
    %1731 = vrot.lane.b32.xlu0 %v1606, 64
    %v1732 = vpop.permute.xlu0 %1731
    %v1733 = vadd.f32 %v1729, %v1732
    %v1734 = vpack.c.bf16 %v1733, %v1733
    %1735 = vmatpush.bf16.msra.mxu0 %v567
    %1736 = vmatpush.bf16.msra.mxu0 %v563
    %1737 = vmatpush.bf16.msra.mxu0 %v559
    %1738 = vmatpush.bf16.msra.mxu0 %v555
    %1739 = vmatpush.bf16.msra.mxu0 %v551
    %1740 = vmatpush.bf16.msra.mxu0 %v547
    %1741 = vmatpush.bf16.msra.mxu0 %v543
    %1742 = vmatpush.bf16.msra.mxu0 %v539
    %1743 = vmatmul.bf16.gmra.mxu0 %v1734
    %v1744 = vpop.f32.mrf.mxu0
    %v1745 = vadd.f32 %v367, %v1744
    %v1746 = vpop.f32.mrf.mxu0
    %1747 = vdwg.mxu0
    %1748 = vmatpush.bf16.msra.mxu0 %v568
    %1749 = vmatpush.bf16.msra.mxu0 %v564
    %1750 = vmatpush.bf16.msra.mxu0 %v560
    %1751 = vmatpush.bf16.msra.mxu0 %v556
    %1752 = vmatpush.bf16.msra.mxu0 %v552
    %1753 = vmatpush.bf16.msra.mxu0 %v548
    %1754 = vmatpush.bf16.msra.mxu0 %v544
    %1755 = vmatpush.bf16.msra.mxu0 %v540
    %1756 = vmatmul.bf16.gmra.mxu0 %v1734
    %v1757 = vpop.f32.mrf.mxu0
    %v1758 = vadd.f32 %v368, %v1757
    %v1759 = vpop.f32.mrf.mxu0
    %1760 = vdwg.mxu0
    %1761 = vmatpush.bf16.msra.mxu0 %v569
    %1762 = vmatpush.bf16.msra.mxu0 %v565
    %1763 = vmatpush.bf16.msra.mxu0 %v561
    %1764 = vmatpush.bf16.msra.mxu0 %v557
    %1765 = vmatpush.bf16.msra.mxu0 %v553
    %1766 = vmatpush.bf16.msra.mxu0 %v549
    %1767 = vmatpush.bf16.msra.mxu0 %v545
    %1768 = vmatpush.bf16.msra.mxu0 %v541
    %1769 = vmatmul.bf16.gmra.mxu0 %v1734
    %v1770 = vpop.f32.mrf.mxu0
    %v1771 = vadd.f32 %v369, %v1770
    %v1772 = vpop.f32.mrf.mxu0
    %1773 = vdwg.mxu0
    %1774 = vmatpush.bf16.msra.mxu0 %v570
    %1775 = vmatpush.bf16.msra.mxu0 %v566
    %1776 = vmatpush.bf16.msra.mxu0 %v562
    %1777 = vmatpush.bf16.msra.mxu0 %v558
    %1778 = vmatpush.bf16.msra.mxu0 %v554
    %1779 = vmatpush.bf16.msra.mxu0 %v550
    %1780 = vmatpush.bf16.msra.mxu0 %v546
    %1781 = vmatpush.bf16.msra.mxu0 %v542
    %1782 = vmatmul.bf16.gmra.mxu0 %v1734
    %v1783 = vpop.f32.mrf.mxu0
    %v1784 = vadd.f32 %v370, %v1783
    %v1785 = vpop.f32.mrf.mxu0
    %1786 = vdwg.mxu0
    %v1787 = vxor.u32 %v1745, 2147483648
    %v1788 = vxor.u32 %v1758, 2147483648
    %v1789 = vxor.u32 %v1771, 2147483648
    %v1790 = vmul.f32 %v1787, 1.442695
    %v1791 = vpow.pop %v1790
    %v1792 = vmul.f32 %v1788, 1.442695
    %v1793 = vpow.pop %v1792
    %v1794 = vmul.f32 %v1789, 1.442695
    %v1795 = vpow.pop %v1794
    %v1796 = vadd.f32 %v1791, 1.0
    %v1797 = vadd.f32 %v1793, 1.0
    %v1798 = vadd.f32 %v1795, 1.0
    %v1799 = vrcp.pop %v1796
    %v1800 = vmul.f32 %v1796, %v1799
    %v1801 = vsub.f32 1.0, %v1800
    %v1802 = vmul.f32 %v1799, %v1801
    %v1803 = vadd.f32 %v1799, %v1802
    %vm1804 = vweird.f32 %v1796
    %vm1805 = vweird.f32 %v1799
    %vm1806 = vmor %vm1804, %vm1805
    %v1807 = vsel %vm1806, %v1799, %v1803
    %v1808 = vand.u32 2147483647, %v1796
    %vm1809 = vcmp.eq.f32.partialorder %v1808, 8.507059e+37
    %v1810 = vand.u32 %v1796, 2147483648
    %v1811 = vor.u32 1.1754944e-38, %v1810
    %v1812 = vsel %vm1809, %v1811, %v1807
    %v1813 = vmul.f32 1.0, %v1812
    %v1814 = vrcp.pop %v1797
    %v1815 = vmul.f32 %v1797, %v1814
    %v1816 = vsub.f32 1.0, %v1815
    %v1817 = vmul.f32 %v1814, %v1816
    %v1818 = vadd.f32 %v1814, %v1817
    %vm1819 = vweird.f32 %v1797
    %vm1820 = vweird.f32 %v1814
    %vm1821 = vmor %vm1819, %vm1820
    %v1822 = vsel %vm1821, %v1814, %v1818
    %v1823 = vand.u32 2147483647, %v1797
    %vm1824 = vcmp.eq.f32.partialorder %v1823, 8.507059e+37
    %v1825 = vand.u32 %v1797, 2147483648
    %v1826 = vor.u32 1.1754944e-38, %v1825
    %v1827 = vsel %vm1824, %v1826, %v1822
    %v1828 = vmul.f32 1.0, %v1827
    %v1829 = vrcp.pop %v1798
    %v1830 = vmul.f32 %v1798, %v1829
    %v1831 = vsub.f32 1.0, %v1830
    %v1832 = vmul.f32 %v1829, %v1831
    %v1833 = vadd.f32 %v1829, %v1832
    %vm1834 = vweird.f32 %v1798
    %vm1835 = vweird.f32 %v1829
    %vm1836 = vmor %vm1834, %vm1835
    %v1837 = vsel %vm1836, %v1829, %v1833
    %v1838 = vand.u32 2147483647, %v1798
    %vm1839 = vcmp.eq.f32.partialorder %v1838, 8.507059e+37
    %v1840 = vand.u32 %v1798, 2147483648
    %v1841 = vor.u32 1.1754944e-38, %v1840
    %v1842 = vsel %vm1839, %v1841, %v1837
    %v1843 = vmul.f32 1.0, %v1842
    %v1844 = vtanh.pop %v1784
    %v1845 = vmul.f32 %v1828, %v1604
    %v1846 = vmul.f32 %v1813, %v1844
    %v1847 = vadd.f32 %v1845, %v1846
    %v1848 = vtanh.pop %v1847
    %v1849 = vmul.f32 %v1843, %v1848
    %v1850 = vld [vmem:[#allocation2 + $0xa0] sm:$0xff]
    %v1851 = vld [vmem:[#allocation2 + $0xa8] sm:$0xff]
    %v1852 = vld [vmem:[#allocation2 + $0xb0] sm:$0xff]
    %v1853 = vld [vmem:[#allocation2 + $0xb8] sm:$0xff]
    %1854 = vmatpush.bf16.msra.mxu0 %v846
    %1855 = vmatpush.bf16.msra.mxu0 %v842
    %1856 = vmatpush.bf16.msra.mxu0 %v838
    %1857 = vmatpush.bf16.msra.mxu0 %v834
    %1858 = vmatpush.bf16.msra.mxu0 %v830
    %1859 = vmatpush.bf16.msra.mxu0 %v826
    %1860 = vmatpush.bf16.msra.mxu0 %v822
    %1861 = vmatpush.bf16.msra.mxu0 %v818
    %1862 = vmatmul.bf16.gmra.mxu0 %v1730
    %v1863 = vpop.f32.mrf.mxu0
    %v1864 = vadd.f32 0.0, %v1863
    %v1865 = vpop.f32.mrf.mxu0
    %1866 = vdwg.mxu0
    %1867 = vmatpush.bf16.msra.mxu0 %v847
    %1868 = vmatpush.bf16.msra.mxu0 %v843
    %1869 = vmatpush.bf16.msra.mxu0 %v839
    %1870 = vmatpush.bf16.msra.mxu0 %v835
    %1871 = vmatpush.bf16.msra.mxu0 %v831
    %1872 = vmatpush.bf16.msra.mxu0 %v827
    %1873 = vmatpush.bf16.msra.mxu0 %v823
    %1874 = vmatpush.bf16.msra.mxu0 %v819
    %1875 = vmatmul.bf16.gmra.mxu0 %v1730
    %v1876 = vpop.f32.mrf.mxu0
    %v1877 = vadd.f32 0.0, %v1876
    %v1878 = vpop.f32.mrf.mxu0
    %1879 = vdwg.mxu0
    %1880 = vmatpush.bf16.msra.mxu0 %v848
    %1881 = vmatpush.bf16.msra.mxu0 %v844
    %1882 = vmatpush.bf16.msra.mxu0 %v840
    %1883 = vmatpush.bf16.msra.mxu0 %v836
    %1884 = vmatpush.bf16.msra.mxu0 %v832
    %1885 = vmatpush.bf16.msra.mxu0 %v828
    %1886 = vmatpush.bf16.msra.mxu0 %v824
    %1887 = vmatpush.bf16.msra.mxu0 %v820
    %1888 = vmatmul.bf16.gmra.mxu0 %v1730
    %v1889 = vpop.f32.mrf.mxu0
    %v1890 = vadd.f32 0.0, %v1889
    %v1891 = vpop.f32.mrf.mxu0
    %1892 = vdwg.mxu0
    %1893 = vmatpush.bf16.msra.mxu0 %v849
    %1894 = vmatpush.bf16.msra.mxu0 %v845
    %1895 = vmatpush.bf16.msra.mxu0 %v841
    %1896 = vmatpush.bf16.msra.mxu0 %v837
    %1897 = vmatpush.bf16.msra.mxu0 %v833
    %1898 = vmatpush.bf16.msra.mxu0 %v829
    %1899 = vmatpush.bf16.msra.mxu0 %v825
    %1900 = vmatpush.bf16.msra.mxu0 %v821
    %1901 = vmatmul.bf16.gmra.mxu0 %v1730
    %v1902 = vpop.f32.mrf.mxu0
    %v1903 = vadd.f32 0.0, %v1902
    %v1904 = vpop.f32.mrf.mxu0
    %1905 = vdwg.mxu0
    %v1906 = vadd.f32 %v1850, %v1864
    %v1907 = vadd.f32 %v1851, %v1877
    %v1908 = vadd.f32 %v1852, %v1890
    %v1909 = vadd.f32 %v1853, %v1903
    %v1910 = vxor.u32 %v1906, 2147483648
    %v1911 = vxor.u32 %v1907, 2147483648
    %v1912 = vxor.u32 %v1908, 2147483648
    %v1913 = vmul.f32 %v1910, 1.442695
    %v1914 = vpow.pop %v1913
    %v1915 = vmul.f32 %v1911, 1.442695
    %v1916 = vpow.pop %v1915
    %v1917 = vmul.f32 %v1912, 1.442695
    %v1918 = vpow.pop %v1917
    %v1919 = vadd.f32 %v1914, 1.0
    %v1920 = vadd.f32 %v1916, 1.0
    %v1921 = vadd.f32 %v1918, 1.0
    %v1922 = vrcp.pop %v1919
    %v1923 = vmul.f32 %v1919, %v1922
    %v1924 = vsub.f32 1.0, %v1923
    %v1925 = vmul.f32 %v1922, %v1924
    %v1926 = vadd.f32 %v1922, %v1925
    %vm1927 = vweird.f32 %v1919
    %vm1928 = vweird.f32 %v1922
    %vm1929 = vmor %vm1927, %vm1928
    %v1930 = vsel %vm1929, %v1922, %v1926
    %v1931 = vand.u32 2147483647, %v1919
    %vm1932 = vcmp.eq.f32.partialorder %v1931, 8.507059e+37
    %v1933 = vand.u32 %v1919, 2147483648
    %v1934 = vor.u32 1.1754944e-38, %v1933
    %v1935 = vsel %vm1932, %v1934, %v1930
    %v1936 = vmul.f32 1.0, %v1935
    %v1937 = vrcp.pop %v1920
    %v1938 = vmul.f32 %v1920, %v1937
    %v1939 = vsub.f32 1.0, %v1938
    %v1940 = vmul.f32 %v1937, %v1939
    %v1941 = vadd.f32 %v1937, %v1940
    %vm1942 = vweird.f32 %v1920
    %vm1943 = vweird.f32 %v1937
    %vm1944 = vmor %vm1942, %vm1943
    %v1945 = vsel %vm1944, %v1937, %v1941
    %v1946 = vand.u32 2147483647, %v1920
    %vm1947 = vcmp.eq.f32.partialorder %v1946, 8.507059e+37
    %v1948 = vand.u32 %v1920, 2147483648
    %v1949 = vor.u32 1.1754944e-38, %v1948
    %v1950 = vsel %vm1947, %v1949, %v1945
    %v1951 = vmul.f32 1.0, %v1950
    %v1952 = vrcp.pop %v1921
    %v1953 = vmul.f32 %v1921, %v1952
    %v1954 = vsub.f32 1.0, %v1953
    %v1955 = vmul.f32 %v1952, %v1954
    %v1956 = vadd.f32 %v1952, %v1955
    %vm1957 = vweird.f32 %v1921
    %vm1958 = vweird.f32 %v1952
    %vm1959 = vmor %vm1957, %vm1958
    %v1960 = vsel %vm1959, %v1952, %v1956
    %v1961 = vand.u32 2147483647, %v1921
    %vm1962 = vcmp.eq.f32.partialorder %v1961, 8.507059e+37
    %v1963 = vand.u32 %v1921, 2147483648
    %v1964 = vor.u32 1.1754944e-38, %v1963
    %v1965 = vsel %vm1962, %v1964, %v1960
    %v1966 = vmul.f32 1.0, %v1965
    %v1967 = vtanh.pop %v1909
    %v1968 = vmul.f32 %v1951, %v1727
    %v1969 = vmul.f32 %v1936, %v1967
    %v1970 = vadd.f32 %v1968, %v1969
    %v1971 = vtanh.pop %v1970
    %v1972 = vmul.f32 %v1966, %v1971
    %v1973 = vpack.c.bf16 %v1972, %v1972
    %1974 = vrot.lane.b32.xlu0 %v1849, 64
    %v1975 = vpop.permute.xlu0 %1974
    %v1976 = vadd.f32 %v1972, %v1975
    %v1977 = vpack.c.bf16 %v1976, %v1976
    %1978 = vmatpush.bf16.msra.mxu0 %v567
    %1979 = vmatpush.bf16.msra.mxu0 %v563
    %1980 = vmatpush.bf16.msra.mxu0 %v559
    %1981 = vmatpush.bf16.msra.mxu0 %v555
    %1982 = vmatpush.bf16.msra.mxu0 %v551
    %1983 = vmatpush.bf16.msra.mxu0 %v547
    %1984 = vmatpush.bf16.msra.mxu0 %v543
    %1985 = vmatpush.bf16.msra.mxu0 %v539
    %1986 = vmatmul.bf16.gmra.mxu0 %v1977
    %v1987 = vpop.f32.mrf.mxu0
    %v1988 = vadd.f32 %v367, %v1987
    %v1989 = vpop.f32.mrf.mxu0
    %1990 = vdwg.mxu0
    %1991 = vmatpush.bf16.msra.mxu0 %v568
    %1992 = vmatpush.bf16.msra.mxu0 %v564
    %1993 = vmatpush.bf16.msra.mxu0 %v560
    %1994 = vmatpush.bf16.msra.mxu0 %v556
    %1995 = vmatpush.bf16.msra.mxu0 %v552
    %1996 = vmatpush.bf16.msra.mxu0 %v548
    %1997 = vmatpush.bf16.msra.mxu0 %v544
    %1998 = vmatpush.bf16.msra.mxu0 %v540
    %1999 = vmatmul.bf16.gmra.mxu0 %v1977
    %v2000 = vpop.f32.mrf.mxu0
    %v2001 = vadd.f32 %v368, %v2000
    %v2002 = vpop.f32.mrf.mxu0
    %2003 = vdwg.mxu0
    %2004 = vmatpush.bf16.msra.mxu0 %v569
    %2005 = vmatpush.bf16.msra.mxu0 %v565
    %2006 = vmatpush.bf16.msra.mxu0 %v561
    %2007 = vmatpush.bf16.msra.mxu0 %v557
    %2008 = vmatpush.bf16.msra.mxu0 %v553
    %2009 = vmatpush.bf16.msra.mxu0 %v549
    %2010 = vmatpush.bf16.msra.mxu0 %v545
    %2011 = vmatpush.bf16.msra.mxu0 %v541
    %2012 = vmatmul.bf16.gmra.mxu0 %v1977
    %v2013 = vpop.f32.mrf.mxu0
    %v2014 = vadd.f32 %v369, %v2013
    %v2015 = vpop.f32.mrf.mxu0
    %2016 = vdwg.mxu0
    %2017 = vmatpush.bf16.msra.mxu0 %v570
    %2018 = vmatpush.bf16.msra.mxu0 %v566
    %2019 = vmatpush.bf16.msra.mxu0 %v562
    %2020 = vmatpush.bf16.msra.mxu0 %v558
    %2021 = vmatpush.bf16.msra.mxu0 %v554
    %2022 = vmatpush.bf16.msra.mxu0 %v550
    %2023 = vmatpush.bf16.msra.mxu0 %v546
    %2024 = vmatpush.bf16.msra.mxu0 %v542
    %2025 = vmatmul.bf16.gmra.mxu0 %v1977
    %v2026 = vpop.f32.mrf.mxu0
    %v2027 = vadd.f32 %v370, %v2026
    %v2028 = vpop.f32.mrf.mxu0
    %2029 = vdwg.mxu0
    %v2030 = vxor.u32 %v1988, 2147483648
    %v2031 = vxor.u32 %v2001, 2147483648
    %v2032 = vxor.u32 %v2014, 2147483648
    %v2033 = vmul.f32 %v2030, 1.442695
    %v2034 = vpow.pop %v2033
    %v2035 = vmul.f32 %v2031, 1.442695
    %v2036 = vpow.pop %v2035
    %v2037 = vmul.f32 %v2032, 1.442695
    %v2038 = vpow.pop %v2037
    %v2039 = vadd.f32 %v2034, 1.0
    %v2040 = vadd.f32 %v2036, 1.0
    %v2041 = vadd.f32 %v2038, 1.0
    %v2042 = vrcp.pop %v2039
    %v2043 = vmul.f32 %v2039, %v2042
    %v2044 = vsub.f32 1.0, %v2043
    %v2045 = vmul.f32 %v2042, %v2044
    %v2046 = vadd.f32 %v2042, %v2045
    %vm2047 = vweird.f32 %v2039
    %vm2048 = vweird.f32 %v2042
    %vm2049 = vmor %vm2047, %vm2048
    %v2050 = vsel %vm2049, %v2042, %v2046
    %v2051 = vand.u32 2147483647, %v2039
    %vm2052 = vcmp.eq.f32.partialorder %v2051, 8.507059e+37
    %v2053 = vand.u32 %v2039, 2147483648
    %v2054 = vor.u32 1.1754944e-38, %v2053
    %v2055 = vsel %vm2052, %v2054, %v2050
    %v2056 = vmul.f32 1.0, %v2055
    %v2057 = vrcp.pop %v2040
    %v2058 = vmul.f32 %v2040, %v2057
    %v2059 = vsub.f32 1.0, %v2058
    %v2060 = vmul.f32 %v2057, %v2059
    %v2061 = vadd.f32 %v2057, %v2060
    %vm2062 = vweird.f32 %v2040
    %vm2063 = vweird.f32 %v2057
    %vm2064 = vmor %vm2062, %vm2063
    %v2065 = vsel %vm2064, %v2057, %v2061
    %v2066 = vand.u32 2147483647, %v2040
    %vm2067 = vcmp.eq.f32.partialorder %v2066, 8.507059e+37
    %v2068 = vand.u32 %v2040, 2147483648
    %v2069 = vor.u32 1.1754944e-38, %v2068
    %v2070 = vsel %vm2067, %v2069, %v2065
    %v2071 = vmul.f32 1.0, %v2070
    %v2072 = vrcp.pop %v2041
    %v2073 = vmul.f32 %v2041, %v2072
    %v2074 = vsub.f32 1.0, %v2073
    %v2075 = vmul.f32 %v2072, %v2074
    %v2076 = vadd.f32 %v2072, %v2075
    %vm2077 = vweird.f32 %v2041
    %vm2078 = vweird.f32 %v2072
    %vm2079 = vmor %vm2077, %vm2078
    %v2080 = vsel %vm2079, %v2072, %v2076
    %v2081 = vand.u32 2147483647, %v2041
    %vm2082 = vcmp.eq.f32.partialorder %v2081, 8.507059e+37
    %v2083 = vand.u32 %v2041, 2147483648
    %v2084 = vor.u32 1.1754944e-38, %v2083
    %v2085 = vsel %vm2082, %v2084, %v2080
    %v2086 = vmul.f32 1.0, %v2085
    %v2087 = vtanh.pop %v2027
    %v2088 = vmul.f32 %v2071, %v1847
    %v2089 = vmul.f32 %v2056, %v2087
    %v2090 = vadd.f32 %v2088, %v2089
    %v2091 = vtanh.pop %v2090
    %v2092 = vmul.f32 %v2086, %v2091
    %v2093 = vld [vmem:[#allocation2 + $0xc0] sm:$0xff]
    %v2094 = vld [vmem:[#allocation2 + $0xc8] sm:$0xff]
    %v2095 = vld [vmem:[#allocation2 + $0xd0] sm:$0xff]
    %v2096 = vld [vmem:[#allocation2 + $0xd8] sm:$0xff]
    %2097 = vmatpush.bf16.msra.mxu0 %v846
    %2098 = vmatpush.bf16.msra.mxu0 %v842
    %2099 = vmatpush.bf16.msra.mxu0 %v838
    %2100 = vmatpush.bf16.msra.mxu0 %v834
    %2101 = vmatpush.bf16.msra.mxu0 %v830
    %2102 = vmatpush.bf16.msra.mxu0 %v826
    %2103 = vmatpush.bf16.msra.mxu0 %v822
    %2104 = vmatpush.bf16.msra.mxu0 %v818
    %2105 = vmatmul.bf16.gmra.mxu0 %v1973
    %v2106 = vpop.f32.mrf.mxu0
    %v2107 = vadd.f32 0.0, %v2106
    %v2108 = vpop.f32.mrf.mxu0
    %2109 = vdwg.mxu0
    %2110 = vmatpush.bf16.msra.mxu0 %v847
    %2111 = vmatpush.bf16.msra.mxu0 %v843
    %2112 = vmatpush.bf16.msra.mxu0 %v839
    %2113 = vmatpush.bf16.msra.mxu0 %v835
    %2114 = vmatpush.bf16.msra.mxu0 %v831
    %2115 = vmatpush.bf16.msra.mxu0 %v827
    %2116 = vmatpush.bf16.msra.mxu0 %v823
    %2117 = vmatpush.bf16.msra.mxu0 %v819
    %2118 = vmatmul.bf16.gmra.mxu0 %v1973
    %v2119 = vpop.f32.mrf.mxu0
    %v2120 = vadd.f32 0.0, %v2119
    %v2121 = vpop.f32.mrf.mxu0
    %2122 = vdwg.mxu0
    %2123 = vmatpush.bf16.msra.mxu0 %v848
    %2124 = vmatpush.bf16.msra.mxu0 %v844
    %2125 = vmatpush.bf16.msra.mxu0 %v840
    %2126 = vmatpush.bf16.msra.mxu0 %v836
    %2127 = vmatpush.bf16.msra.mxu0 %v832
    %2128 = vmatpush.bf16.msra.mxu0 %v828
    %2129 = vmatpush.bf16.msra.mxu0 %v824
    %2130 = vmatpush.bf16.msra.mxu0 %v820
    %2131 = vmatmul.bf16.gmra.mxu0 %v1973
    %v2132 = vpop.f32.mrf.mxu0
    %v2133 = vadd.f32 0.0, %v2132
    %v2134 = vpop.f32.mrf.mxu0
    %2135 = vdwg.mxu0
    %2136 = vmatpush.bf16.msra.mxu0 %v849
    %2137 = vmatpush.bf16.msra.mxu0 %v845
    %2138 = vmatpush.bf16.msra.mxu0 %v841
    %2139 = vmatpush.bf16.msra.mxu0 %v837
    %2140 = vmatpush.bf16.msra.mxu0 %v833
    %2141 = vmatpush.bf16.msra.mxu0 %v829
    %2142 = vmatpush.bf16.msra.mxu0 %v825
    %2143 = vmatpush.bf16.msra.mxu0 %v821
    %2144 = vmatmul.bf16.gmra.mxu0 %v1973
    %v2145 = vpop.f32.mrf.mxu0
    %v2146 = vadd.f32 0.0, %v2145
    %v2147 = vpop.f32.mrf.mxu0
    %2148 = vdwg.mxu0
    %v2149 = vadd.f32 %v2093, %v2107
    %v2150 = vadd.f32 %v2094, %v2120
    %v2151 = vadd.f32 %v2095, %v2133
    %v2152 = vadd.f32 %v2096, %v2146
    %v2153 = vxor.u32 %v2149, 2147483648
    %v2154 = vxor.u32 %v2150, 2147483648
    %v2155 = vxor.u32 %v2151, 2147483648
    %v2156 = vmul.f32 %v2153, 1.442695
    %v2157 = vpow.pop %v2156
    %v2158 = vmul.f32 %v2154, 1.442695
    %v2159 = vpow.pop %v2158
    %v2160 = vmul.f32 %v2155, 1.442695
    %v2161 = vpow.pop %v2160
    %v2162 = vadd.f32 %v2157, 1.0
    %v2163 = vadd.f32 %v2159, 1.0
    %v2164 = vadd.f32 %v2161, 1.0
    %v2165 = vrcp.pop %v2162
    %v2166 = vmul.f32 %v2162, %v2165
    %v2167 = vsub.f32 1.0, %v2166
    %v2168 = vmul.f32 %v2165, %v2167
    %v2169 = vadd.f32 %v2165, %v2168
    %vm2170 = vweird.f32 %v2162
    %vm2171 = vweird.f32 %v2165
    %vm2172 = vmor %vm2170, %vm2171
    %v2173 = vsel %vm2172, %v2165, %v2169
    %v2174 = vand.u32 2147483647, %v2162
    %vm2175 = vcmp.eq.f32.partialorder %v2174, 8.507059e+37
    %v2176 = vand.u32 %v2162, 2147483648
    %v2177 = vor.u32 1.1754944e-38, %v2176
    %v2178 = vsel %vm2175, %v2177, %v2173
    %v2179 = vmul.f32 1.0, %v2178
    %v2180 = vrcp.pop %v2163
    %v2181 = vmul.f32 %v2163, %v2180
    %v2182 = vsub.f32 1.0, %v2181
    %v2183 = vmul.f32 %v2180, %v2182
    %v2184 = vadd.f32 %v2180, %v2183
    %vm2185 = vweird.f32 %v2163
    %vm2186 = vweird.f32 %v2180
    %vm2187 = vmor %vm2185, %vm2186
    %v2188 = vsel %vm2187, %v2180, %v2184
    %v2189 = vand.u32 2147483647, %v2163
    %vm2190 = vcmp.eq.f32.partialorder %v2189, 8.507059e+37
    %v2191 = vand.u32 %v2163, 2147483648
    %v2192 = vor.u32 1.1754944e-38, %v2191
    %v2193 = vsel %vm2190, %v2192, %v2188
    %v2194 = vmul.f32 1.0, %v2193
    %v2195 = vrcp.pop %v2164
    %v2196 = vmul.f32 %v2164, %v2195
    %v2197 = vsub.f32 1.0, %v2196
    %v2198 = vmul.f32 %v2195, %v2197
    %v2199 = vadd.f32 %v2195, %v2198
    %vm2200 = vweird.f32 %v2164
    %vm2201 = vweird.f32 %v2195
    %vm2202 = vmor %vm2200, %vm2201
    %v2203 = vsel %vm2202, %v2195, %v2199
    %v2204 = vand.u32 2147483647, %v2164
    %vm2205 = vcmp.eq.f32.partialorder %v2204, 8.507059e+37
    %v2206 = vand.u32 %v2164, 2147483648
    %v2207 = vor.u32 1.1754944e-38, %v2206
    %v2208 = vsel %vm2205, %v2207, %v2203
    %v2209 = vmul.f32 1.0, %v2208
    %v2210 = vtanh.pop %v2152
    %v2211 = vmul.f32 %v2194, %v1970
    %v2212 = vmul.f32 %v2179, %v2210
    %v2213 = vadd.f32 %v2211, %v2212
    %v2214 = vtanh.pop %v2213
    %v2215 = vmul.f32 %v2209, %v2214
    %v2216 = vpack.c.bf16 %v2215, %v2215
    %2217 = vrot.lane.b32.xlu0 %v2092, 64
    %v2218 = vpop.permute.xlu0 %2217
    %v2219 = vadd.f32 %v2215, %v2218
    %v2220 = vpack.c.bf16 %v2219, %v2219
    %2221 = vmatpush.bf16.msra.mxu0 %v567
    %2222 = vmatpush.bf16.msra.mxu0 %v563
    %2223 = vmatpush.bf16.msra.mxu0 %v559
    %2224 = vmatpush.bf16.msra.mxu0 %v555
    %2225 = vmatpush.bf16.msra.mxu0 %v551
    %2226 = vmatpush.bf16.msra.mxu0 %v547
    %2227 = vmatpush.bf16.msra.mxu0 %v543
    %2228 = vmatpush.bf16.msra.mxu0 %v539
    %2229 = vmatmul.bf16.gmra.mxu0 %v2220
    %v2230 = vpop.f32.mrf.mxu0
    %v2231 = vadd.f32 %v367, %v2230
    %v2232 = vpop.f32.mrf.mxu0
    %2233 = vdwg.mxu0
    %2234 = vmatpush.bf16.msra.mxu0 %v568
    %2235 = vmatpush.bf16.msra.mxu0 %v564
    %2236 = vmatpush.bf16.msra.mxu0 %v560
    %2237 = vmatpush.bf16.msra.mxu0 %v556
    %2238 = vmatpush.bf16.msra.mxu0 %v552
    %2239 = vmatpush.bf16.msra.mxu0 %v548
    %2240 = vmatpush.bf16.msra.mxu0 %v544
    %2241 = vmatpush.bf16.msra.mxu0 %v540
    %2242 = vmatmul.bf16.gmra.mxu0 %v2220
    %v2243 = vpop.f32.mrf.mxu0
    %v2244 = vadd.f32 %v368, %v2243
    %v2245 = vpop.f32.mrf.mxu0
    %2246 = vdwg.mxu0
    %2247 = vmatpush.bf16.msra.mxu0 %v569
    %2248 = vmatpush.bf16.msra.mxu0 %v565
    %2249 = vmatpush.bf16.msra.mxu0 %v561
    %2250 = vmatpush.bf16.msra.mxu0 %v557
    %2251 = vmatpush.bf16.msra.mxu0 %v553
    %2252 = vmatpush.bf16.msra.mxu0 %v549
    %2253 = vmatpush.bf16.msra.mxu0 %v545
    %2254 = vmatpush.bf16.msra.mxu0 %v541
    %2255 = vmatmul.bf16.gmra.mxu0 %v2220
    %v2256 = vpop.f32.mrf.mxu0
    %v2257 = vadd.f32 %v369, %v2256
    %v2258 = vpop.f32.mrf.mxu0
    %2259 = vdwg.mxu0
    %2260 = vmatpush.bf16.msra.mxu0 %v570
    %2261 = vmatpush.bf16.msra.mxu0 %v566
    %2262 = vmatpush.bf16.msra.mxu0 %v562
    %2263 = vmatpush.bf16.msra.mxu0 %v558
    %2264 = vmatpush.bf16.msra.mxu0 %v554
    %2265 = vmatpush.bf16.msra.mxu0 %v550
    %2266 = vmatpush.bf16.msra.mxu0 %v546
    %2267 = vmatpush.bf16.msra.mxu0 %v542
    %2268 = vmatmul.bf16.gmra.mxu0 %v2220
    %v2269 = vpop.f32.mrf.mxu0
    %v2270 = vadd.f32 %v370, %v2269
    %v2271 = vpop.f32.mrf.mxu0
    %2272 = vdwg.mxu0
    %v2273 = vxor.u32 %v2231, 2147483648
    %v2274 = vxor.u32 %v2244, 2147483648
    %v2275 = vxor.u32 %v2257, 2147483648
    %v2276 = vmul.f32 %v2273, 1.442695
    %v2277 = vpow.pop %v2276
    %v2278 = vmul.f32 %v2274, 1.442695
    %v2279 = vpow.pop %v2278
    %v2280 = vmul.f32 %v2275, 1.442695
    %v2281 = vpow.pop %v2280
    %v2282 = vadd.f32 %v2277, 1.0
    %v2283 = vadd.f32 %v2279, 1.0
    %v2284 = vadd.f32 %v2281, 1.0
    %v2285 = vrcp.pop %v2282
    %v2286 = vmul.f32 %v2282, %v2285
    %v2287 = vsub.f32 1.0, %v2286
    %v2288 = vmul.f32 %v2285, %v2287
    %v2289 = vadd.f32 %v2285, %v2288
    %vm2290 = vweird.f32 %v2282
    %vm2291 = vweird.f32 %v2285
    %vm2292 = vmor %vm2290, %vm2291
    %v2293 = vsel %vm2292, %v2285, %v2289
    %v2294 = vand.u32 2147483647, %v2282
    %vm2295 = vcmp.eq.f32.partialorder %v2294, 8.507059e+37
    %v2296 = vand.u32 %v2282, 2147483648
    %v2297 = vor.u32 1.1754944e-38, %v2296
    %v2298 = vsel %vm2295, %v2297, %v2293
    %v2299 = vmul.f32 1.0, %v2298
    %v2300 = vrcp.pop %v2283
    %v2301 = vmul.f32 %v2283, %v2300
    %v2302 = vsub.f32 1.0, %v2301
    %v2303 = vmul.f32 %v2300, %v2302
    %v2304 = vadd.f32 %v2300, %v2303
    %vm2305 = vweird.f32 %v2283
    %vm2306 = vweird.f32 %v2300
    %vm2307 = vmor %vm2305, %vm2306
    %v2308 = vsel %vm2307, %v2300, %v2304
    %v2309 = vand.u32 2147483647, %v2283
    %vm2310 = vcmp.eq.f32.partialorder %v2309, 8.507059e+37
    %v2311 = vand.u32 %v2283, 2147483648
    %v2312 = vor.u32 1.1754944e-38, %v2311
    %v2313 = vsel %vm2310, %v2312, %v2308
    %v2314 = vmul.f32 1.0, %v2313
    %v2315 = vrcp.pop %v2284
    %v2316 = vmul.f32 %v2284, %v2315
    %v2317 = vsub.f32 1.0, %v2316
    %v2318 = vmul.f32 %v2315, %v2317
    %v2319 = vadd.f32 %v2315, %v2318
    %vm2320 = vweird.f32 %v2284
    %vm2321 = vweird.f32 %v2315
    %vm2322 = vmor %vm2320, %vm2321
    %v2323 = vsel %vm2322, %v2315, %v2319
    %v2324 = vand.u32 2147483647, %v2284
    %vm2325 = vcmp.eq.f32.partialorder %v2324, 8.507059e+37
    %v2326 = vand.u32 %v2284, 2147483648
    %v2327 = vor.u32 1.1754944e-38, %v2326
    %v2328 = vsel %vm2325, %v2327, %v2323
    %v2329 = vmul.f32 1.0, %v2328
    %v2330 = vtanh.pop %v2270
    %v2331 = vmul.f32 %v2314, %v2090
    %v2332 = vmul.f32 %v2299, %v2330
    %v2333 = vadd.f32 %v2331, %v2332
    %v2334 = vtanh.pop %v2333
    %v2335 = vmul.f32 %v2329, %v2334
    %v2336 = vld [vmem:[#allocation2 + $0xe0] sm:$0xff]
    %v2337 = vld [vmem:[#allocation2 + $0xe8] sm:$0xff]
    %v2338 = vld [vmem:[#allocation2 + $0xf0] sm:$0xff]
    %v2339 = vld [vmem:[#allocation2 + $0xf8] sm:$0xff]
    %2340 = vmatpush.bf16.msra.mxu0 %v846
    %2341 = vmatpush.bf16.msra.mxu0 %v842
    %2342 = vmatpush.bf16.msra.mxu0 %v838
    %2343 = vmatpush.bf16.msra.mxu0 %v834
    %2344 = vmatpush.bf16.msra.mxu0 %v830
    %2345 = vmatpush.bf16.msra.mxu0 %v826
    %2346 = vmatpush.bf16.msra.mxu0 %v822
    %2347 = vmatpush.bf16.msra.mxu0 %v818
    %2348 = vmatmul.bf16.gmra.mxu0 %v2216
    %v2349 = vpop.f32.mrf.mxu0
    %v2350 = vadd.f32 0.0, %v2349
    %v2351 = vpop.f32.mrf.mxu0
    %2352 = vdwg.mxu0
    %2353 = vmatpush.bf16.msra.mxu0 %v847
    %2354 = vmatpush.bf16.msra.mxu0 %v843
    %2355 = vmatpush.bf16.msra.mxu0 %v839
    %2356 = vmatpush.bf16.msra.mxu0 %v835
    %2357 = vmatpush.bf16.msra.mxu0 %v831
    %2358 = vmatpush.bf16.msra.mxu0 %v827
    %2359 = vmatpush.bf16.msra.mxu0 %v823
    %2360 = vmatpush.bf16.msra.mxu0 %v819
    %2361 = vmatmul.bf16.gmra.mxu0 %v2216
    %v2362 = vpop.f32.mrf.mxu0
    %v2363 = vadd.f32 0.0, %v2362
    %v2364 = vpop.f32.mrf.mxu0
    %2365 = vdwg.mxu0
    %2366 = vmatpush.bf16.msra.mxu0 %v848
    %2367 = vmatpush.bf16.msra.mxu0 %v844
    %2368 = vmatpush.bf16.msra.mxu0 %v840
    %2369 = vmatpush.bf16.msra.mxu0 %v836
    %2370 = vmatpush.bf16.msra.mxu0 %v832
    %2371 = vmatpush.bf16.msra.mxu0 %v828
    %2372 = vmatpush.bf16.msra.mxu0 %v824
    %2373 = vmatpush.bf16.msra.mxu0 %v820
    %2374 = vmatmul.bf16.gmra.mxu0 %v2216
    %v2375 = vpop.f32.mrf.mxu0
    %v2376 = vadd.f32 0.0, %v2375
    %v2377 = vpop.f32.mrf.mxu0
    %2378 = vdwg.mxu0
    %2379 = vmatpush.bf16.msra.mxu0 %v849
    %2380 = vmatpush.bf16.msra.mxu0 %v845
    %2381 = vmatpush.bf16.msra.mxu0 %v841
    %2382 = vmatpush.bf16.msra.mxu0 %v837
    %2383 = vmatpush.bf16.msra.mxu0 %v833
    %2384 = vmatpush.bf16.msra.mxu0 %v829
    %2385 = vmatpush.bf16.msra.mxu0 %v825
    %2386 = vmatpush.bf16.msra.mxu0 %v821
    %2387 = vmatmul.bf16.gmra.mxu0 %v2216
    %v2388 = vpop.f32.mrf.mxu0
    %v2389 = vadd.f32 0.0, %v2388
    %v2390 = vpop.f32.mrf.mxu0
    %2391 = vdwg.mxu0
    %v2392 = vadd.f32 %v2336, %v2350
    %v2393 = vadd.f32 %v2337, %v2363
    %v2394 = vadd.f32 %v2338, %v2376
    %v2395 = vadd.f32 %v2339, %v2389
    %v2396 = vxor.u32 %v2392, 2147483648
    %v2397 = vxor.u32 %v2393, 2147483648
    %v2398 = vxor.u32 %v2394, 2147483648
    %v2399 = vmul.f32 %v2396, 1.442695
    %v2400 = vpow.pop %v2399
    %v2401 = vmul.f32 %v2397, 1.442695
    %v2402 = vpow.pop %v2401
    %v2403 = vmul.f32 %v2398, 1.442695
    %v2404 = vpow.pop %v2403
    %v2405 = vadd.f32 %v2400, 1.0
    %v2406 = vadd.f32 %v2402, 1.0
    %v2407 = vadd.f32 %v2404, 1.0
    %v2408 = vrcp.pop %v2405
    %v2409 = vmul.f32 %v2405, %v2408
    %v2410 = vsub.f32 1.0, %v2409
    %v2411 = vmul.f32 %v2408, %v2410
    %v2412 = vadd.f32 %v2408, %v2411
    %vm2413 = vweird.f32 %v2405
    %vm2414 = vweird.f32 %v2408
    %vm2415 = vmor %vm2413, %vm2414
    %v2416 = vsel %vm2415, %v2408, %v2412
    %v2417 = vand.u32 2147483647, %v2405
    %vm2418 = vcmp.eq.f32.partialorder %v2417, 8.507059e+37
    %v2419 = vand.u32 %v2405, 2147483648
    %v2420 = vor.u32 1.1754944e-38, %v2419
    %v2421 = vsel %vm2418, %v2420, %v2416
    %v2422 = vmul.f32 1.0, %v2421
    %v2423 = vrcp.pop %v2406
    %v2424 = vmul.f32 %v2406, %v2423
    %v2425 = vsub.f32 1.0, %v2424
    %v2426 = vmul.f32 %v2423, %v2425
    %v2427 = vadd.f32 %v2423, %v2426
    %vm2428 = vweird.f32 %v2406
    %vm2429 = vweird.f32 %v2423
    %vm2430 = vmor %vm2428, %vm2429
    %v2431 = vsel %vm2430, %v2423, %v2427
    %v2432 = vand.u32 2147483647, %v2406
    %vm2433 = vcmp.eq.f32.partialorder %v2432, 8.507059e+37
    %v2434 = vand.u32 %v2406, 2147483648
    %v2435 = vor.u32 1.1754944e-38, %v2434
    %v2436 = vsel %vm2433, %v2435, %v2431
    %v2437 = vmul.f32 1.0, %v2436
    %v2438 = vrcp.pop %v2407
    %v2439 = vmul.f32 %v2407, %v2438
    %v2440 = vsub.f32 1.0, %v2439
    %v2441 = vmul.f32 %v2438, %v2440
    %v2442 = vadd.f32 %v2438, %v2441
    %vm2443 = vweird.f32 %v2407
    %vm2444 = vweird.f32 %v2438
    %vm2445 = vmor %vm2443, %vm2444
    %v2446 = vsel %vm2445, %v2438, %v2442
    %v2447 = vand.u32 2147483647, %v2407
    %vm2448 = vcmp.eq.f32.partialorder %v2447, 8.507059e+37
    %v2449 = vand.u32 %v2407, 2147483648
    %v2450 = vor.u32 1.1754944e-38, %v2449
    %v2451 = vsel %vm2448, %v2450, %v2446
    %v2452 = vmul.f32 1.0, %v2451
    %v2453 = vtanh.pop %v2395
    %v2454 = vmul.f32 %v2437, %v2213
    %v2455 = vmul.f32 %v2422, %v2453
    %v2456 = vadd.f32 %v2454, %v2455
    %v2457 = vtanh.pop %v2456
    %v2458 = vmul.f32 %v2452, %v2457
    %2459 = vrot.lane.b32.xlu0 %v2335, 64
    %v2460 = vpop.permute.xlu0 %2459
    %v2461 = vadd.f32 %v2458, %v2460
    %v2462 = vpack.c.bf16 %v2461, %v2461
    %2463 = vmatpush.bf16.msra.mxu0 %v567
    %2464 = vmatpush.bf16.msra.mxu0 %v563
    %2465 = vmatpush.bf16.msra.mxu0 %v559
    %2466 = vmatpush.bf16.msra.mxu0 %v555
    %2467 = vmatpush.bf16.msra.mxu0 %v551
    %2468 = vmatpush.bf16.msra.mxu0 %v547
    %2469 = vmatpush.bf16.msra.mxu0 %v543
    %2470 = vmatpush.bf16.msra.mxu0 %v539
    %2471 = vmatmul.bf16.gmra.mxu0 %v2462
    %v2472 = vpop.f32.mrf.mxu0
    %v2473 = vadd.f32 %v367, %v2472
    %v2474 = vpop.f32.mrf.mxu0
    %2475 = vdwg.mxu0
    %2476 = vmatpush.bf16.msra.mxu0 %v568
    %2477 = vmatpush.bf16.msra.mxu0 %v564
    %2478 = vmatpush.bf16.msra.mxu0 %v560
    %2479 = vmatpush.bf16.msra.mxu0 %v556
    %2480 = vmatpush.bf16.msra.mxu0 %v552
    %2481 = vmatpush.bf16.msra.mxu0 %v548
    %2482 = vmatpush.bf16.msra.mxu0 %v544
    %2483 = vmatpush.bf16.msra.mxu0 %v540
    %2484 = vmatmul.bf16.gmra.mxu0 %v2462
    %v2485 = vpop.f32.mrf.mxu0
    %v2486 = vadd.f32 %v368, %v2485
    %v2487 = vpop.f32.mrf.mxu0
    %2488 = vdwg.mxu0
    %2489 = vmatpush.bf16.msra.mxu0 %v569
    %2490 = vmatpush.bf16.msra.mxu0 %v565
    %2491 = vmatpush.bf16.msra.mxu0 %v561
    %2492 = vmatpush.bf16.msra.mxu0 %v557
    %2493 = vmatpush.bf16.msra.mxu0 %v553
    %2494 = vmatpush.bf16.msra.mxu0 %v549
    %2495 = vmatpush.bf16.msra.mxu0 %v545
    %2496 = vmatpush.bf16.msra.mxu0 %v541
    %2497 = vmatmul.bf16.gmra.mxu0 %v2462
    %v2498 = vpop.f32.mrf.mxu0
    %v2499 = vadd.f32 %v369, %v2498
    %v2500 = vpop.f32.mrf.mxu0
    %2501 = vdwg.mxu0
    %2502 = vmatpush.bf16.msra.mxu0 %v570
    %2503 = vmatpush.bf16.msra.mxu0 %v566
    %2504 = vmatpush.bf16.msra.mxu0 %v562
    %2505 = vmatpush.bf16.msra.mxu0 %v558
    %2506 = vmatpush.bf16.msra.mxu0 %v554
    %2507 = vmatpush.bf16.msra.mxu0 %v550
    %2508 = vmatpush.bf16.msra.mxu0 %v546
    %2509 = vmatpush.bf16.msra.mxu0 %v542
    %2510 = vmatmul.bf16.gmra.mxu0 %v2462
    %v2511 = vpop.f32.mrf.mxu0
    %v2512 = vadd.f32 %v370, %v2511
    %v2513 = vpop.f32.mrf.mxu0
    %2514 = vdwg.mxu0
    %v2515 = vxor.u32 %v2473, 2147483648
    %v2516 = vxor.u32 %v2486, 2147483648
    %v2517 = vxor.u32 %v2499, 2147483648
    %v2518 = vmul.f32 %v2515, 1.442695
    %v2519 = vpow.pop %v2518
    %v2520 = vmul.f32 %v2516, 1.442695
    %v2521 = vpow.pop %v2520
    %v2522 = vmul.f32 %v2517, 1.442695
    %v2523 = vpow.pop %v2522
    %v2524 = vadd.f32 %v2519, 1.0
    %v2525 = vadd.f32 %v2521, 1.0
    %v2526 = vadd.f32 %v2523, 1.0
    %v2527 = vrcp.pop %v2524
    %v2528 = vmul.f32 %v2524, %v2527
    %v2529 = vsub.f32 1.0, %v2528
    %v2530 = vmul.f32 %v2527, %v2529
    %v2531 = vadd.f32 %v2527, %v2530
    %vm2532 = vweird.f32 %v2524
    %vm2533 = vweird.f32 %v2527
    %vm2534 = vmor %vm2532, %vm2533
    %v2535 = vsel %vm2534, %v2527, %v2531
    %v2536 = vand.u32 2147483647, %v2524
    %vm2537 = vcmp.eq.f32.partialorder %v2536, 8.507059e+37
    %v2538 = vand.u32 %v2524, 2147483648
    %v2539 = vor.u32 1.1754944e-38, %v2538
    %v2540 = vsel %vm2537, %v2539, %v2535
    %v2541 = vmul.f32 1.0, %v2540
    %v2542 = vrcp.pop %v2525
    %v2543 = vmul.f32 %v2525, %v2542
    %v2544 = vsub.f32 1.0, %v2543
    %v2545 = vmul.f32 %v2542, %v2544
    %v2546 = vadd.f32 %v2542, %v2545
    %vm2547 = vweird.f32 %v2525
    %vm2548 = vweird.f32 %v2542
    %vm2549 = vmor %vm2547, %vm2548
    %v2550 = vsel %vm2549, %v2542, %v2546
    %v2551 = vand.u32 2147483647, %v2525
    %vm2552 = vcmp.eq.f32.partialorder %v2551, 8.507059e+37
    %v2553 = vand.u32 %v2525, 2147483648
    %v2554 = vor.u32 1.1754944e-38, %v2553
    %v2555 = vsel %vm2552, %v2554, %v2550
    %v2556 = vmul.f32 1.0, %v2555
    %v2557 = vrcp.pop %v2526
    %v2558 = vmul.f32 %v2526, %v2557
    %v2559 = vsub.f32 1.0, %v2558
    %v2560 = vmul.f32 %v2557, %v2559
    %v2561 = vadd.f32 %v2557, %v2560
    %vm2562 = vweird.f32 %v2526
    %vm2563 = vweird.f32 %v2557
    %vm2564 = vmor %vm2562, %vm2563
    %v2565 = vsel %vm2564, %v2557, %v2561
    %v2566 = vand.u32 2147483647, %v2526
    %vm2567 = vcmp.eq.f32.partialorder %v2566, 8.507059e+37
    %v2568 = vand.u32 %v2526, 2147483648
    %v2569 = vor.u32 1.1754944e-38, %v2568
    %v2570 = vsel %vm2567, %v2569, %v2565
    %v2571 = vmul.f32 1.0, %v2570
    %v2572 = vtanh.pop %v2512
    %v2573 = vmul.f32 %v2556, %v2333
    %v2574 = vmul.f32 %v2541, %v2572
    %v2575 = vadd.f32 %v2573, %v2574
    %v2576 = vtanh.pop %v2575
    %v2577 = vmul.f32 %v2571, %v2576
    %v2578 = vpack.c.bf16 %v2577, %v2577
    %v2579 = vld [vmem:[#allocation8] sm:$0xf]
    %v2580 = vld [vmem:[#allocation8 + $0x4] sm:$0xf]
    %v2581 = vld [vmem:[#allocation8 + $0x8] sm:$0xf]
    %v2582 = vld [vmem:[#allocation8 + $0xc] sm:$0xf]
    %v2583 = vld [vmem:[#allocation8 + $0x10] sm:$0xf]
    %v2584 = vld [vmem:[#allocation8 + $0x14] sm:$0xf]
    %v2585 = vld [vmem:[#allocation8 + $0x18] sm:$0xf]
    %v2586 = vld [vmem:[#allocation8 + $0x1c] sm:$0xf]
    %v2587 = vld [vmem:[#allocation8 + $0x20] sm:$0xf]
    %v2588 = vld [vmem:[#allocation8 + $0x24] sm:$0xf]
    %v2589 = vld [vmem:[#allocation8 + $0x28] sm:$0xf]
    %v2590 = vld [vmem:[#allocation8 + $0x2c] sm:$0xf]
    %v2591 = vld [vmem:[#allocation8 + $0x30] sm:$0xf]
    %v2592 = vld [vmem:[#allocation8 + $0x34] sm:$0xf]
    %v2593 = vld [vmem:[#allocation8 + $0x38] sm:$0xf]
    %v2594 = vld [vmem:[#allocation8 + $0x3c] sm:$0xf]
    %v2595 = vld [vmem:[%s7] sm:$0x1]
    %v2597 = vperm.slane %v2595, 0
    %v2615 = vunpack.c.l.b16 %v2579
    %v2616 = vunpack.c.l.b16 %v2580
    %v2617 = vunpack.c.l.b16 %v2581
    %v2618 = vunpack.c.l.b16 %v2582
    %v2619 = vunpack.c.l.b16 %v2583
    %v2620 = vunpack.c.l.b16 %v2584
    %v2621 = vunpack.c.l.b16 %v2585
    %v2622 = vunpack.c.l.b16 %v2586
    %v2623 = vunpack.c.l.b16 %v2587
    %v2624 = vunpack.c.l.b16 %v2588
    %v2625 = vunpack.c.l.b16 %v2589
    %v2626 = vunpack.c.l.b16 %v2590
    %v2627 = vunpack.c.l.b16 %v2591
    %v2628 = vunpack.c.l.b16 %v2592
    %v2629 = vunpack.c.l.b16 %v2593
    %v2630 = vunpack.c.l.b16 %v2594
    %v2631 = vpack.c.b16 %v2616, %v2615
    %v2632 = vpack.c.b16 %v2618, %v2617
    %v2633 = vpack.c.b16 %v2620, %v2619
    %v2634 = vpack.c.b16 %v2622, %v2621
    %v2635 = vpack.c.b16 %v2624, %v2623
    %v2636 = vpack.c.b16 %v2626, %v2625
    %v2637 = vpack.c.b16 %v2628, %v2627
    %v2638 = vpack.c.b16 %v2630, %v2629
    %2647 = vmatpush.bf16.msra.mxu0 %v2638
    %2648 = vmatpush.bf16.msra.mxu0 %v2637
    %2649 = vmatpush.bf16.msra.mxu0 %v2636
    %2650 = vmatpush.bf16.msra.mxu0 %v2635
    %2651 = vmatpush.bf16.msra.mxu0 %v2634
    %2652 = vmatpush.bf16.msra.mxu0 %v2633
    %2653 = vmatpush.bf16.msra.mxu0 %v2632
    %2654 = vmatpush.bf16.msra.mxu0 %v2631
    %2655 = vmatmul.bf16.gmra.mxu0 %v2578
    %v2656 = vpop.f32.mrf.mxu0
    %v2657 = vadd.f32 %v2597, %v2656
    %v2658 = vpop.f32.mrf.mxu0
    %2659 = vdwg.mxu0
    %2660 = vst [vmem:[#allocation9] sm:$0xff] %v2657
    // Predicated region
    $region46: #{tpu_custom_call.1} parent=1 // pred_check
      _
    $region47: #{tpu_custom_call.1} parent=1 // pred_check_branch
      %2662 = sbr.rel (0) target = $region49
    $region48: #{tpu_custom_call.1} parent=1 // pred_region
      %2664 = vsyncadd [#allocation5], 0
      %s2666 = sshll.u32 [#allocation9], 4
      %s2667 = int_to_ptr.vmem [resolvable:$true] %s2666
      %s2668 = sshll.u32 %s8, 4
      %s2669 = int_to_ptr.hbm [resolvable:$true] %s2668
      %2671 = dma.vmem_to_hbm [thread:$0]  %s2667, 128, %s2669, [#allocation5]
    $region49: #{tpu_custom_call.1} parent=1 // pred_fallthru
      _
    // Predicated region
    $region50: #{tpu_custom_call.1} parent=1 // pred_check
      _
    $region51: #{tpu_custom_call.1} parent=1 // pred_check_branch
      %2673 = sbr.rel (0) target = $region53
    $region52: #{tpu_custom_call.1} parent=1 // pred_region
      %2675 = dma.done [#allocation5], 128
    $region53: #{tpu_custom_call.1} parent=1 // pred_fallthru
      _
    %2676 = vsyncpa [#allocation4], 1
    %2677 = vsyncpa [#allocation7], 1
    %2678 = vsyncpa [#allocation5], 1

</llo_original>
